<compile_context>
chip_gen: v5e
topology: v5e:2x2
jax: 0.10.0
libtpu: 0.0.40
codegen_flags: <defaults>
</compile_context>

<pallas_src>
import math
import functools
import jax
import jax.numpy as jnp
from jax.experimental import pallas as pl
from jax.experimental.pallas import tpu as pltpu


# --------------------------------------------------------------------------
# Helpers
# --------------------------------------------------------------------------

def _round_up(x, m):
    return (x + m - 1) // m * m


def _pad_rows(x, rows):
    if x.shape[0] == rows:
        return x
    return jnp.pad(x, ((0, rows - x.shape[0]), (0, 0)))


# --------------------------------------------------------------------------
# Kernel 1: plain Linear (no batch-norm)  -- used for conv1 (6 -> 128)
# --------------------------------------------------------------------------

def _mm_kernel(x_ref, w_ref, b_ref, o_ref):
    o_ref[...] = (
        jnp.dot(x_ref[...], w_ref[...], preferred_element_type=jnp.float32)
        + b_ref[...]
    )


def linear_nobn(x2, w, b, *, tm_target=512):
    """x2: (M, Cin) @ w: (Cin, Cout) + b.  Returns (M, Cout) f32."""
    M, Cin = x2.shape
    Cout = w.shape[1]
    cin_p = _round_up(max(Cin, 8), 8)
    if cin_p != Cin:
        x2 = jnp.pad(x2, ((0, 0), (0, cin_p - Cin)))
        w = jnp.pad(w, ((0, cin_p - Cin), (0, 0)))
    cout_p = _round_up(Cout, 128)
    if cout_p != Cout:
        w = jnp.pad(w, ((0, 0), (0, cout_p - Cout)))
        b = jnp.pad(b, (0, cout_p - Cout))
    tm = min(tm_target, _round_up(M, 8))
    mp = _round_up(M, tm)
    x2 = _pad_rows(x2, mp)
    y = pl.pallas_call(
        _mm_kernel,
        out_shape=jax.ShapeDtypeStruct((mp, cout_p), jnp.float32),
        grid=(mp // tm,),
        in_specs=[
            pl.BlockSpec((tm, cin_p), lambda i: (i, 0)),
            pl.BlockSpec((cin_p, cout_p), lambda i: (0, 0)),
            pl.BlockSpec((1, cout_p), lambda i: (0, 0)),
        ],
        out_specs=pl.BlockSpec((tm, cout_p), lambda i: (i, 0)),
        compiler_params=pltpu.CompilerParams(dimension_semantics=("parallel",)),
    )(x2, w, b.reshape(1, cout_p))
    return y[:M, :Cout]


# --------------------------------------------------------------------------
# Kernel 2: fused pre-BatchNorm + Linear, single input  -- used for conv2
#   grid = (2, num_row_tiles):  phase 0 = stats into scratch, phase 1 = matmul
# --------------------------------------------------------------------------

def _gc1_kernel(x_ref, w_ref, b_ref, o_ref, s1, s2, *, n_rows, eps):
    p = pl.program_id(0)
    i = pl.program_id(1)

    @pl.when((p == 0) & (i == 0))
    def _():
        s1[...] = jnp.zeros_like(s1)
        s2[...] = jnp.zeros_like(s2)

    @pl.when(p == 0)
    def _():
        x = x_ref[...]
        s1[...] += jnp.sum(x, axis=0, keepdims=True)
        s2[...] += jnp.sum(x * x, axis=0, keepdims=True)
        o_ref[...] = jnp.zeros_like(o_ref)          # full write, no stale reads

    @pl.when(p == 1)
    def _():
        inv_n = 1.0 / n_rows
        m = s1[...] * inv_n
        v = jnp.maximum(s2[...] * inv_n - m * m, 0.0)
        istd = jax.lax.rsqrt(v + eps)
        xn = (x_ref[...] - m) * istd
        o_ref[...] = (
            jnp.dot(xn, w_ref[...], preferred_element_type=jnp.float32)
            + b_ref[...]
        )


def graph_conv_bn(x, w, bias, *, tm_target=512, eps=1e-5):
    """GraphConv1x1(batch_norm='pre'): BN over (B*N, Cin) then Linear."""
    B, N, Cin = x.shape
    Cout = w.shape[1]
    cout_p = _round_up(Cout, 128)
    if cout_p != Cout:
        w = jnp.pad(w, ((0, 0), (0, cout_p - Cout)))
        bias = jnp.pad(bias, (0, cout_p - Cout))
    M = B * N
    x2 = x.reshape(M, Cin)
    tm = min(tm_target, _round_up(M, 8))
    mp = _round_up(M, tm)
    x2 = _pad_rows(x2, mp)                          # zero rows: no effect on sums
    kernel = functools.partial(_gc1_kernel, n_rows=float(M), eps=eps)
    y = pl.pallas_call(
        kernel,
        out_shape=jax.ShapeDtypeStruct((mp, cout_p), jnp.float32),
        grid=(2, mp // tm),
        in_specs=[
            pl.BlockSpec((tm, Cin), lambda p, i: (i, 0)),
            pl.BlockSpec((Cin, cout_p), lambda p, i: (0, 0)),
            pl.BlockSpec((1, cout_p), lambda p, i: (0, 0)),
        ],
        out_specs=pl.BlockSpec((tm, cout_p), lambda p, i: (i, 0)),
        scratch_shapes=[
            pltpu.VMEM((1, Cin), jnp.float32),
            pltpu.VMEM((1, Cin), jnp.float32),
        ],
        compiler_params=pltpu.CompilerParams(
            dimension_semantics=("arbitrary", "arbitrary")),
    )(x2, w, bias.reshape(1, cout_p))
    return y[:M, :Cout].reshape(B, N, Cout)


# --------------------------------------------------------------------------
# Kernel 3: fused pre-BatchNorm + Linear over concat([a, b], -1), concat-free
#   concat([a,b]) @ W  ==  a @ W[:Ch] + b @ W[Ch:]
# --------------------------------------------------------------------------

def _gc2_kernel(a_ref, b_ref, wa_ref, wb_ref, bias_ref, o_ref,
                s1a, s2a, s1b, s2b, *, n_rows, eps):
    p = pl.program_id(0)
    i = pl.program_id(1)

    @pl.when((p == 0) & (i == 0))
    def _():
        s1a[...] = jnp.zeros_like(s1a)
        s2a[...] = jnp.zeros_like(s2a)
        s1b[...] = jnp.zeros_like(s1b)
        s2b[...] = jnp.zeros_like(s2b)

    @pl.when(p == 0)
    def _():
        xa = a_ref[...]
        xb = b_ref[...]
        s1a[...] += jnp.sum(xa, axis=0, keepdims=True)
        s2a[...] += jnp.sum(xa * xa, axis=0, keepdims=True)
        s1b[...] += jnp.sum(xb, axis=0, keepdims=True)
        s2b[...] += jnp.sum(xb * xb, axis=0, keepdims=True)
        o_ref[...] = jnp.zeros_like(o_ref)

    @pl.when(p == 1)
    def _():
        inv_n = 1.0 / n_rows
        ma = s1a[...] * inv_n
        va = jnp.maximum(s2a[...] * inv_n - ma * ma, 0.0)
        ia = jax.lax.rsqrt(va + eps)
        mb = s1b[...] * inv_n
        vb = jnp.maximum(s2b[...] * inv_n - mb * mb, 0.0)
        ib = jax.lax.rsqrt(vb + eps)
        xa = (a_ref[...] - ma) * ia
        xb = (b_ref[...] - mb) * ib
        o_ref[...] = (
            jnp.dot(xa, wa_ref[...], preferred_element_type=jnp.float32)
            + jnp.dot(xb, wb_ref[...], preferred_element_type=jnp.float32)
            + bias_ref[...]
        )


def graph_conv_bn_dual(a, b_feat, w, bias, *, tm_target=512, eps=1e-5):
    """GraphConv1x1('pre') applied to concat([a, b_feat], axis=-1) without
    materializing the concat.  a, b_feat: (B, N, Ch); w: (2*Ch, Cout)."""
    B, N, Ch = a.shape
    Cout = w.shape[1]
    M = B * N
    a2 = a.reshape(M, Ch)
    b2 = b_feat.reshape(M, Ch)
    wa, wb = w[:Ch], w[Ch:]
    tm = min(tm_target, _round_up(M, 8))
    mp = _round_up(M, tm)
    a2 = _pad_rows(a2, mp)
    b2 = _pad_rows(b2, mp)
    kernel = functools.partial(_gc2_kernel, n_rows=float(M), eps=eps)
    y = pl.pallas_call(
        kernel,
        out_shape=jax.ShapeDtypeStruct((mp, Cout), jnp.float32),
        grid=(2, mp // tm),
        in_specs=[
            pl.BlockSpec((tm, Ch), lambda p, i: (i, 0)),
            pl.BlockSpec((tm, Ch), lambda p, i: (i, 0)),
            pl.BlockSpec((Ch, Cout), lambda p, i: (0, 0)),
            pl.BlockSpec((Ch, Cout), lambda p, i: (0, 0)),
            pl.BlockSpec((1, Cout), lambda p, i: (0, 0)),
        ],
        out_specs=pl.BlockSpec((tm, Cout), lambda p, i: (i, 0)),
        scratch_shapes=[
            pltpu.VMEM((1, Ch), jnp.float32),
            pltpu.VMEM((1, Ch), jnp.float32),
            pltpu.VMEM((1, Ch), jnp.float32),
            pltpu.VMEM((1, Ch), jnp.float32),
        ],
        compiler_params=pltpu.CompilerParams(
            dimension_semantics=("arbitrary", "arbitrary")),
    )(a2, b2, wa, wb, bias.reshape(1, Cout))
    return y[:M].reshape(B, N, Cout)


# --------------------------------------------------------------------------
# Kernel 4: tiled batched matmul for the Dirac operator (bf16 MXU, f32 acc)
# --------------------------------------------------------------------------

def _dirac_kernel(a_ref, x_ref, o_ref, acc_ref):
    @pl.when(pl.program_id(2) == 0)
    def _():
        acc_ref[...] = jnp.zeros_like(acc_ref)
    acc_ref[...] += jnp.dot(a_ref[0], x_ref[0],
                            preferred_element_type=jnp.float32)
    o_ref[0] = acc_ref[...]


def dirac_bmm(a, x, *, tr_target=256, tk_target=512):
    """Batched matmul: a (B, R, K) @ x (B, K, Cq) -> (B, R, Cq) f32."""
    B, R, K = a.shape
    Cq = x.shape[2]
    a = a.astype(jnp.bfloat16)
    x = x.astype(jnp.bfloat16)
    tr = R if R <= tr_target else tr_target
    tk = K if K <= tk_target else tk_target
    rp = _round_up(R, tr)
    kp = _round_up(K, tk)
    if rp != R or kp != K:
        a = jnp.pad(a, ((0, 0), (0, rp - R), (0, kp - K)))
    if kp != K:
        x = jnp.pad(x, ((0, 0), (0, kp - K), (0, 0)))
    y = pl.pallas_call(
        _dirac_kernel,
        out_shape=jax.ShapeDtypeStruct((B, rp, Cq), jnp.float32),
        grid=(B, rp // tr, kp // tk),
        in_specs=[
            pl.BlockSpec((1, tr, tk), lambda b, r, k: (b, r, k)),
            pl.BlockSpec((1, tk, Cq), lambda b, r, k: (b, k, 0)),
        ],
        out_specs=pl.BlockSpec((1, tr, Cq), lambda b, r, k: (b, r, 0)),
        scratch_shapes=[pltpu.VMEM((tr, Cq), jnp.float32)],
        compiler_params=pltpu.CompilerParams(
            dimension_semantics=("parallel", "parallel", "arbitrary")),
    )(a, x)
    return y[:, :R] if rp != R else y


# --------------------------------------------------------------------------
# Module forward (glue in plain JAX, hot paths in Pallas)
# --------------------------------------------------------------------------

def graph_conv1x1_nobn(x, w, b):
    B, N, Cin = x.shape
    y = linear_nobn(x.reshape(B * N, Cin), w, b)
    return y.reshape(B, N, w.shape[1])


def dir_resnet2(p, Di, DiA, v, f):
    """utils.DirResNet2 (res_f=False)."""
    B, N, C = v.shape
    _, Fc, _ = f.shape
    x_in = jax.nn.elu(v)
    f_in = jax.nn.elu(f)
    # quaternion view: (B, N, C) -> (B, 4N, C/4)
    xq = x_in.reshape(B, 4 * N, C // 4)
    fq = f_in.reshape(B, 4 * Fc, C // 4)
    d_v = dirac_bmm(Di, xq).reshape(B, Fc, C)       # Di  @ v : face features
    d_f = dirac_bmm(DiA, fq).reshape(B, N, C)       # DiA @ f : vertex features
    v_out = graph_conv_bn_dual(v, d_f, p["fc0_w"], p["fc0_b"])
    f_out = graph_conv_bn_dual(f, d_v, p["fc1_w"], p["fc1_b"])
    return v + v_out, f_out                          # res_f=False: no face residual


def avg_resnet2(p, mask, inputs):
    """utils.AvgResNet2: masked global-average feature concat, twice."""
    x = inputs
    for j in range(2):
        xe = jax.nn.elu(x)
        xm = jnp.sum(xe * mask, axis=1, keepdims=True) / jnp.sum(
            mask, axis=1, keepdims=True)
        xb = jnp.broadcast_to(xm, xe.shape) * mask
        w, b = (p["fc0_w"], p["fc0_b"]) if j == 0 else (p["fc1_w"], p["fc1_b"])
        x = graph_conv_bn_dual(xe, xb, w, b)
    return x + inputs


def dir_model_forward(params, Di, DiA, mask, inputs):
    B, N, _ = inputs.shape
    num_faces = DiA.shape[2] // 4
    v = graph_conv1x1_nobn(inputs, params["conv1_w"], params["conv1_b"])
    f = jnp.zeros((B, num_faces, 128), jnp.float32)
    for i in range(15):
        p = params[f"rn{i}"]
        if i % 2 == 0:
            v, f = dir_resnet2(p, Di, DiA, v, f)
        else:
            v = avg_resnet2(p, mask, v)
    x = jax.nn.elu(v)
    x = graph_conv_bn(x, params["conv2_w"], params["conv2_b"])
    return x + jnp.tile(inputs[:, :, -3:], (1, 1, 40))


# --------------------------------------------------------------------------
# Deterministic parameter init (PyTorch nn.Linear default: U(-1/sqrt(fan_in), +))
# --------------------------------------------------------------------------

def _init_linear(key, cin, cout):
    kw, kb = jax.random.split(key)
    bound = 1.0 / math.sqrt(cin)
    w = jax.random.uniform(kw, (cin, cout), jnp.float32, -bound, bound)
    b = jax.random.uniform(kb, (cout,), jnp.float32, -bound, bound)
    return w, b


def init_params(key):
    keys = jax.random.split(key, 2 + 2 * 15)
    params = {}
    params["conv1_w"], params["conv1_b"] = _init_linear(keys[0], 6, 128)
    params["conv2_w"], params["conv2_b"] = _init_linear(keys[1], 128, 120)
    for i in range(15):
        k0, k1 = keys[2 + 2 * i], keys[3 + 2 * i]
        w0, b0 = _init_linear(k0, 256, 128)
        w1, b1 = _init_linear(k1, 256, 128)
        params[f"rn{i}"] = {"fc0_w": w0, "fc0_b": b0, "fc1_w": w1, "fc1_b": b1}
    return params


# --------------------------------------------------------------------------

if __name__ == "__main__":
    key = jax.random.PRNGKey(0)
    B, N, Fc = 2, 16, 8          # batch, vertices, faces
    k_in, k_di, k_dia, k_par = jax.random.split(key, 4)

    inputs = jax.random.normal(k_in, (B, N, 6), jnp.float32)
    # Synthetic dense stand-ins for the sparse Dirac operator and its adjoint.
    Di = 0.1 * jax.random.normal(k_di, (B, 4 * Fc, 4 * N), jnp.float32)
    DiA = 0.1 * jax.random.normal(k_dia, (B, 4 * N, 4 * Fc), jnp.float32)
    mask = jnp.ones((B, N, 1), jnp.float32)

    params = init_params(k_par)

    fwd = jax.jit(dir_model_forward)
    out = fwd(params, Di, DiA, mask, inputs)
    out = jax.block_until_ready(out)
    assert out.shape == (B, N, 120), out.shape
    assert bool(jnp.all(jnp.isfinite(out)))
    print("KERNEL_OK")
</pallas_src>

<mosaic_0001>
module attributes {stable_mosaic.version = 11 : i64} {
  func.func @_mm_kernel(%arg0: i32, %arg1: memref<32x8xf32, #tpu.memory_space<vmem>>, %arg2: memref<8x128xf32, #tpu.memory_space<vmem>>, %arg3: memref<1x128xf32, #tpu.memory_space<vmem>>, %arg4: memref<32x128xf32, #tpu.memory_space<vmem>>) attributes {dimension_semantics = [#tpu.dimension_semantics<parallel>], iteration_bounds = array<i64: 1>, scalar_prefetch = 0 : i64, scratch_operands = 0 : i64, tpu.core_type = #tpu.core_type<tc>, window_params = [{transform_indices = @transform_0, window_bounds = array<i64: 32, 8>}, {pipeline_mode = #tpu.pipeline_mode<synchronous>, transform_indices = @transform_1, window_bounds = array<i64: 8, 128>}, {pipeline_mode = #tpu.pipeline_mode<synchronous>, transform_indices = @transform_2, window_bounds = array<i64: 1, 128>}, {transform_indices = @transform_3, window_bounds = array<i64: 32, 128>}]} {
    %c0 = arith.constant 0 : index
    %c0_0 = arith.constant 0 : index
    %0 = vector.load %arg1[%c0, %c0_0] : memref<32x8xf32, #tpu.memory_space<vmem>>, vector<32x8xf32>
    %c0_1 = arith.constant 0 : index
    %c0_2 = arith.constant 0 : index
    %1 = vector.load %arg2[%c0_1, %c0_2] : memref<8x128xf32, #tpu.memory_space<vmem>>, vector<8x128xf32>
    %cst = arith.constant dense<0.000000e+00> : vector<32x128xf32>
    %2 = tpu.matmul %0, %1, %cst {dimension_numbers = #tpu.dot_dimension_numbers<[1], [0], [0], [1], [0, 0, 1, 1], [], []>} : vector<32x8xf32>, vector<8x128xf32>, vector<32x128xf32> -> vector<32x128xf32>
    %c0_3 = arith.constant 0 : index
    %c0_4 = arith.constant 0 : index
    %3 = vector.load %arg3[%c0_3, %c0_4] : memref<1x128xf32, #tpu.memory_space<vmem>>, vector<1x128xf32>
    %4 = vector.broadcast %3 : vector<1x128xf32> to vector<32x128xf32>
    %5 = arith.addf %2, %4 : vector<32x128xf32>
    %c0_5 = arith.constant 0 : index
    %c0_6 = arith.constant 0 : index
    %6 = vector.load %arg4[%c0_5, %c0_6] : memref<32x128xf32, #tpu.memory_space<vmem>>, vector<32x128xf32>
    tpu.vector_store %arg4[%c0_5, %c0_6], %5 {strides = array<i32>} : memref<32x128xf32, #tpu.memory_space<vmem>>, vector<32x128xf32>,
    return
  }
  func.func @transform_0(%arg0: i32) -> (i32, i32) {
    %c0_i32 = arith.constant 0 : i32
    %c0_i32_0 = arith.constant 0 : i32
    return %arg0, %c0_i32 : i32, i32
  }
  func.func @transform_1(%arg0: i32) -> (i32, i32) {
    %c0_i32 = arith.constant 0 : i32
    %c0_i32_0 = arith.constant 0 : i32
    %c0_i32_1 = arith.constant 0 : i32
    return %c0_i32, %c0_i32_0 : i32, i32
  }
  func.func @transform_2(%arg0: i32) -> (i32, i32) {
    %c0_i32 = arith.constant 0 : i32
    %c0_i32_0 = arith.constant 0 : i32
    %c0_i32_1 = arith.constant 0 : i32
    return %c0_i32, %c0_i32_0 : i32, i32
  }
  func.func @transform_3(%arg0: i32) -> (i32, i32) {
    %c0_i32 = arith.constant 0 : i32
    %c0_i32_0 = arith.constant 0 : i32
    return %arg0, %c0_i32 : i32, i32
  }
}

module attributes {stable_mosaic.version = 11 : i64} {
  func.func @_dirac_kernel(%arg0: i32, %arg1: i32, %arg2: i32, %arg3: memref<1x64x32xbf16, #tpu.memory_space<vmem>>, %arg4: memref<1x32x32xbf16, #tpu.memory_space<vmem>>, %arg5: memref<1x64x32xf32, #tpu.memory_space<vmem>>, %arg6: memref<64x32xf32, #tpu.memory_space<vmem>>) attributes {dimension_semantics = [#tpu.dimension_semantics<parallel>, #tpu.dimension_semantics<parallel>, #tpu.dimension_semantics<arbitrary>], iteration_bounds = array<i64: 2, 1, 1>, scalar_prefetch = 0 : i64, scratch_operands = 1 : i64, tpu.core_type = #tpu.core_type<tc>, window_params = [{transform_indices = @transform_0, window_bounds = array<i64: 1, 64, 32>}, {transform_indices = @transform_1, window_bounds = array<i64: 1, 32, 32>}, {transform_indices = @transform_2, window_bounds = array<i64: 1, 64, 32>}]} {
    %c0_i32 = arith.constant 0 : i32
    %0 = arith.cmpi eq, %arg2, %c0_i32 : i32
    %1 = arith.extui %0 : i1 to i32
    %c0_i32_0 = arith.constant 0 : i32
    %2 = arith.cmpi ne, %1, %c0_i32_0 : i32
    scf.if %2 {
      %cst_15 = arith.constant 0.000000e+00 : f32
      %15 = vector.broadcast %cst_15 : f32 to vector<64x32xf32>
      %c0_16 = arith.constant 0 : index
      %c0_17 = arith.constant 0 : index
      %16 = vector.load %arg6[%c0_16, %c0_17] : memref<64x32xf32, #tpu.memory_space<vmem>>, vector<64x32xf32>
      tpu.vector_store %arg6[%c0_16, %c0_17], %15 {strides = array<i32>} : memref<64x32xf32, #tpu.memory_space<vmem>>, vector<64x32xf32>,
    } else {
    }
    %c0 = arith.constant 0 : index
    %c0_1 = arith.constant 0 : index
    %3 = vector.load %arg6[%c0, %c0_1] : memref<64x32xf32, #tpu.memory_space<vmem>>, vector<64x32xf32>
    %c0_2 = arith.constant 0 : index
    %c0_3 = arith.constant 0 : index
    %c0_4 = arith.constant 0 : index
    %4 = vector.load %arg3[%c0_2, %c0_3, %c0_4] : memref<1x64x32xbf16, #tpu.memory_space<vmem>>, vector<1x64x32xbf16>
    %5 = vector.shape_cast %4 : vector<1x64x32xbf16> to vector<64x32xbf16>
    %c0_5 = arith.constant 0 : index
    %c0_6 = arith.constant 0 : index
    %c0_7 = arith.constant 0 : index
    %6 = vector.load %arg4[%c0_5, %c0_6, %c0_7] : memref<1x32x32xbf16, #tpu.memory_space<vmem>>, vector<1x32x32xbf16>
    %7 = vector.shape_cast %6 : vector<1x32x32xbf16> to vector<32x32xbf16>
    %cst = arith.constant dense<0.000000e+00> : vector<64x32xf32>
    %8 = tpu.matmul %5, %7, %cst {dimension_numbers = #tpu.dot_dimension_numbers<[1], [0], [0], [1], [0, 0, 1, 1], [], []>} : vector<64x32xbf16>, vector<32x32xbf16>, vector<64x32xf32> -> vector<64x32xf32>
    %9 = arith.addf %3, %8 : vector<64x32xf32>
    %c0_8 = arith.constant 0 : index
    %c0_9 = arith.constant 0 : index
    %10 = vector.load %arg6[%c0_8, %c0_9] : memref<64x32xf32, #tpu.memory_space<vmem>>, vector<64x32xf32>
    tpu.vector_store %arg6[%c0_8, %c0_9], %9 {strides = array<i32>} : memref<64x32xf32, #tpu.memory_space<vmem>>, vector<64x32xf32>,
    %c0_10 = arith.constant 0 : index
    %c0_11 = arith.constant 0 : index
    %11 = vector.load %arg6[%c0_10, %c0_11] : memref<64x32xf32, #tpu.memory_space<vmem>>, vector<64x32xf32>
    %c0_12 = arith.constant 0 : index
    %c0_13 = arith.constant 0 : index
    %c0_14 = arith.constant 0 : index
    %12 = vector.load %arg5[%c0_12, %c0_13, %c0_14] : memref<1x64x32xf32, #tpu.memory_space<vmem>>, vector<1x64x32xf32>
    %13 = vector.shape_cast %12 : vector<1x64x32xf32> to vector<64x32xf32>
    %14 = vector.shape_cast %11 : vector<64x32xf32> to vector<1x64x32xf32>
    tpu.vector_store %arg5[%c0_12, %c0_13, %c0_14], %14 {strides = array<i32>} : memref<1x64x32xf32, #tpu.memory_space<vmem>>, vector<1x64x32xf32>,
    return
  }
  func.func @transform_0(%arg0: i32, %arg1: i32, %arg2: i32) -> (i32, i32, i32) {
    %c0_i32 = arith.constant 0 : i32
    return %arg0, %arg1, %arg2 : i32, i32, i32
  }
  func.func @transform_1(%arg0: i32, %arg1: i32, %arg2: i32) -> (i32, i32, i32) {
    %c0_i32 = arith.constant 0 : i32
    %c0_i32_0 = arith.constant 0 : i32
    return %arg0, %arg2, %c0_i32 : i32, i32, i32
  }
  func.func @transform_2(%arg0: i32, %arg1: i32, %arg2: i32) -> (i32, i32, i32) {
    %c0_i32 = arith.constant 0 : i32
    %c0_i32_0 = arith.constant 0 : i32
    return %arg0, %arg1, %c0_i32 : i32, i32, i32
  }
}

module attributes {stable_mosaic.version = 11 : i64} {
  func.func @_gc2_kernel(%arg0: i32, %arg1: i32, %arg2: memref<32x128xf32, #tpu.memory_space<vmem>>, %arg3: memref<32x128xf32, #tpu.memory_space<vmem>>, %arg4: memref<128x128xf32, #tpu.memory_space<vmem>>, %arg5: memref<128x128xf32, #tpu.memory_space<vmem>>, %arg6: memref<1x128xf32, #tpu.memory_space<vmem>>, %arg7: memref<32x128xf32, #tpu.memory_space<vmem>>, %arg8: memref<1x128xf32, #tpu.memory_space<vmem>>, %arg9: memref<1x128xf32, #tpu.memory_space<vmem>>, %arg10: memref<1x128xf32, #tpu.memory_space<vmem>>, %arg11: memref<1x128xf32, #tpu.memory_space<vmem>>) attributes {dimension_semantics = [#tpu.dimension_semantics<arbitrary>, #tpu.dimension_semantics<arbitrary>], iteration_bounds = array<i64: 2, 1>, scalar_prefetch = 0 : i64, scratch_operands = 4 : i64, tpu.core_type = #tpu.core_type<tc>, window_params = [{transform_indices = @transform_0, window_bounds = array<i64: 32, 128>}, {transform_indices = @transform_1, window_bounds = array<i64: 32, 128>}, {pipeline_mode = #tpu.pipeline_mode<synchronous>, transform_indices = @transform_2, window_bounds = array<i64: 128, 128>}, {pipeline_mode = #tpu.pipeline_mode<synchronous>, transform_indices = @transform_3, window_bounds = array<i64: 128, 128>}, {pipeline_mode = #tpu.pipeline_mode<synchronous>, transform_indices = @transform_4, window_bounds = array<i64: 1, 128>}, {transform_indices = @transform_5, window_bounds = array<i64: 32, 128>}]} {
    %c0_i32 = arith.constant 0 : i32
    %0 = arith.cmpi eq, %arg0, %c0_i32 : i32
    %c0_i32_0 = arith.constant 0 : i32
    %1 = arith.cmpi eq, %arg1, %c0_i32_0 : i32
    %2 = arith.andi %0, %1 : i1
    %3 = arith.extui %2 : i1 to i32
    %c0_i32_1 = arith.constant 0 : i32
    %4 = arith.cmpi ne, %3, %c0_i32_1 : i32
    scf.if %4 {
      %cst = arith.constant 0.000000e+00 : f32
      %11 = vector.broadcast %cst : f32 to vector<1x128xf32>
      %c0 = arith.constant 0 : index
      %c0_5 = arith.constant 0 : index
      %12 = vector.load %arg8[%c0, %c0_5] : memref<1x128xf32, #tpu.memory_space<vmem>>, vector<1x128xf32>
      tpu.vector_store %arg8[%c0, %c0_5], %11 {strides = array<i32>} : memref<1x128xf32, #tpu.memory_space<vmem>>, vector<1x128xf32>,
      %cst_6 = arith.constant 0.000000e+00 : f32
      %13 = vector.broadcast %cst_6 : f32 to vector<1x128xf32>
      %c0_7 = arith.constant 0 : index
      %c0_8 = arith.constant 0 : index
      %14 = vector.load %arg9[%c0_7, %c0_8] : memref<1x128xf32, #tpu.memory_space<vmem>>, vector<1x128xf32>
      tpu.vector_store %arg9[%c0_7, %c0_8], %13 {strides = array<i32>} : memref<1x128xf32, #tpu.memory_space<vmem>>, vector<1x128xf32>,
      %cst_9 = arith.constant 0.000000e+00 : f32
      %15 = vector.broadcast %cst_9 : f32 to vector<1x128xf32>
      %c0_10 = arith.constant 0 : index
      %c0_11 = arith.constant 0 : index
      %16 = vector.load %arg10[%c0_10, %c0_11] : memref<1x128xf32, #tpu.memory_space<vmem>>, vector<1x128xf32>
      tpu.vector_store %arg10[%c0_10, %c0_11], %15 {strides = array<i32>} : memref<1x128xf32, #tpu.memory_space<vmem>>, vector<1x128xf32>,
      %cst_12 = arith.constant 0.000000e+00 : f32
      %17 = vector.broadcast %cst_12 : f32 to vector<1x128xf32>
      %c0_13 = arith.constant 0 : index
      %c0_14 = arith.constant 0 : index
      %18 = vector.load %arg11[%c0_13, %c0_14] : memref<1x128xf32, #tpu.memory_space<vmem>>, vector<1x128xf32>
      tpu.vector_store %arg11[%c0_13, %c0_14], %17 {strides = array<i32>} : memref<1x128xf32, #tpu.memory_space<vmem>>, vector<1x128xf32>,
    } else {
    }
    %c0_i32_2 = arith.constant 0 : i32
    %5 = arith.cmpi eq, %arg0, %c0_i32_2 : i32
    %6 = arith.extui %5 : i1 to i32
    %c0_i32_3 = arith.constant 0 : i32
    %7 = arith.cmpi ne, %6, %c0_i32_3 : i32
    scf.if %7 {
      %c0 = arith.constant 0 : index
      %c0_5 = arith.constant 0 : index
      %11 = vector.load %arg2[%c0, %c0_5] : memref<32x128xf32, #tpu.memory_space<vmem>>, vector<32x128xf32>
      %c0_6 = arith.constant 0 : index
      %c0_7 = arith.constant 0 : index
      %12 = vector.load %arg3[%c0_6, %c0_7] : memref<32x128xf32, #tpu.memory_space<vmem>>, vector<32x128xf32>
      %c0_8 = arith.constant 0 : index
      %c0_9 = arith.constant 0 : index
      %13 = vector.load %arg8[%c0_8, %c0_9] : memref<1x128xf32, #tpu.memory_space<vmem>>, vector<1x128xf32>
      %cst = arith.constant dense<0.000000e+00> : vector<128xf32>
      %14 = vector.multi_reduction <add>, %11, %cst [0] : vector<32x128xf32> to vector<128xf32>
      %15 = vector.shape_cast %14 : vector<128xf32> to vector<1x128xf32>
      %16 = arith.addf %13, %15 : vector<1x128xf32>
      %c0_10 = arith.constant 0 : index
      %c0_11 = arith.constant 0 : index
      %17 = vector.load %arg8[%c0_10, %c0_11] : memref<1x128xf32, #tpu.memory_space<vmem>>, vector<1x128xf32>
      tpu.vector_store %arg8[%c0_10, %c0_11], %16 {strides = array<i32>} : memref<1x128xf32, #tpu.memory_space<vmem>>, vector<1x128xf32>,
      %c0_12 = arith.constant 0 : index
      %c0_13 = arith.constant 0 : index
      %18 = vector.load %arg9[%c0_12, %c0_13] : memref<1x128xf32, #tpu.memory_space<vmem>>, vector<1x128xf32>
      %19 = arith.mulf %11, %11 : vector<32x128xf32>
      %cst_14 = arith.constant dense<0.000000e+00> : vector<128xf32>
      %20 = vector.multi_reduction <add>, %19, %cst_14 [0] : vector<32x128xf32> to vector<128xf32>
      %21 = vector.shape_cast %20 : vector<128xf32> to vector<1x128xf32>
      %22 = arith.addf %18, %21 : vector<1x128xf32>
      %c0_15 = arith.constant 0 : index
      %c0_16 = arith.constant 0 : index
      %23 = vector.load %arg9[%c0_15, %c0_16] : memref<1x128xf32, #tpu.memory_space<vmem>>, vector<1x128xf32>
      tpu.vector_store %arg9[%c0_15, %c0_16], %22 {strides = array<i32>} : memref<1x128xf32, #tpu.memory_space<vmem>>, vector<1x128xf32>,
      %c0_17 = arith.constant 0 : index
      %c0_18 = arith.constant 0 : index
      %24 = vector.load %arg10[%c0_17, %c0_18] : memref<1x128xf32, #tpu.memory_space<vmem>>, vector<1x128xf32>
      %cst_19 = arith.constant dense<0.000000e+00> : vector<128xf32>
      %25 = vector.multi_reduction <add>, %12, %cst_19 [0] : vector<32x128xf32> to vector<128xf32>
      %26 = vector.shape_cast %25 : vector<128xf32> to vector<1x128xf32>
      %27 = arith.addf %24, %26 : vector<1x128xf32>
      %c0_20 = arith.constant 0 : index
      %c0_21 = arith.constant 0 : index
      %28 = vector.load %arg10[%c0_20, %c0_21] : memref<1x128xf32, #tpu.memory_space<vmem>>, vector<1x128xf32>
      tpu.vector_store %arg10[%c0_20, %c0_21], %27 {strides = array<i32>} : memref<1x128xf32, #tpu.memory_space<vmem>>, vector<1x128xf32>,
      %c0_22 = arith.constant 0 : index
      %c0_23 = arith.constant 0 : index
      %29 = vector.load %arg11[%c0_22, %c0_23] : memref<1x128xf32, #tpu.memory_space<vmem>>, vector<1x128xf32>
      %30 = arith.mulf %12, %12 : vector<32x128xf32>
      %cst_24 = arith.constant dense<0.000000e+00> : vector<128xf32>
      %31 = vector.multi_reduction <add>, %30, %cst_24 [0] : vector<32x128xf32> to vector<128xf32>
      %32 = vector.shape_cast %31 : vector<128xf32> to vector<1x128xf32>
      %33 = arith.addf %29, %32 : vector<1x128xf32>
      %c0_25 = arith.constant 0 : index
      %c0_26 = arith.constant 0 : index
      %34 = vector.load %arg11[%c0_25, %c0_26] : memref<1x128xf32, #tpu.memory_space<vmem>>, vector<1x128xf32>
      tpu.vector_store %arg11[%c0_25, %c0_26], %33 {strides = array<i32>} : memref<1x128xf32, #tpu.memory_space<vmem>>, vector<1x128xf32>,
      %cst_27 = arith.constant 0.000000e+00 : f32
      %35 = vector.broadcast %cst_27 : f32 to vector<32x128xf32>
      %c0_28 = arith.constant 0 : index
      %c0_29 = arith.constant 0 : index
      %36 = vector.load %arg7[%c0_28, %c0_29] : memref<32x128xf32, #tpu.memory_space<vmem>>, vector<32x128xf32>
      tpu.vector_store %arg7[%c0_28, %c0_29], %35 {strides = array<i32>} : memref<32x128xf32, #tpu.memory_space<vmem>>, vector<32x128xf32>,
    } else {
    }
    %c1_i32 = arith.constant 1 : i32
    %8 = arith.cmpi eq, %arg0, %c1_i32 : i32
    %9 = arith.extui %8 : i1 to i32
    %c0_i32_4 = arith.constant 0 : i32
    %10 = arith.cmpi ne, %9, %c0_i32_4 : i32
    scf.if %10 {
      %c0 = arith.constant 0 : index
      %c0_5 = arith.constant 0 : index
      %11 = vector.load %arg8[%c0, %c0_5] : memref<1x128xf32, #tpu.memory_space<vmem>>, vector<1x128xf32>
      %cst = arith.constant 3.125000e-02 : f32
      %12 = vector.broadcast %cst : f32 to vector<1x128xf32>
      %13 = arith.mulf %11, %12 : vector<1x128xf32>
      %c0_6 = arith.constant 0 : index
      %c0_7 = arith.constant 0 : index
      %14 = vector.load %arg9[%c0_6, %c0_7] : memref<1x128xf32, #tpu.memory_space<vmem>>, vector<1x128xf32>
      %cst_8 = arith.constant 3.125000e-02 : f32
      %15 = vector.broadcast %cst_8 : f32 to vector<1x128xf32>
      %16 = arith.mulf %14, %15 : vector<1x128xf32>
      %17 = arith.mulf %13, %13 : vector<1x128xf32>
      %18 = arith.subf %16, %17 : vector<1x128xf32>
      %cst_9 = arith.constant 0.000000e+00 : f32
      %19 = vector.broadcast %cst_9 : f32 to vector<1x128xf32>
      %20 = arith.maximumf %18, %19 : vector<1x128xf32>
      %cst_10 = arith.constant 9.99999974E-6 : f32
      %21 = vector.broadcast %cst_10 : f32 to vector<1x128xf32>
      %22 = arith.addf %20, %21 : vector<1x128xf32>
      %23 = math.rsqrt %22 : vector<1x128xf32>
      %c0_11 = arith.constant 0 : index
      %c0_12 = arith.constant 0 : index
      %24 = vector.load %arg10[%c0_11, %c0_12] : memref<1x128xf32, #tpu.memory_space<vmem>>, vector<1x128xf32>
      %cst_13 = arith.constant 3.125000e-02 : f32
      %25 = vector.broadcast %cst_13 : f32 to vector<1x128xf32>
      %26 = arith.mulf %24, %25 : vector<1x128xf32>
      %c0_14 = arith.constant 0 : index
      %c0_15 = arith.constant 0 : index
      %27 = vector.load %arg11[%c0_14, %c0_15] : memref<1x128xf32, #tpu.memory_space<vmem>>, vector<1x128xf32>
      %cst_16 = arith.constant 3.125000e-02 : f32
      %28 = vector.broadcast %cst_16 : f32 to vector<1x128xf32>
      %29 = arith.mulf %27, %28 : vector<1x128xf32>
      %30 = arith.mulf %26, %26 : vector<1x128xf32>
      %31 = arith.subf %29, %30 : vector<1x128xf32>
      %cst_17 = arith.constant 0.000000e+00 : f32
      %32 = vector.broadcast %cst_17 : f32 to vector<1x128xf32>
      %33 = arith.maximumf %31, %32 : vector<1x128xf32>
      %cst_18 = arith.constant 9.99999974E-6 : f32
      %34 = vector.broadcast %cst_18 : f32 to vector<1x128xf32>
      %35 = arith.addf %33, %34 : vector<1x128xf32>
      %36 = math.rsqrt %35 : vector<1x128xf32>
      %c0_19 = arith.constant 0 : index
      %c0_20 = arith.constant 0 : index
      %37 = vector.load %arg2[%c0_19, %c0_20] : memref<32x128xf32, #tpu.memory_space<vmem>>, vector<32x128xf32>
      %38 = vector.broadcast %13 : vector<1x128xf32> to vector<32x128xf32>
      %39 = arith.subf %37, %38 : vector<32x128xf32>
      %40 = vector.broadcast %23 : vector<1x128xf32> to vector<32x128xf32>
      %41 = arith.mulf %39, %40 : vector<32x128xf32>
      %c0_21 = arith.constant 0 : index
      %c0_22 = arith.constant 0 : index
      %42 = vector.load %arg3[%c0_21, %c0_22] : memref<32x128xf32, #tpu.memory_space<vmem>>, vector<32x128xf32>
      %43 = vector.broadcast %26 : vector<1x128xf32> to vector<32x128xf32>
      %44 = arith.subf %42, %43 : vector<32x128xf32>
      %45 = vector.broadcast %36 : vector<1x128xf32> to vector<32x128xf32>
      %46 = arith.mulf %44, %45 : vector<32x128xf32>
      %c0_23 = arith.constant 0 : index
      %c0_24 = arith.constant 0 : index
      %47 = vector.load %arg4[%c0_23, %c0_24] : memref<128x128xf32, #tpu.memory_space<vmem>>, vector<128x128xf32>
      %cst_25 = arith.constant dense<0.000000e+00> : vector<32x128xf32>
      %48 = tpu.matmul %41, %47, %cst_25 {dimension_numbers = #tpu.dot_dimension_numbers<[1], [0], [0], [1], [0, 0, 1, 1], [], []>} : vector<32x128xf32>, vector<128x128xf32>, vector<32x128xf32> -> vector<32x128xf32>
      %c0_26 = arith.constant 0 : index
      %c0_27 = arith.constant 0 : index
      %49 = vector.load %arg5[%c0_26, %c0_27] : memref<128x128xf32, #tpu.memory_space<vmem>>, vector<128x128xf32>
      %cst_28 = arith.constant dense<0.000000e+00> : vector<32x128xf32>
      %50 = tpu.matmul %46, %49, %cst_28 {dimension_numbers = #tpu.dot_dimension_numbers<[1], [0], [0], [1], [0, 0, 1, 1], [], []>} : vector<32x128xf32>, vector<128x128xf32>, vector<32x128xf32> -> vector<32x128xf32>
      %51 = arith.addf %48, %50 : vector<32x128xf32>
      %c0_29 = arith.constant 0 : index
      %c0_30 = arith.constant 0 : index
      %52 = vector.load %arg6[%c0_29, %c0_30] : memref<1x128xf32, #tpu.memory_space<vmem>>, vector<1x128xf32>
      %53 = vector.broadcast %52 : vector<1x128xf32> to vector<32x128xf32>
      %54 = arith.addf %51, %53 : vector<32x128xf32>
      %c0_31 = arith.constant 0 : index
      %c0_32 = arith.constant 0 : index
      %55 = vector.load %arg7[%c0_31, %c0_32] : memref<32x128xf32, #tpu.memory_space<vmem>>, vector<32x128xf32>
      tpu.vector_store %arg7[%c0_31, %c0_32], %54 {strides = array<i32>} : memref<32x128xf32, #tpu.memory_space<vmem>>, vector<32x128xf32>,
    } else {
    }
    return
  }
  func.func @transform_0(%arg0: i32, %arg1: i32) -> (i32, i32) {
    %c0_i32 = arith.constant 0 : i32
    %c0_i32_0 = arith.constant 0 : i32
    return %arg1, %c0_i32 : i32, i32
  }
  func.func @transform_1(%arg0: i32, %arg1: i32) -> (i32, i32) {
    %c0_i32 = arith.constant 0 : i32
    %c0_i32_0 = arith.constant 0 : i32
    return %arg1, %c0_i32 : i32, i32
  }
  func.func @transform_2(%arg0: i32, %arg1: i32) -> (i32, i32) {
    %c0_i32 = arith.constant 0 : i32
    %c0_i32_0 = arith.constant 0 : i32
    %c0_i32_1 = arith.constant 0 : i32
    return %c0_i32, %c0_i32_0 : i32, i32
  }
  func.func @transform_3(%arg0: i32, %arg1: i32) -> (i32, i32) {
    %c0_i32 = arith.constant 0 : i32
    %c0_i32_0 = arith.constant 0 : i32
    %c0_i32_1 = arith.constant 0 : i32
    return %c0_i32, %c0_i32_0 : i32, i32
  }
  func.func @transform_4(%arg0: i32, %arg1: i32) -> (i32, i32) {
    %c0_i32 = arith.constant 0 : i32
    %c0_i32_0 = arith.constant 0 : i32
    %c0_i32_1 = arith.constant 0 : i32
    return %c0_i32, %c0_i32_0 : i32, i32
  }
  func.func @transform_5(%arg0: i32, %arg1: i32) -> (i32, i32) {
    %c0_i32 = arith.constant 0 : i32
    %c0_i32_0 = arith.constant 0 : i32
    return %arg1, %c0_i32 : i32, i32
  }
}

module attributes {stable_mosaic.version = 11 : i64} {
  func.func @_gc2_kernel(%arg0: i32, %arg1: i32, %arg2: memref<16x128xf32, #tpu.memory_space<vmem>>, %arg3: memref<16x128xf32, #tpu.memory_space<vmem>>, %arg4: memref<128x128xf32, #tpu.memory_space<vmem>>, %arg5: memref<128x128xf32, #tpu.memory_space<vmem>>, %arg6: memref<1x128xf32, #tpu.memory_space<vmem>>, %arg7: memref<16x128xf32, #tpu.memory_space<vmem>>, %arg8: memref<1x128xf32, #tpu.memory_space<vmem>>, %arg9: memref<1x128xf32, #tpu.memory_space<vmem>>, %arg10: memref<1x128xf32, #tpu.memory_space<vmem>>, %arg11: memref<1x128xf32, #tpu.memory_space<vmem>>) attributes {dimension_semantics = [#tpu.dimension_semantics<arbitrary>, #tpu.dimension_semantics<arbitrary>], iteration_bounds = array<i64: 2, 1>, scalar_prefetch = 0 : i64, scratch_operands = 4 : i64, tpu.core_type = #tpu.core_type<tc>, window_params = [{transform_indices = @transform_0, window_bounds = array<i64: 16, 128>}, {transform_indices = @transform_1, window_bounds = array<i64: 16, 128>}, {pipeline_mode = #tpu.pipeline_mode<synchronous>, transform_indices = @transform_2, window_bounds = array<i64: 128, 128>}, {pipeline_mode = #tpu.pipeline_mode<synchronous>, transform_indices = @transform_3, window_bounds = array<i64: 128, 128>}, {pipeline_mode = #tpu.pipeline_mode<synchronous>, transform_indices = @transform_4, window_bounds = array<i64: 1, 128>}, {transform_indices = @transform_5, window_bounds = array<i64: 16, 128>}]} {
    %c0_i32 = arith.constant 0 : i32
    %0 = arith.cmpi eq, %arg0, %c0_i32 : i32
    %c0_i32_0 = arith.constant 0 : i32
    %1 = arith.cmpi eq, %arg1, %c0_i32_0 : i32
    %2 = arith.andi %0, %1 : i1
    %3 = arith.extui %2 : i1 to i32
    %c0_i32_1 = arith.constant 0 : i32
    %4 = arith.cmpi ne, %3, %c0_i32_1 : i32
    scf.if %4 {
      %cst = arith.constant 0.000000e+00 : f32
      %11 = vector.broadcast %cst : f32 to vector<1x128xf32>
      %c0 = arith.constant 0 : index
      %c0_5 = arith.constant 0 : index
      %12 = vector.load %arg8[%c0, %c0_5] : memref<1x128xf32, #tpu.memory_space<vmem>>, vector<1x128xf32>
      tpu.vector_store %arg8[%c0, %c0_5], %11 {strides = array<i32>} : memref<1x128xf32, #tpu.memory_space<vmem>>, vector<1x128xf32>,
      %cst_6 = arith.constant 0.000000e+00 : f32
      %13 = vector.broadcast %cst_6 : f32 to vector<1x128xf32>
      %c0_7 = arith.constant 0 : index
      %c0_8 = arith.constant 0 : index
      %14 = vector.load %arg9[%c0_7, %c0_8] : memref<1x128xf32, #tpu.memory_space<vmem>>, vector<1x128xf32>
      tpu.vector_store %arg9[%c0_7, %c0_8], %13 {strides = array<i32>} : memref<1x128xf32, #tpu.memory_space<vmem>>, vector<1x128xf32>,
      %cst_9 = arith.constant 0.000000e+00 : f32
      %15 = vector.broadcast %cst_9 : f32 to vector<1x128xf32>
      %c0_10 = arith.constant 0 : index
      %c0_11 = arith.constant 0 : index
      %16 = vector.load %arg10[%c0_10, %c0_11] : memref<1x128xf32, #tpu.memory_space<vmem>>, vector<1x128xf32>
      tpu.vector_store %arg10[%c0_10, %c0_11], %15 {strides = array<i32>} : memref<1x128xf32, #tpu.memory_space<vmem>>, vector<1x128xf32>,
      %cst_12 = arith.constant 0.000000e+00 : f32
      %17 = vector.broadcast %cst_12 : f32 to vector<1x128xf32>
      %c0_13 = arith.constant 0 : index
      %c0_14 = arith.constant 0 : index
      %18 = vector.load %arg11[%c0_13, %c0_14] : memref<1x128xf32, #tpu.memory_space<vmem>>, vector<1x128xf32>
      tpu.vector_store %arg11[%c0_13, %c0_14], %17 {strides = array<i32>} : memref<1x128xf32, #tpu.memory_space<vmem>>, vector<1x128xf32>,
    } else {
    }
    %c0_i32_2 = arith.constant 0 : i32
    %5 = arith.cmpi eq, %arg0, %c0_i32_2 : i32
    %6 = arith.extui %5 : i1 to i32
    %c0_i32_3 = arith.constant 0 : i32
    %7 = arith.cmpi ne, %6, %c0_i32_3 : i32
    scf.if %7 {
      %c0 = arith.constant 0 : index
      %c0_5 = arith.constant 0 : index
      %11 = vector.load %arg2[%c0, %c0_5] : memref<16x128xf32, #tpu.memory_space<vmem>>, vector<16x128xf32>
      %c0_6 = arith.constant 0 : index
      %c0_7 = arith.constant 0 : index
      %12 = vector.load %arg3[%c0_6, %c0_7] : memref<16x128xf32, #tpu.memory_space<vmem>>, vector<16x128xf32>
      %c0_8 = arith.constant 0 : index
      %c0_9 = arith.constant 0 : index
      %13 = vector.load %arg8[%c0_8, %c0_9] : memref<1x128xf32, #tpu.memory_space<vmem>>, vector<1x128xf32>
      %cst = arith.constant dense<0.000000e+00> : vector<128xf32>
      %14 = vector.multi_reduction <add>, %11, %cst [0] : vector<16x128xf32> to vector<128xf32>
      %15 = vector.shape_cast %14 : vector<128xf32> to vector<1x128xf32>
      %16 = arith.addf %13, %15 : vector<1x128xf32>
      %c0_10 = arith.constant 0 : index
      %c0_11 = arith.constant 0 : index
      %17 = vector.load %arg8[%c0_10, %c0_11] : memref<1x128xf32, #tpu.memory_space<vmem>>, vector<1x128xf32>
      tpu.vector_store %arg8[%c0_10, %c0_11], %16 {strides = array<i32>} : memref<1x128xf32, #tpu.memory_space<vmem>>, vector<1x128xf32>,
      %c0_12 = arith.constant 0 : index
      %c0_13 = arith.constant 0 : index
      %18 = vector.load %arg9[%c0_12, %c0_13] : memref<1x128xf32, #tpu.memory_space<vmem>>, vector<1x128xf32>
      %19 = arith.mulf %11, %11 : vector<16x128xf32>
      %cst_14 = arith.constant dense<0.000000e+00> : vector<128xf32>
      %20 = vector.multi_reduction <add>, %19, %cst_14 [0] : vector<16x128xf32> to vector<128xf32>
      %21 = vector.shape_cast %20 : vector<128xf32> to vector<1x128xf32>
      %22 = arith.addf %18, %21 : vector<1x128xf32>
      %c0_15 = arith.constant 0 : index
      %c0_16 = arith.constant 0 : index
      %23 = vector.load %arg9[%c0_15, %c0_16] : memref<1x128xf32, #tpu.memory_space<vmem>>, vector<1x128xf32>
      tpu.vector_store %arg9[%c0_15, %c0_16], %22 {strides = array<i32>} : memref<1x128xf32, #tpu.memory_space<vmem>>, vector<1x128xf32>,
      %c0_17 = arith.constant 0 : index
      %c0_18 = arith.constant 0 : index
      %24 = vector.load %arg10[%c0_17, %c0_18] : memref<1x128xf32, #tpu.memory_space<vmem>>, vector<1x128xf32>
      %cst_19 = arith.constant dense<0.000000e+00> : vector<128xf32>
      %25 = vector.multi_reduction <add>, %12, %cst_19 [0] : vector<16x128xf32> to vector<128xf32>
      %26 = vector.shape_cast %25 : vector<128xf32> to vector<1x128xf32>
      %27 = arith.addf %24, %26 : vector<1x128xf32>
      %c0_20 = arith.constant 0 : index
      %c0_21 = arith.constant 0 : index
      %28 = vector.load %arg10[%c0_20, %c0_21] : memref<1x128xf32, #tpu.memory_space<vmem>>, vector<1x128xf32>
      tpu.vector_store %arg10[%c0_20, %c0_21], %27 {strides = array<i32>} : memref<1x128xf32, #tpu.memory_space<vmem>>, vector<1x128xf32>,
      %c0_22 = arith.constant 0 : index
      %c0_23 = arith.constant 0 : index
      %29 = vector.load %arg11[%c0_22, %c0_23] : memref<1x128xf32, #tpu.memory_space<vmem>>, vector<1x128xf32>
      %30 = arith.mulf %12, %12 : vector<16x128xf32>
      %cst_24 = arith.constant dense<0.000000e+00> : vector<128xf32>
      %31 = vector.multi_reduction <add>, %30, %cst_24 [0] : vector<16x128xf32> to vector<128xf32>
      %32 = vector.shape_cast %31 : vector<128xf32> to vector<1x128xf32>
      %33 = arith.addf %29, %32 : vector<1x128xf32>
      %c0_25 = arith.constant 0 : index
      %c0_26 = arith.constant 0 : index
      %34 = vector.load %arg11[%c0_25, %c0_26] : memref<1x128xf32, #tpu.memory_space<vmem>>, vector<1x128xf32>
      tpu.vector_store %arg11[%c0_25, %c0_26], %33 {strides = array<i32>} : memref<1x128xf32, #tpu.memory_space<vmem>>, vector<1x128xf32>,
      %cst_27 = arith.constant 0.000000e+00 : f32
      %35 = vector.broadcast %cst_27 : f32 to vector<16x128xf32>
      %c0_28 = arith.constant 0 : index
      %c0_29 = arith.constant 0 : index
      %36 = vector.load %arg7[%c0_28, %c0_29] : memref<16x128xf32, #tpu.memory_space<vmem>>, vector<16x128xf32>
      tpu.vector_store %arg7[%c0_28, %c0_29], %35 {strides = array<i32>} : memref<16x128xf32, #tpu.memory_space<vmem>>, vector<16x128xf32>,
    } else {
    }
    %c1_i32 = arith.constant 1 : i32
    %8 = arith.cmpi eq, %arg0, %c1_i32 : i32
    %9 = arith.extui %8 : i1 to i32
    %c0_i32_4 = arith.constant 0 : i32
    %10 = arith.cmpi ne, %9, %c0_i32_4 : i32
    scf.if %10 {
      %c0 = arith.constant 0 : index
      %c0_5 = arith.constant 0 : index
      %11 = vector.load %arg8[%c0, %c0_5] : memref<1x128xf32, #tpu.memory_space<vmem>>, vector<1x128xf32>
      %cst = arith.constant 6.250000e-02 : f32
      %12 = vector.broadcast %cst : f32 to vector<1x128xf32>
      %13 = arith.mulf %11, %12 : vector<1x128xf32>
      %c0_6 = arith.constant 0 : index
      %c0_7 = arith.constant 0 : index
      %14 = vector.load %arg9[%c0_6, %c0_7] : memref<1x128xf32, #tpu.memory_space<vmem>>, vector<1x128xf32>
      %cst_8 = arith.constant 6.250000e-02 : f32
      %15 = vector.broadcast %cst_8 : f32 to vector<1x128xf32>
      %16 = arith.mulf %14, %15 : vector<1x128xf32>
      %17 = arith.mulf %13, %13 : vector<1x128xf32>
      %18 = arith.subf %16, %17 : vector<1x128xf32>
      %cst_9 = arith.constant 0.000000e+00 : f32
      %19 = vector.broadcast %cst_9 : f32 to vector<1x128xf32>
      %20 = arith.maximumf %18, %19 : vector<1x128xf32>
      %cst_10 = arith.constant 9.99999974E-6 : f32
      %21 = vector.broadcast %cst_10 : f32 to vector<1x128xf32>
      %22 = arith.addf %20, %21 : vector<1x128xf32>
      %23 = math.rsqrt %22 : vector<1x128xf32>
      %c0_11 = arith.constant 0 : index
      %c0_12 = arith.constant 0 : index
      %24 = vector.load %arg10[%c0_11, %c0_12] : memref<1x128xf32, #tpu.memory_space<vmem>>, vector<1x128xf32>
      %cst_13 = arith.constant 6.250000e-02 : f32
      %25 = vector.broadcast %cst_13 : f32 to vector<1x128xf32>
      %26 = arith.mulf %24, %25 : vector<1x128xf32>
      %c0_14 = arith.constant 0 : index
      %c0_15 = arith.constant 0 : index
      %27 = vector.load %arg11[%c0_14, %c0_15] : memref<1x128xf32, #tpu.memory_space<vmem>>, vector<1x128xf32>
      %cst_16 = arith.constant 6.250000e-02 : f32
      %28 = vector.broadcast %cst_16 : f32 to vector<1x128xf32>
      %29 = arith.mulf %27, %28 : vector<1x128xf32>
      %30 = arith.mulf %26, %26 : vector<1x128xf32>
      %31 = arith.subf %29, %30 : vector<1x128xf32>
      %cst_17 = arith.constant 0.000000e+00 : f32
      %32 = vector.broadcast %cst_17 : f32 to vector<1x128xf32>
      %33 = arith.maximumf %31, %32 : vector<1x128xf32>
      %cst_18 = arith.constant 9.99999974E-6 : f32
      %34 = vector.broadcast %cst_18 : f32 to vector<1x128xf32>
      %35 = arith.addf %33, %34 : vector<1x128xf32>
      %36 = math.rsqrt %35 : vector<1x128xf32>
      %c0_19 = arith.constant 0 : index
      %c0_20 = arith.constant 0 : index
      %37 = vector.load %arg2[%c0_19, %c0_20] : memref<16x128xf32, #tpu.memory_space<vmem>>, vector<16x128xf32>
      %38 = vector.broadcast %13 : vector<1x128xf32> to vector<16x128xf32>
      %39 = arith.subf %37, %38 : vector<16x128xf32>
      %40 = vector.broadcast %23 : vector<1x128xf32> to vector<16x128xf32>
      %41 = arith.mulf %39, %40 : vector<16x128xf32>
      %c0_21 = arith.constant 0 : index
      %c0_22 = arith.constant 0 : index
      %42 = vector.load %arg3[%c0_21, %c0_22] : memref<16x128xf32, #tpu.memory_space<vmem>>, vector<16x128xf32>
      %43 = vector.broadcast %26 : vector<1x128xf32> to vector<16x128xf32>
      %44 = arith.subf %42, %43 : vector<16x128xf32>
      %45 = vector.broadcast %36 : vector<1x128xf32> to vector<16x128xf32>
      %46 = arith.mulf %44, %45 : vector<16x128xf32>
      %c0_23 = arith.constant 0 : index
      %c0_24 = arith.constant 0 : index
      %47 = vector.load %arg4[%c0_23, %c0_24] : memref<128x128xf32, #tpu.memory_space<vmem>>, vector<128x128xf32>
      %cst_25 = arith.constant dense<0.000000e+00> : vector<16x128xf32>
      %48 = tpu.matmul %41, %47, %cst_25 {dimension_numbers = #tpu.dot_dimension_numbers<[1], [0], [0], [1], [0, 0, 1, 1], [], []>} : vector<16x128xf32>, vector<128x128xf32>, vector<16x128xf32> -> vector<16x128xf32>
      %c0_26 = arith.constant 0 : index
      %c0_27 = arith.constant 0 : index
      %49 = vector.load %arg5[%c0_26, %c0_27] : memref<128x128xf32, #tpu.memory_space<vmem>>, vector<128x128xf32>
      %cst_28 = arith.constant dense<0.000000e+00> : vector<16x128xf32>
      %50 = tpu.matmul %46, %49, %cst_28 {dimension_numbers = #tpu.dot_dimension_numbers<[1], [0], [0], [1], [0, 0, 1, 1], [], []>} : vector<16x128xf32>, vector<128x128xf32>, vector<16x128xf32> -> vector<16x128xf32>
      %51 = arith.addf %48, %50 : vector<16x128xf32>
      %c0_29 = arith.constant 0 : index
      %c0_30 = arith.constant 0 : index
      %52 = vector.load %arg6[%c0_29, %c0_30] : memref<1x128xf32, #tpu.memory_space<vmem>>, vector<1x128xf32>
      %53 = vector.broadcast %52 : vector<1x128xf32> to vector<16x128xf32>
      %54 = arith.addf %51, %53 : vector<16x128xf32>
      %c0_31 = arith.constant 0 : index
      %c0_32 = arith.constant 0 : index
      %55 = vector.load %arg7[%c0_31, %c0_32] : memref<16x128xf32, #tpu.memory_space<vmem>>, vector<16x128xf32>
      tpu.vector_store %arg7[%c0_31, %c0_32], %54 {strides = array<i32>} : memref<16x128xf32, #tpu.memory_space<vmem>>, vector<16x128xf32>,
    } else {
    }
    return
  }
  func.func @transform_0(%arg0: i32, %arg1: i32) -> (i32, i32) {
    %c0_i32 = arith.constant 0 : i32
    %c0_i32_0 = arith.constant 0 : i32
    return %arg1, %c0_i32 : i32, i32
  }
  func.func @transform_1(%arg0: i32, %arg1: i32) -> (i32, i32) {
    %c0_i32 = arith.constant 0 : i32
    %c0_i32_0 = arith.constant 0 : i32
    return %arg1, %c0_i32 : i32, i32
  }
  func.func @transform_2(%arg0: i32, %arg1: i32) -> (i32, i32) {
    %c0_i32 = arith.constant 0 : i32
    %c0_i32_0 = arith.constant 0 : i32
    %c0_i32_1 = arith.constant 0 : i32
    return %c0_i32, %c0_i32_0 : i32, i32
  }
  func.func @transform_3(%arg0: i32, %arg1: i32) -> (i32, i32) {
    %c0_i32 = arith.constant 0 : i32
    %c0_i32_0 = arith.constant 0 : i32
    %c0_i32_1 = arith.constant 0 : i32
    return %c0_i32, %c0_i32_0 : i32, i32
  }
  func.func @transform_4(%arg0: i32, %arg1: i32) -> (i32, i32) {
    %c0_i32 = arith.constant 0 : i32
    %c0_i32_0 = arith.constant 0 : i32
    %c0_i32_1 = arith.constant 0 : i32
    return %c0_i32, %c0_i32_0 : i32, i32
  }
  func.func @transform_5(%arg0: i32, %arg1: i32) -> (i32, i32) {
    %c0_i32 = arith.constant 0 : i32
    %c0_i32_0 = arith.constant 0 : i32
    return %arg1, %c0_i32 : i32, i32
  }
}

module attributes {stable_mosaic.version = 11 : i64} {
  func.func @_dirac_kernel(%arg0: i32, %arg1: i32, %arg2: i32, %arg3: memref<1x32x64xbf16, #tpu.memory_space<vmem>>, %arg4: memref<1x64x32xbf16, #tpu.memory_space<vmem>>, %arg5: memref<1x32x32xf32, #tpu.memory_space<vmem>>, %arg6: memref<32x32xf32, #tpu.memory_space<vmem>>) attributes {dimension_semantics = [#tpu.dimension_semantics<parallel>, #tpu.dimension_semantics<parallel>, #tpu.dimension_semantics<arbitrary>], iteration_bounds = array<i64: 2, 1, 1>, scalar_prefetch = 0 : i64, scratch_operands = 1 : i64, tpu.core_type = #tpu.core_type<tc>, window_params = [{transform_indices = @transform_0, window_bounds = array<i64: 1, 32, 64>}, {transform_indices = @transform_1, window_bounds = array<i64: 1, 64, 32>}, {transform_indices = @transform_2, window_bounds = array<i64: 1, 32, 32>}]} {
    %c0_i32 = arith.constant 0 : i32
    %0 = arith.cmpi eq, %arg2, %c0_i32 : i32
    %1 = arith.extui %0 : i1 to i32
    %c0_i32_0 = arith.constant 0 : i32
    %2 = arith.cmpi ne, %1, %c0_i32_0 : i32
    scf.if %2 {
      %cst_15 = arith.constant 0.000000e+00 : f32
      %15 = vector.broadcast %cst_15 : f32 to vector<32x32xf32>
      %c0_16 = arith.constant 0 : index
      %c0_17 = arith.constant 0 : index
      %16 = vector.load %arg6[%c0_16, %c0_17] : memref<32x32xf32, #tpu.memory_space<vmem>>, vector<32x32xf32>
      tpu.vector_store %arg6[%c0_16, %c0_17], %15 {strides = array<i32>} : memref<32x32xf32, #tpu.memory_space<vmem>>, vector<32x32xf32>,
    } else {
    }
    %c0 = arith.constant 0 : index
    %c0_1 = arith.constant 0 : index
    %3 = vector.load %arg6[%c0, %c0_1] : memref<32x32xf32, #tpu.memory_space<vmem>>, vector<32x32xf32>
    %c0_2 = arith.constant 0 : index
    %c0_3 = arith.constant 0 : index
    %c0_4 = arith.constant 0 : index
    %4 = vector.load %arg3[%c0_2, %c0_3, %c0_4] : memref<1x32x64xbf16, #tpu.memory_space<vmem>>, vector<1x32x64xbf16>
    %5 = vector.shape_cast %4 : vector<1x32x64xbf16> to vector<32x64xbf16>
    %c0_5 = arith.constant 0 : index
    %c0_6 = arith.constant 0 : index
    %c0_7 = arith.constant 0 : index
    %6 = vector.load %arg4[%c0_5, %c0_6, %c0_7] : memref<1x64x32xbf16, #tpu.memory_space<vmem>>, vector<1x64x32xbf16>
    %7 = vector.shape_cast %6 : vector<1x64x32xbf16> to vector<64x32xbf16>
    %cst = arith.constant dense<0.000000e+00> : vector<32x32xf32>
    %8 = tpu.matmul %5, %7, %cst {dimension_numbers = #tpu.dot_dimension_numbers<[1], [0], [0], [1], [0, 0, 1, 1], [], []>} : vector<32x64xbf16>, vector<64x32xbf16>, vector<32x32xf32> -> vector<32x32xf32>
    %9 = arith.addf %3, %8 : vector<32x32xf32>
    %c0_8 = arith.constant 0 : index
    %c0_9 = arith.constant 0 : index
    %10 = vector.load %arg6[%c0_8, %c0_9] : memref<32x32xf32, #tpu.memory_space<vmem>>, vector<32x32xf32>
    tpu.vector_store %arg6[%c0_8, %c0_9], %9 {strides = array<i32>} : memref<32x32xf32, #tpu.memory_space<vmem>>, vector<32x32xf32>,
    %c0_10 = arith.constant 0 : index
    %c0_11 = arith.constant 0 : index
    %11 = vector.load %arg6[%c0_10, %c0_11] : memref<32x32xf32, #tpu.memory_space<vmem>>, vector<32x32xf32>
    %c0_12 = arith.constant 0 : index
    %c0_13 = arith.constant 0 : index
    %c0_14 = arith.constant 0 : index
    %12 = vector.load %arg5[%c0_12, %c0_13, %c0_14] : memref<1x32x32xf32, #tpu.memory_space<vmem>>, vector<1x32x32xf32>
    %13 = vector.shape_cast %12 : vector<1x32x32xf32> to vector<32x32xf32>
    %14 = vector.shape_cast %11 : vector<32x32xf32> to vector<1x32x32xf32>
    tpu.vector_store %arg5[%c0_12, %c0_13, %c0_14], %14 {strides = array<i32>} : memref<1x32x32xf32, #tpu.memory_space<vmem>>, vector<1x32x32xf32>,
    return
  }
  func.func @transform_0(%arg0: i32, %arg1: i32, %arg2: i32) -> (i32, i32, i32) {
    %c0_i32 = arith.constant 0 : i32
    return %arg0, %arg1, %arg2 : i32, i32, i32
  }
  func.func @transform_1(%arg0: i32, %arg1: i32, %arg2: i32) -> (i32, i32, i32) {
    %c0_i32 = arith.constant 0 : i32
    %c0_i32_0 = arith.constant 0 : i32
    return %arg0, %arg2, %c0_i32 : i32, i32, i32
  }
  func.func @transform_2(%arg0: i32, %arg1: i32, %arg2: i32) -> (i32, i32, i32) {
    %c0_i32 = arith.constant 0 : i32
    %c0_i32_0 = arith.constant 0 : i32
    return %arg0, %arg1, %c0_i32 : i32, i32, i32
  }
}

module attributes {stable_mosaic.version = 11 : i64} {
  func.func @_gc1_kernel(%arg0: i32, %arg1: i32, %arg2: memref<32x128xf32, #tpu.memory_space<vmem>>, %arg3: memref<128x128xf32, #tpu.memory_space<vmem>>, %arg4: memref<1x128xf32, #tpu.memory_space<vmem>>, %arg5: memref<32x128xf32, #tpu.memory_space<vmem>>, %arg6: memref<1x128xf32, #tpu.memory_space<vmem>>, %arg7: memref<1x128xf32, #tpu.memory_space<vmem>>) attributes {dimension_semantics = [#tpu.dimension_semantics<arbitrary>, #tpu.dimension_semantics<arbitrary>], iteration_bounds = array<i64: 2, 1>, scalar_prefetch = 0 : i64, scratch_operands = 2 : i64, tpu.core_type = #tpu.core_type<tc>, window_params = [{transform_indices = @transform_0, window_bounds = array<i64: 32, 128>}, {pipeline_mode = #tpu.pipeline_mode<synchronous>, transform_indices = @transform_1, window_bounds = array<i64: 128, 128>}, {pipeline_mode = #tpu.pipeline_mode<synchronous>, transform_indices = @transform_2, window_bounds = array<i64: 1, 128>}, {transform_indices = @transform_3, window_bounds = array<i64: 32, 128>}]} {
    %c0_i32 = arith.constant 0 : i32
    %0 = arith.cmpi eq, %arg0, %c0_i32 : i32
    %c0_i32_0 = arith.constant 0 : i32
    %1 = arith.cmpi eq, %arg1, %c0_i32_0 : i32
    %2 = arith.andi %0, %1 : i1
    %3 = arith.extui %2 : i1 to i32
    %c0_i32_1 = arith.constant 0 : i32
    %4 = arith.cmpi ne, %3, %c0_i32_1 : i32
    scf.if %4 {
      %cst = arith.constant 0.000000e+00 : f32
      %11 = vector.broadcast %cst : f32 to vector<1x128xf32>
      %c0 = arith.constant 0 : index
      %c0_5 = arith.constant 0 : index
      %12 = vector.load %arg6[%c0, %c0_5] : memref<1x128xf32, #tpu.memory_space<vmem>>, vector<1x128xf32>
      tpu.vector_store %arg6[%c0, %c0_5], %11 {strides = array<i32>} : memref<1x128xf32, #tpu.memory_space<vmem>>, vector<1x128xf32>,
      %cst_6 = arith.constant 0.000000e+00 : f32
      %13 = vector.broadcast %cst_6 : f32 to vector<1x128xf32>
      %c0_7 = arith.constant 0 : index
      %c0_8 = arith.constant 0 : index
      %14 = vector.load %arg7[%c0_7, %c0_8] : memref<1x128xf32, #tpu.memory_space<vmem>>, vector<1x128xf32>
      tpu.vector_store %arg7[%c0_7, %c0_8], %13 {strides = array<i32>} : memref<1x128xf32, #tpu.memory_space<vmem>>, vector<1x128xf32>,
    } else {
    }
    %c0_i32_2 = arith.constant 0 : i32
    %5 = arith.cmpi eq, %arg0, %c0_i32_2 : i32
    %6 = arith.extui %5 : i1 to i32
    %c0_i32_3 = arith.constant 0 : i32
    %7 = arith.cmpi ne, %6, %c0_i32_3 : i32
    scf.if %7 {
      %c0 = arith.constant 0 : index
      %c0_5 = arith.constant 0 : index
      %11 = vector.load %arg2[%c0, %c0_5] : memref<32x128xf32, #tpu.memory_space<vmem>>, vector<32x128xf32>
      %c0_6 = arith.constant 0 : index
      %c0_7 = arith.constant 0 : index
      %12 = vector.load %arg6[%c0_6, %c0_7] : memref<1x128xf32, #tpu.memory_space<vmem>>, vector<1x128xf32>
      %cst = arith.constant dense<0.000000e+00> : vector<128xf32>
      %13 = vector.multi_reduction <add>, %11, %cst [0] : vector<32x128xf32> to vector<128xf32>
      %14 = vector.shape_cast %13 : vector<128xf32> to vector<1x128xf32>
      %15 = arith.addf %12, %14 : vector<1x128xf32>
      %c0_8 = arith.constant 0 : index
      %c0_9 = arith.constant 0 : index
      %16 = vector.load %arg6[%c0_8, %c0_9] : memref<1x128xf32, #tpu.memory_space<vmem>>, vector<1x128xf32>
      tpu.vector_store %arg6[%c0_8, %c0_9], %15 {strides = array<i32>} : memref<1x128xf32, #tpu.memory_space<vmem>>, vector<1x128xf32>,
      %c0_10 = arith.constant 0 : index
      %c0_11 = arith.constant 0 : index
      %17 = vector.load %arg7[%c0_10, %c0_11] : memref<1x128xf32, #tpu.memory_space<vmem>>, vector<1x128xf32>
      %18 = arith.mulf %11, %11 : vector<32x128xf32>
      %cst_12 = arith.constant dense<0.000000e+00> : vector<128xf32>
      %19 = vector.multi_reduction <add>, %18, %cst_12 [0] : vector<32x128xf32> to vector<128xf32>
      %20 = vector.shape_cast %19 : vector<128xf32> to vector<1x128xf32>
      %21 = arith.addf %17, %20 : vector<1x128xf32>
      %c0_13 = arith.constant 0 : index
      %c0_14 = arith.constant 0 : index
      %22 = vector.load %arg7[%c0_13, %c0_14] : memref<1x128xf32, #tpu.memory_space<vmem>>, vector<1x128xf32>
      tpu.vector_store %arg7[%c0_13, %c0_14], %21 {strides = array<i32>} : memref<1x128xf32, #tpu.memory_space<vmem>>, vector<1x128xf32>,
      %cst_15 = arith.constant 0.000000e+00 : f32
      %23 = vector.broadcast %cst_15 : f32 to vector<32x128xf32>
      %c0_16 = arith.constant 0 : index
      %c0_17 = arith.constant 0 : index
      %24 = vector.load %arg5[%c0_16, %c0_17] : memref<32x128xf32, #tpu.memory_space<vmem>>, vector<32x128xf32>
      tpu.vector_store %arg5[%c0_16, %c0_17], %23 {strides = array<i32>} : memref<32x128xf32, #tpu.memory_space<vmem>>, vector<32x128xf32>,
    } else {
    }
    %c1_i32 = arith.constant 1 : i32
    %8 = arith.cmpi eq, %arg0, %c1_i32 : i32
    %9 = arith.extui %8 : i1 to i32
    %c0_i32_4 = arith.constant 0 : i32
    %10 = arith.cmpi ne, %9, %c0_i32_4 : i32
    scf.if %10 {
      %c0 = arith.constant 0 : index
      %c0_5 = arith.constant 0 : index
      %11 = vector.load %arg6[%c0, %c0_5] : memref<1x128xf32, #tpu.memory_space<vmem>>, vector<1x128xf32>
      %cst = arith.constant 3.125000e-02 : f32
      %12 = vector.broadcast %cst : f32 to vector<1x128xf32>
      %13 = arith.mulf %11, %12 : vector<1x128xf32>
      %c0_6 = arith.constant 0 : index
      %c0_7 = arith.constant 0 : index
      %14 = vector.load %arg7[%c0_6, %c0_7] : memref<1x128xf32, #tpu.memory_space<vmem>>, vector<1x128xf32>
      %cst_8 = arith.constant 3.125000e-02 : f32
      %15 = vector.broadcast %cst_8 : f32 to vector<1x128xf32>
      %16 = arith.mulf %14, %15 : vector<1x128xf32>
      %17 = arith.mulf %13, %13 : vector<1x128xf32>
      %18 = arith.subf %16, %17 : vector<1x128xf32>
      %cst_9 = arith.constant 0.000000e+00 : f32
      %19 = vector.broadcast %cst_9 : f32 to vector<1x128xf32>
      %20 = arith.maximumf %18, %19 : vector<1x128xf32>
      %cst_10 = arith.constant 9.99999974E-6 : f32
      %21 = vector.broadcast %cst_10 : f32 to vector<1x128xf32>
      %22 = arith.addf %20, %21 : vector<1x128xf32>
      %23 = math.rsqrt %22 : vector<1x128xf32>
      %c0_11 = arith.constant 0 : index
      %c0_12 = arith.constant 0 : index
      %24 = vector.load %arg2[%c0_11, %c0_12] : memref<32x128xf32, #tpu.memory_space<vmem>>, vector<32x128xf32>
      %25 = vector.broadcast %13 : vector<1x128xf32> to vector<32x128xf32>
      %26 = arith.subf %24, %25 : vector<32x128xf32>
      %27 = vector.broadcast %23 : vector<1x128xf32> to vector<32x128xf32>
      %28 = arith.mulf %26, %27 : vector<32x128xf32>
      %c0_13 = arith.constant 0 : index
      %c0_14 = arith.constant 0 : index
      %29 = vector.load %arg3[%c0_13, %c0_14] : memref<128x128xf32, #tpu.memory_space<vmem>>, vector<128x128xf32>
      %cst_15 = arith.constant dense<0.000000e+00> : vector<32x128xf32>
      %30 = tpu.matmul %28, %29, %cst_15 {dimension_numbers = #tpu.dot_dimension_numbers<[1], [0], [0], [1], [0, 0, 1, 1], [], []>} : vector<32x128xf32>, vector<128x128xf32>, vector<32x128xf32> -> vector<32x128xf32>
      %c0_16 = arith.constant 0 : index
      %c0_17 = arith.constant 0 : index
      %31 = vector.load %arg4[%c0_16, %c0_17] : memref<1x128xf32, #tpu.memory_space<vmem>>, vector<1x128xf32>
      %32 = vector.broadcast %31 : vector<1x128xf32> to vector<32x128xf32>
      %33 = arith.addf %30, %32 : vector<32x128xf32>
      %c0_18 = arith.constant 0 : index
      %c0_19 = arith.constant 0 : index
      %34 = vector.load %arg5[%c0_18, %c0_19] : memref<32x128xf32, #tpu.memory_space<vmem>>, vector<32x128xf32>
      tpu.vector_store %arg5[%c0_18, %c0_19], %33 {strides = array<i32>} : memref<32x128xf32, #tpu.memory_space<vmem>>, vector<32x128xf32>,
    } else {
    }
    return
  }
  func.func @transform_0(%arg0: i32, %arg1: i32) -> (i32, i32) {
    %c0_i32 = arith.constant 0 : i32
    %c0_i32_0 = arith.constant 0 : i32
    return %arg1, %c0_i32 : i32, i32
  }
  func.func @transform_1(%arg0: i32, %arg1: i32) -> (i32, i32) {
    %c0_i32 = arith.constant 0 : i32
    %c0_i32_0 = arith.constant 0 : i32
    %c0_i32_1 = arith.constant 0 : i32
    return %c0_i32, %c0_i32_0 : i32, i32
  }
  func.func @transform_2(%arg0: i32, %arg1: i32) -> (i32, i32) {
    %c0_i32 = arith.constant 0 : i32
    %c0_i32_0 = arith.constant 0 : i32
    %c0_i32_1 = arith.constant 0 : i32
    return %c0_i32, %c0_i32_0 : i32, i32
  }
  func.func @transform_3(%arg0: i32, %arg1: i32) -> (i32, i32) {
    %c0_i32 = arith.constant 0 : i32
    %c0_i32_0 = arith.constant 0 : i32
    return %arg1, %c0_i32 : i32, i32
  }
}

</mosaic_0001>

<llo_original>
// kernel: dir_model_forward.46
$region0: #{dir_model_forward.46}
  #allocation0 [shape = 'u32[]', space=smem, size = 0x4, offset = 0x4, fixed_abs, tag = 'smem constant byte address 0x4 - core index']
  #allocation1 [shape = 'u32[72,128]{1,0:T(1,128)}', space=vmem, size = 0x9000, scoped, tag = 'internal scratch']
  %s0 = inlined_call_operand.vmem [shape: f32[32,8], index: 0, kind: input, shape index: {}]
  %s1 = inlined_call_operand.vmem [shape: f32[8,128], index: 1, kind: input, shape index: {}]
  %s2 = inlined_call_operand.vmem [shape: f32[1,128], index: 2, kind: input, shape index: {}]
  %s3 = inlined_call_operand.vmem [shape: f32[32,128], index: 3, kind: output, shape index: {}]
  %s4 = sld [smem:[#allocation0]]
  $region22: #{dir_model_forward.46} parent=0
    _
  %s6 = ssub.s32 1, %s4
  %s7 = scalar_select 0, %s6, %s4
  // Predicated region
  $region2: #{dir_model_forward.46} parent=0 // pred_check
    _
  $region3: #{dir_model_forward.46} parent=0 // pred_check_branch
    %9 = sbr.rel (0) target = $region5
  $region4: #{dir_model_forward.46} parent=0 // pred_region
    _
  $region5: #{dir_model_forward.46} parent=0 // pred_fallthru
    _
  // Predicated region
  $region6: #{dir_model_forward.46} parent=0 // pred_check
    _
  $region7: #{dir_model_forward.46} parent=0 // pred_check_branch
    %11 = sbr.rel (0) target = $region9
  $region8: #{dir_model_forward.46} parent=0 // pred_region
    _
  $region9: #{dir_model_forward.46} parent=0 // pred_fallthru
    _
  // Predicated region
  $region10: #{dir_model_forward.46} parent=0 // pred_check
    _
  $region11: #{dir_model_forward.46} parent=0 // pred_check_branch
    %13 = sbr.rel (0) target = $region13
  $region12: #{dir_model_forward.46} parent=0 // pred_region
    _
  $region13: #{dir_model_forward.46} parent=0 // pred_fallthru
    _
  %v14 = vld [vmem:[%s0] sm:$0xff]
  %v15 = vld [vmem:[%s0 + $0x8] sm:$0xff]
  %v16 = vld [vmem:[%s0 + $0x10] sm:$0xff]
  %v17 = vld [vmem:[%s0 + $0x18] sm:$0xff]
  %v18 = vld [vmem:[%s1] sm:$0xff]
  %v19 = vld [vmem:[%s2] sm:$0x1]
  %v21 = vperm.slane %v19, 0
  %vm23 = vcmask 64512
  %v25 = vsel %vm23, %v14, 0
  %v28 = vsel %vm23, %v15, 0
  %v31 = vsel %vm23, %v16, 0
  %v34 = vsel %vm23, %v17, 0
  %36 = vmatpush.msra.mxu0 0.0
  %37 = vmatpush.msra.mxu0 0.0
  %38 = vmatpush.msra.mxu0 0.0
  %39 = vmatpush.msra.mxu0 0.0
  %40 = vmatpush.msra.mxu0 0.0
  %41 = vmatpush.msra.mxu0 0.0
  %42 = vmatpush.msra.mxu0 0.0
  %43 = vmatpush.msra.mxu0 0.0
  %44 = vmatpush.msra.mxu0 0.0
  %45 = vmatpush.msra.mxu0 0.0
  %46 = vmatpush.msra.mxu0 0.0
  %47 = vmatpush.msra.mxu0 0.0
  %48 = vmatpush.msra.mxu0 0.0
  %49 = vmatpush.msra.mxu0 0.0
  %50 = vmatpush.msra.mxu0 0.0
  %51 = vmatpush.msra.mxu0 %v18
  %52 = vmatmul.f32.gmra.mxu0 %v25
  %v53 = vpop.f32.mrf.mxu0
  %v54 = vadd.f32 %v21, %v53
  %55 = vmatmul.f32.gmra.mxu0 %v28
  %v56 = vpop.f32.mrf.mxu0
  %v57 = vadd.f32 %v21, %v56
  %58 = vmatmul.f32.gmra.mxu0 %v31
  %v59 = vpop.f32.mrf.mxu0
  %v60 = vadd.f32 %v21, %v59
  %61 = vmatmul.f32.gmra.mxu0 %v34
  %v62 = vpop.f32.mrf.mxu0
  %v63 = vadd.f32 %v21, %v62
  %64 = vdwg.mxu0
  %65 = vst [vmem:[%s3] sm:$0xff] %v54
  %66 = vst [vmem:[%s3 + $0x8] sm:$0xff] %v57
  %67 = vst [vmem:[%s3 + $0x10] sm:$0xff] %v60
  %68 = vst [vmem:[%s3 + $0x18] sm:$0xff] %v63
  // Predicated region
  $region14: #{dir_model_forward.46} parent=0 // pred_check
    _
  $region15: #{dir_model_forward.46} parent=0 // pred_check_branch
    %70 = sbr.rel (0) target = $region17
  $region16: #{dir_model_forward.46} parent=0 // pred_region
    _
  $region17: #{dir_model_forward.46} parent=0 // pred_fallthru
    _
  // Predicated region
  $region18: #{dir_model_forward.46} parent=0 // pred_check
    _
  $region19: #{dir_model_forward.46} parent=0 // pred_check_branch
    %72 = sbr.rel (0) target = $region21
  $region20: #{dir_model_forward.46} parent=0 // pred_region
    _
  $region21: #{dir_model_forward.46} parent=0 // pred_fallthru
    _

// kernel: dir_model_forward.48
$region0: #{dir_model_forward.48}
  #allocation0 [shape = 'u32[]', space=smem, size = 0x4, offset = 0x4, fixed_abs, tag = 'smem constant byte address 0x4 - core index']
  #allocation1 [shape = 'u32[72,128]{1,0:T(1,128)}', space=vmem, size = 0x9000, scoped, tag = 'internal scratch']
  #allocation2 [shape = 'f32[64,32]{1,0:T(8,128)}', space=vmem, size = 0x8000, scoped, tag = 'scratch operand']
  %s0 = inlined_call_operand.vmem [shape: bf16[2,64,32], index: 0, kind: input, shape index: {}]
  %s1 = inlined_call_operand.vmem [shape: bf16[2,32,32], index: 1, kind: input, shape index: {}]
  %s2 = inlined_call_operand.vmem [shape: f32[2,64,32], index: 2, kind: output, shape index: {}]
  %s3 = sld [smem:[#allocation0]]
  $region45: #{dir_model_forward.48} parent=0
    _
  %s5 = ssub.s32 1, %s3
  %s6 = scalar_select 0, %s5, %s3
  loop: start=0, step=1, limit=4
  $region2: #{dir_model_forward.48} parent=0 // loop_pre_header
    _
  $region3: #{dir_model_forward.48} parent=0 // loop_header
    %s8 = sphi 0, %s12
    %p9 = scmp.ge.s32.totalorder %s8, 4
    %s15 = sphi 0, %s34
    %s16 = sphi 0, %s30
    %s17 = sphi 0, %s26
    %s18 = sphi 0, %s15
    %s19 = sphi 0, %s16
    %s20 = sphi 0, %s17
    %s21 = sphi 0, %s18
    %s22 = sphi 0, %s19
    %s23 = sphi 0, %s20
    %s41 = sphi 0, %s43
    %s44 = sphi 0, %s41
    %s45 = sphi 0, %s44
    %s61 = sphi 0, %s45
    %s69 = sphi 0, %s71
    %s72 = sphi 0, %s69
    %s73 = sphi 0, %s72
    %s89 = sphi 0, %s73
    %s97 = sphi 0, %s99
    %s100 = sphi 0, %s97
    %s101 = sphi 0, %s100
    %s117 = sphi 0, %s101
  $region4: #{dir_model_forward.48} parent=0 // loop_header_branch
    %11 = sbr.rel (%p9) target = $region8
  $region5: #{dir_model_forward.48} parent=0 // loop_body
    %s13 = ssub.s32 %s8, 1
    %s14 = ssub.s32 %s8, 2
    %s24 = sadd.s32 1, %s17
    %p25 = scmp.ge.s32.totalorder %s24, 1
    %s26 = scalar_select %p25, 0, %s24
    %s27 = sadd.s32 1, %s16
    %s28 = scalar_select %p25, %s27, %s16
    %p29 = scmp.ge.s32.totalorder %s28, 1
    %s30 = scalar_select %p29, 0, %s28
    %s31 = sadd.s32 1, %s15
    %s32 = scalar_select %p29, %s31, %s15
    %p33 = scmp.ge.s32.totalorder %s32, 2
    %s34 = scalar_select %p33, 0, %s32
    %s35 = ssub.s32 %s15, %s34
    %s36 = ssub.s32 %s16, %s30
    %s37 = sor.u32 %s35, %s36
    %s38 = ssub.s32 %s17, %s26
    %s39 = sor.u32 %s37, %s38
    %p40 = scmp.eq.s32.totalorder %s39, 0
    %s42 = sadd.s32 %s41, 1
    %s43 = scalar_select %p40, %s41, %s42
    %p46 = pneg %p40
    %p47 = scmp.eq.s32.totalorder %s8, 1
    %p48 = por %p46, %p47
    %p49 = scmp.ne.s32.totalorder %s41, %s44
    %p50 = scmp.eq.s32.totalorder %s8, 0
    %p51 = por %p49, %p50
    %p52 = scmp.ne.s32.totalorder %s41, %s44
    %p53 = scmp.eq.s32.totalorder %s13, 1
    %p54 = por %p52, %p53
    %p55 = scmp.ne.s32.totalorder %s44, %s45
    %p56 = scmp.eq.s32.totalorder %s13, 0
    %p57 = por %p55, %p56
    %p58 = scmp.ne.s32.totalorder %s44, %s45
    %p59 = scmp.eq.s32.totalorder %s14, 1
    %p60 = por %p58, %p59
    %p62 = scmp.ne.s32.totalorder %s45, %s61
    %p63 = scmp.eq.s32.totalorder %s14, 0
    %p64 = por %p62, %p63
    %s65 = ssub.s32 %s15, %s34
    %s66 = ssub.s32 %s17, %s26
    %s67 = sor.u32 %s65, %s66
    %p68 = scmp.eq.s32.totalorder %s67, 0
    %s70 = sadd.s32 %s69, 1
    %s71 = scalar_select %p68, %s69, %s70
    %p74 = pneg %p68
    %p75 = scmp.eq.s32.totalorder %s8, 1
    %p76 = por %p74, %p75
    %p77 = scmp.ne.s32.totalorder %s69, %s72
    %p78 = scmp.eq.s32.totalorder %s8, 0
    %p79 = por %p77, %p78
    %p80 = scmp.ne.s32.totalorder %s69, %s72
    %p81 = scmp.eq.s32.totalorder %s13, 1
    %p82 = por %p80, %p81
    %p83 = scmp.ne.s32.totalorder %s72, %s73
    %p84 = scmp.eq.s32.totalorder %s13, 0
    %p85 = por %p83, %p84
    %p86 = scmp.ne.s32.totalorder %s72, %s73
    %p87 = scmp.eq.s32.totalorder %s14, 1
    %p88 = por %p86, %p87
    %p90 = scmp.ne.s32.totalorder %s73, %s89
    %p91 = scmp.eq.s32.totalorder %s14, 0
    %p92 = por %p90, %p91
    %s93 = ssub.s32 %s15, %s34
    %s94 = ssub.s32 %s16, %s30
    %s95 = sor.u32 %s93, %s94
    %p96 = scmp.eq.s32.totalorder %s95, 0
    %s98 = sadd.s32 %s97, 1
    %s99 = scalar_select %p96, %s97, %s98
    %p102 = pneg %p96
    %p103 = scmp.eq.s32.totalorder %s8, 1
    %p104 = por %p102, %p103
    %p105 = scmp.ne.s32.totalorder %s97, %s100
    %p106 = scmp.eq.s32.totalorder %s8, 0
    %p107 = por %p105, %p106
    %p108 = scmp.ne.s32.totalorder %s97, %s100
    %p109 = scmp.eq.s32.totalorder %s13, 1
    %p110 = por %p108, %p109
    %p111 = scmp.ne.s32.totalorder %s100, %s101
    %p112 = scmp.eq.s32.totalorder %s13, 0
    %p113 = por %p111, %p112
    %p114 = scmp.ne.s32.totalorder %s100, %s101
    %p115 = scmp.eq.s32.totalorder %s14, 1
    %p116 = por %p114, %p115
    %p118 = scmp.ne.s32.totalorder %s101, %s117
    %p119 = scmp.eq.s32.totalorder %s14, 0
    %p120 = por %p118, %p119
    %p121 = scmp.le.s32.totalorder 1, %s8
    %p122 = scmp.lt.s32.totalorder %s8, 3
    %p123 = pnand %p121, %p122
    %p124 = pneg %p123
    // Predicated region
    $region9: #{dir_model_forward.48} parent=5 // pred_check
      _
    $region10: #{dir_model_forward.48} parent=5 // pred_check_branch
      %126 = sbr.rel (%p123) target = $region12
    $region11: #{dir_model_forward.48} parent=5 // pred_region
      %s127 = ssub.s32 %s8, 1
    $region12: #{dir_model_forward.48} parent=5 // pred_fallthru
      _
    %p128 = scmp.lt.s32.totalorder %s8, 2
    // Predicated region
    $region13: #{dir_model_forward.48} parent=5 // pred_check
      %p129 = pneg %p128
    $region14: #{dir_model_forward.48} parent=5 // pred_check_branch
      %131 = sbr.rel (%p129) target = $region16
    $region15: #{dir_model_forward.48} parent=5 // pred_region
      // Predicated region
      $region17: #{dir_model_forward.48} parent=15 // pred_check
        %p132 = pneg %p51
      $region18: #{dir_model_forward.48} parent=15 // pred_check_branch
        %134 = sbr.rel (%p132) target = $region20
      $region19: #{dir_model_forward.48} parent=15 // pred_region
        %s135 = smul.u32 8, %s16
        %p136 = scmp.lt.s32.totalorder %s15, 1
        %s137 = scalar_select %p136, %s15, 1
        %p138 = scmp.lt.s32.totalorder %s135, 7
        %s139 = scalar_select %p138, %s135, 7
        %p140 = scmp.lt.s32.totalorder %s17, 0
        %s141 = scalar_select %p140, %s17, 0
        %s142 = sadd.s32 %s141, %s139
        %s143 = smul.addr %s137, 8
        %s144 = sadd.s32 %s142, %s143
        %s145 = smul.addr %s144, 4
        %s146 = scalar_lea.vmem %s0, %s145
        %s147 = smul.u32 8, %s16
      $region20: #{dir_model_forward.48} parent=15 // pred_fallthru
        _
      // Predicated region
      $region21: #{dir_model_forward.48} parent=15 // pred_check
        %p148 = pneg %p79
      $region22: #{dir_model_forward.48} parent=15 // pred_check_branch
        %150 = sbr.rel (%p148) target = $region24
      $region23: #{dir_model_forward.48} parent=15 // pred_region
        %s151 = smul.u32 4, %s17
        %p152 = scmp.lt.s32.totalorder %s15, 1
        %s153 = scalar_select %p152, %s15, 1
        %p154 = scmp.lt.s32.totalorder %s151, 3
        %s155 = scalar_select %p154, %s151, 3
        %s156 = smul.addr %s153, 4
        %s157 = sadd.s32 %s155, %s156
        %s158 = smul.addr %s157, 4
        %s159 = scalar_lea.vmem %s1, %s158
        %s160 = smul.u32 4, %s17
      $region24: #{dir_model_forward.48} parent=15 // pred_fallthru
        _
    $region16: #{dir_model_forward.48} parent=5 // pred_fallthru
      _
    %p161 = scmp.le.s32.totalorder 1, %s8
    %p162 = scmp.lt.s32.totalorder %s8, 3
    %p163 = pnand %p161, %p162
    %p164 = pneg %p163
    // Predicated region
    $region25: #{dir_model_forward.48} parent=5 // pred_check
      _
    $region26: #{dir_model_forward.48} parent=5 // pred_check_branch
      %166 = sbr.rel (%p163) target = $region28
    $region27: #{dir_model_forward.48} parent=5 // pred_region
      %s167 = ssub.s32 %s8, 1
      %s168 = smul.u32 8, %s19
      %p169 = scmp.lt.s32.totalorder %s18, 1
      %s170 = scalar_select %p169, %s18, 1
      %p171 = scmp.lt.s32.totalorder %s168, 7
      %s172 = scalar_select %p171, %s168, 7
      %p173 = scmp.lt.s32.totalorder %s20, 0
      %s174 = scalar_select %p173, %s20, 0
      %s175 = sadd.s32 %s174, %s172
      %s176 = smul.addr %s170, 8
      %s177 = sadd.s32 %s175, %s176
      %s178 = smul.addr %s177, 4
      %s179 = scalar_lea.vmem %s0, %s178
      %p180 = pneg %p57
      %p181 = pneg %p54
      %s182 = smul.u32 4, %s20
      %p183 = scmp.lt.s32.totalorder %s18, 1
      %s184 = scalar_select %p183, %s18, 1
      %p185 = scmp.lt.s32.totalorder %s182, 3
      %s186 = scalar_select %p185, %s182, 3
      %s187 = smul.addr %s184, 4
      %s188 = sadd.s32 %s186, %s187
      %s189 = smul.addr %s188, 4
      %s190 = scalar_lea.vmem %s1, %s189
      %p191 = pneg %p85
      %p192 = pneg %p82
      %p193 = pneg %p113
      %p194 = pneg %p110
      %s195 = smul.u32 8, %s19
      %p196 = scmp.lt.s32.totalorder %s18, 1
      %s197 = scalar_select %p196, %s18, 1
      %p198 = scmp.lt.s32.totalorder %s195, 7
      %s199 = scalar_select %p198, %s195, 7
      %s200 = smul.addr %s197, 8
      %s201 = sadd.s32 %s199, %s200
      %s202 = smul.addr %s201, 8
      %s203 = scalar_lea.vmem %s2, %s202
      %s204 = smul.u32 8, %s19
      %p205 = scmp.lt.s32.totalorder %s18, 1
      %s206 = scalar_select %p205, %s18, 1
      %p207 = scmp.lt.s32.totalorder %s204, 7
      %s208 = scalar_select %p207, %s204, 7
      %p209 = scmp.lt.s32.totalorder %s20, 0
      %s210 = scalar_select %p209, %s20, 0
      %s211 = sadd.s32 %s210, %s208
      %s212 = smul.addr %s206, 8
      %s213 = sadd.s32 %s211, %s212
      %s214 = smul.addr %s213, 4
      %s215 = scalar_lea.vmem %s0, %s214
      %s216 = smul.u32 8, %s19
      %s217 = smul.u32 4, %s20
      %p218 = scmp.lt.s32.totalorder %s18, 1
      %s219 = scalar_select %p218, %s18, 1
      %p220 = scmp.lt.s32.totalorder %s217, 3
      %s221 = scalar_select %p220, %s217, 3
      %s222 = smul.addr %s219, 4
      %s223 = sadd.s32 %s221, %s222
      %s224 = smul.addr %s223, 4
      %s225 = scalar_lea.vmem %s1, %s224
      %s226 = smul.u32 4, %s20
      %s227 = smul.u32 8, %s19
      %p228 = scmp.lt.s32.totalorder %s18, 1
      %s229 = scalar_select %p228, %s18, 1
      %p230 = scmp.lt.s32.totalorder %s227, 7
      %s231 = scalar_select %p230, %s227, 7
      %s232 = smul.addr %s229, 8
      %s233 = sadd.s32 %s231, %s232
      %s234 = smul.addr %s233, 8
      %s235 = scalar_lea.vmem %s2, %s234
      %s236 = smul.u32 8, %s19
      %p238 = scmp.eq.s32.totalorder %s20, 0
      // Predicated region
      $region29: #{dir_model_forward.48} parent=27 // pred_check
        %p239 = pneg %p238
      $region30: #{dir_model_forward.48} parent=27 // pred_check_branch
        %241 = sbr.rel (%p239) target = $region32
      $region31: #{dir_model_forward.48} parent=27 // pred_region
        %vm242 = vcmask 261120
        %243 = vst.msk [vmem:[#allocation2] sm:$0xff] %vm242, 0.0
        %244 = vst.msk [vmem:[#allocation2 + $0x8] sm:$0xff] %vm242, 0.0
        %245 = vst.msk [vmem:[#allocation2 + $0x10] sm:$0xff] %vm242, 0.0
        %246 = vst.msk [vmem:[#allocation2 + $0x18] sm:$0xff] %vm242, 0.0
        %247 = vst.msk [vmem:[#allocation2 + $0x20] sm:$0xff] %vm242, 0.0
        %248 = vst.msk [vmem:[#allocation2 + $0x28] sm:$0xff] %vm242, 0.0
        %249 = vst.msk [vmem:[#allocation2 + $0x30] sm:$0xff] %vm242, 0.0
        %250 = vst.msk [vmem:[#allocation2 + $0x38] sm:$0xff] %vm242, 0.0
      $region32: #{dir_model_forward.48} parent=27 // pred_fallthru
        _
      %v251 = vld [vmem:[#allocation2] sm:$0xff]
      %v252 = vld [vmem:[#allocation2 + $0x8] sm:$0xff]
      %v253 = vld [vmem:[#allocation2 + $0x10] sm:$0xff]
      %v254 = vld [vmem:[#allocation2 + $0x18] sm:$0xff]
      %v255 = vld [vmem:[#allocation2 + $0x20] sm:$0xff]
      %v256 = vld [vmem:[#allocation2 + $0x28] sm:$0xff]
      %v257 = vld [vmem:[#allocation2 + $0x30] sm:$0xff]
      %v258 = vld [vmem:[#allocation2 + $0x38] sm:$0xff]
      %v259 = vld [vmem:[%s215] sm:$0xf]
      %v260 = vld [vmem:[%s215 + $0x4] sm:$0xf]
      %v261 = vld [vmem:[%s215 + $0x8] sm:$0xf]
      %v262 = vld [vmem:[%s215 + $0xc] sm:$0xf]
      %v263 = vld [vmem:[%s215 + $0x10] sm:$0xf]
      %v264 = vld [vmem:[%s215 + $0x14] sm:$0xf]
      %v265 = vld [vmem:[%s215 + $0x18] sm:$0xf]
      %v266 = vld [vmem:[%s215 + $0x1c] sm:$0xf]
      %v267 = vld [vmem:[%s225] sm:$0xf]
      %v268 = vld [vmem:[%s225 + $0x4] sm:$0xf]
      %v269 = vld [vmem:[%s225 + $0x8] sm:$0xf]
      %v270 = vld [vmem:[%s225 + $0xc] sm:$0xf]
      %v279 = vunpack.c.l.b16 %v259
      %v280 = vunpack.c.l.b16 %v260
      %v281 = vunpack.c.l.b16 %v261
      %v282 = vunpack.c.l.b16 %v262
      %v283 = vunpack.c.l.b16 %v263
      %v284 = vunpack.c.l.b16 %v264
      %v285 = vunpack.c.l.b16 %v265
      %v286 = vunpack.c.l.b16 %v266
      %v287 = vpack.c.b16 %v280, %v279
      %v288 = vpack.c.b16 %v282, %v281
      %v289 = vpack.c.b16 %v284, %v283
      %v290 = vpack.c.b16 %v286, %v285
      %v295 = vunpack.c.l.b16 %v267
      %v296 = vunpack.c.l.b16 %v268
      %v297 = vunpack.c.l.b16 %v269
      %v298 = vunpack.c.l.b16 %v270
      %v299 = vpack.c.b16 %v296, %v295
      %v300 = vpack.c.b16 %v298, %v297
      %vm303 = vcmask 261120
      %v305 = vsel %vm303, %v287, 0
      %v308 = vsel %vm303, %v288, 0
      %v311 = vsel %vm303, %v289, 0
      %v314 = vsel %vm303, %v290, 0
      %316 = vmatpush.bf16.msra.mxu0 0
      %317 = vmatpush.bf16.msra.mxu0 0
      %318 = vmatpush.bf16.msra.mxu0 0
      %319 = vmatpush.bf16.msra.mxu0 0
      %320 = vmatpush.bf16.msra.mxu0 0
      %321 = vmatpush.bf16.msra.mxu0 0
      %322 = vmatpush.bf16.msra.mxu0 %v300
      %323 = vmatpush.bf16.msra.mxu0 %v299
      %324 = vmatmul.bf16.gmra.mxu0 %v305
      %v325 = vpop.f32.mrf.mxu0
      %v326 = vadd.f32 0.0, %v325
      %v327 = vpop.f32.mrf.mxu0
      %v328 = vadd.f32 0.0, %v327
      %329 = vmatmul.bf16.gmra.mxu0 %v308
      %v330 = vpop.f32.mrf.mxu0
      %v331 = vadd.f32 0.0, %v330
      %v332 = vpop.f32.mrf.mxu0
      %v333 = vadd.f32 0.0, %v332
      %334 = vmatmul.bf16.gmra.mxu0 %v311
      %v335 = vpop.f32.mrf.mxu0
      %v336 = vadd.f32 0.0, %v335
      %v337 = vpop.f32.mrf.mxu0
      %v338 = vadd.f32 0.0, %v337
      %339 = vmatmul.bf16.gmra.mxu0 %v314
      %v340 = vpop.f32.mrf.mxu0
      %v341 = vadd.f32 0.0, %v340
      %v342 = vpop.f32.mrf.mxu0
      %v343 = vadd.f32 0.0, %v342
      %344 = vdwg.mxu0
      %v345 = vadd.f32 %v251, %v326
      %v346 = vadd.f32 %v252, %v328
      %v347 = vadd.f32 %v253, %v331
      %v348 = vadd.f32 %v254, %v333
      %v349 = vadd.f32 %v255, %v336
      %v350 = vadd.f32 %v256, %v338
      %v351 = vadd.f32 %v257, %v341
      %v352 = vadd.f32 %v258, %v343
      %353 = vst.msk [vmem:[#allocation2] sm:$0xff] %vm303, %v345
      %354 = vst.msk [vmem:[#allocation2 + $0x8] sm:$0xff] %vm303, %v346
      %355 = vst.msk [vmem:[#allocation2 + $0x10] sm:$0xff] %vm303, %v347
      %356 = vst.msk [vmem:[#allocation2 + $0x18] sm:$0xff] %vm303, %v348
      %357 = vst.msk [vmem:[#allocation2 + $0x20] sm:$0xff] %vm303, %v349
      %358 = vst.msk [vmem:[#allocation2 + $0x28] sm:$0xff] %vm303, %v350
      %359 = vst.msk [vmem:[#allocation2 + $0x30] sm:$0xff] %vm303, %v351
      %360 = vst.msk [vmem:[#allocation2 + $0x38] sm:$0xff] %vm303, %v352
      %v361 = vld [vmem:[#allocation2] sm:$0xff]
      %v362 = vld [vmem:[#allocation2 + $0x8] sm:$0xff]
      %v363 = vld [vmem:[#allocation2 + $0x10] sm:$0xff]
      %v364 = vld [vmem:[#allocation2 + $0x18] sm:$0xff]
      %v365 = vld [vmem:[#allocation2 + $0x20] sm:$0xff]
      %v366 = vld [vmem:[#allocation2 + $0x28] sm:$0xff]
      %v367 = vld [vmem:[#allocation2 + $0x30] sm:$0xff]
      %v368 = vld [vmem:[#allocation2 + $0x38] sm:$0xff]
      %369 = vst.msk [vmem:[%s235] sm:$0xff] %vm303, %v361
      %370 = vst.msk [vmem:[%s235 + $0x8] sm:$0xff] %vm303, %v362
      %371 = vst.msk [vmem:[%s235 + $0x10] sm:$0xff] %vm303, %v363
      %372 = vst.msk [vmem:[%s235 + $0x18] sm:$0xff] %vm303, %v364
      %373 = vst.msk [vmem:[%s235 + $0x20] sm:$0xff] %vm303, %v365
      %374 = vst.msk [vmem:[%s235 + $0x28] sm:$0xff] %vm303, %v366
      %375 = vst.msk [vmem:[%s235 + $0x30] sm:$0xff] %vm303, %v367
      %376 = vst.msk [vmem:[%s235 + $0x38] sm:$0xff] %vm303, %v368
      %s377 = smul.u32 8, %s19
      %p378 = scmp.lt.s32.totalorder %s18, 1
      %s379 = scalar_select %p378, %s18, 1
      %p380 = scmp.lt.s32.totalorder %s377, 7
      %s381 = scalar_select %p380, %s377, 7
      %s382 = smul.addr %s379, 8
      %s383 = sadd.s32 %s381, %s382
      %s384 = smul.addr %s383, 8
      %s385 = scalar_lea.vmem %s2, %s384
      // Predicated region
      $region33: #{dir_model_forward.48} parent=27 // pred_check
        %p386 = pneg %p110
      $region34: #{dir_model_forward.48} parent=27 // pred_check_branch
        %388 = sbr.rel (%p386) target = $region36
      $region35: #{dir_model_forward.48} parent=27 // pred_region
        %s389 = smul.u32 8, %s19
      $region36: #{dir_model_forward.48} parent=27 // pred_fallthru
        _
    $region28: #{dir_model_forward.48} parent=5 // pred_fallthru
      _
    %p390 = scmp.le.s32.totalorder 2, %s8
    // Predicated region
    $region37: #{dir_model_forward.48} parent=5 // pred_check
      %p391 = pneg %p390
    $region38: #{dir_model_forward.48} parent=5 // pred_check_branch
      %393 = sbr.rel (%p391) target = $region40
    $region39: #{dir_model_forward.48} parent=5 // pred_region
      %s394 = ssub.s32 %s8, 2
      // Predicated region
      $region41: #{dir_model_forward.48} parent=39 // pred_check
        %p395 = pneg %p116
      $region42: #{dir_model_forward.48} parent=39 // pred_check_branch
        %397 = sbr.rel (%p395) target = $region44
      $region43: #{dir_model_forward.48} parent=39 // pred_region
        %s398 = smul.u32 8, %s22
        %p399 = scmp.lt.s32.totalorder %s21, 1
        %s400 = scalar_select %p399, %s21, 1
        %p401 = scmp.lt.s32.totalorder %s398, 7
        %s402 = scalar_select %p401, %s398, 7
        %s403 = smul.addr %s400, 8
        %s404 = sadd.s32 %s402, %s403
        %s405 = smul.addr %s404, 8
        %s406 = scalar_lea.vmem %s2, %s405
      $region44: #{dir_model_forward.48} parent=39 // pred_fallthru
        _
    $region40: #{dir_model_forward.48} parent=5 // pred_fallthru
      _
  $region6: #{dir_model_forward.48} parent=0 // loop_footer
    %s12 = sadd.s32 1, %s8
  $region7: #{dir_model_forward.48} parent=0 // loop_footer_branch
    %7 = sbr.rel target = $region3
  $region8: #{dir_model_forward.48} parent=0 // loop_exit
    _

// kernel: dir_model_forward.49
$region0: #{dir_model_forward.49}
  #allocation0 [shape = 'u32[]', space=smem, size = 0x4, offset = 0x4, fixed_abs, tag = 'smem constant byte address 0x4 - core index']
  #allocation1 [shape = 'u32[72,128]{1,0:T(1,128)}', space=vmem, size = 0x9000, scoped, tag = 'internal scratch']
  #allocation2 [shape = 'f32[1,128]{1,0:T(1,128)}', space=vmem, size = 0x200, scoped, tag = 'scratch operand']
  #allocation3 [shape = 'f32[1,128]{1,0:T(1,128)}', space=vmem, size = 0x200, scoped, tag = 'scratch operand']
  #allocation4 [shape = 'f32[1,128]{1,0:T(1,128)}', space=vmem, size = 0x200, scoped, tag = 'scratch operand']
  #allocation5 [shape = 'f32[1,128]{1,0:T(1,128)}', space=vmem, size = 0x200, scoped, tag = 'scratch operand']
  %s0 = inlined_call_operand.vmem [shape: f32[32,128], index: 0, kind: input, shape index: {}]
  %s1 = inlined_call_operand.vmem [shape: f32[32,128], index: 1, kind: input, shape index: {}]
  %s2 = inlined_call_operand.vmem [shape: f32[128,128], index: 2, kind: input, shape index: {}]
  %s3 = inlined_call_operand.vmem [shape: f32[128,128], index: 3, kind: input, shape index: {}]
  %s4 = inlined_call_operand.vmem [shape: f32[1,128], index: 4, kind: input, shape index: {}]
  %s5 = inlined_call_operand.vmem [shape: f32[32,128], index: 5, kind: output, shape index: {}]
  %s6 = sld [smem:[#allocation0]]
  $region65: #{dir_model_forward.49} parent=0
    _
  %s8 = ssub.s32 1, %s6
  %s9 = scalar_select 0, %s8, %s6
  loop: start=0, step=1, limit=4
  $region2: #{dir_model_forward.49} parent=0 // loop_pre_header
    _
  $region3: #{dir_model_forward.49} parent=0 // loop_header
    %s11 = sphi 0, %s15
    %p12 = scmp.ge.s32.totalorder %s11, 4
    %s18 = sphi 0, %s30
    %s19 = sphi 0, %s26
    %s20 = sphi 0, %s18
    %s21 = sphi 0, %s19
    %s22 = sphi 0, %s20
    %s23 = sphi 0, %s21
    %s33 = sphi 0, %s35
    %s36 = sphi 0, %s33
    %s37 = sphi 0, %s36
    %s53 = sphi 0, %s37
    %s59 = sphi 0, %s61
    %s62 = sphi 0, %s59
    %s63 = sphi 0, %s62
    %s79 = sphi 0, %s63
    %s83 = sphi 0, %s83
    %s85 = sphi 0, %s83
    %s86 = sphi 0, %s85
    %s100 = sphi 0, %s86
    %s104 = sphi 0, %s104
    %s106 = sphi 0, %s104
    %s107 = sphi 0, %s106
    %s121 = sphi 0, %s107
    %s125 = sphi 0, %s125
    %s127 = sphi 0, %s125
    %s128 = sphi 0, %s127
    %s142 = sphi 0, %s128
    %s148 = sphi 0, %s150
    %s151 = sphi 0, %s148
    %s152 = sphi 0, %s151
    %s168 = sphi 0, %s152
  $region4: #{dir_model_forward.49} parent=0 // loop_header_branch
    %14 = sbr.rel (%p12) target = $region8
  $region5: #{dir_model_forward.49} parent=0 // loop_body
    %s16 = ssub.s32 %s11, 1
    %s17 = ssub.s32 %s11, 2
    %s24 = sadd.s32 1, %s19
    %p25 = scmp.ge.s32.totalorder %s24, 1
    %s26 = scalar_select %p25, 0, %s24
    %s27 = sadd.s32 1, %s18
    %s28 = scalar_select %p25, %s27, %s18
    %p29 = scmp.ge.s32.totalorder %s28, 2
    %s30 = scalar_select %p29, 0, %s28
    %s31 = ssub.s32 %s19, %s26
    %p32 = scmp.eq.s32.totalorder %s31, 0
    %s34 = sadd.s32 %s33, 1
    %s35 = scalar_select %p32, %s33, %s34
    %p38 = pneg %p32
    %p39 = scmp.eq.s32.totalorder %s11, 1
    %p40 = por %p38, %p39
    %p41 = scmp.ne.s32.totalorder %s33, %s36
    %p42 = scmp.eq.s32.totalorder %s11, 0
    %p43 = por %p41, %p42
    %p44 = scmp.ne.s32.totalorder %s33, %s36
    %p45 = scmp.eq.s32.totalorder %s16, 1
    %p46 = por %p44, %p45
    %p47 = scmp.ne.s32.totalorder %s36, %s37
    %p48 = scmp.eq.s32.totalorder %s16, 0
    %p49 = por %p47, %p48
    %p50 = scmp.ne.s32.totalorder %s36, %s37
    %p51 = scmp.eq.s32.totalorder %s17, 1
    %p52 = por %p50, %p51
    %p54 = scmp.ne.s32.totalorder %s37, %s53
    %p55 = scmp.eq.s32.totalorder %s17, 0
    %p56 = por %p54, %p55
    %s57 = ssub.s32 %s19, %s26
    %p58 = scmp.eq.s32.totalorder %s57, 0
    %s60 = sadd.s32 %s59, 1
    %s61 = scalar_select %p58, %s59, %s60
    %p64 = pneg %p58
    %p65 = scmp.eq.s32.totalorder %s11, 1
    %p66 = por %p64, %p65
    %p67 = scmp.ne.s32.totalorder %s59, %s62
    %p68 = scmp.eq.s32.totalorder %s11, 0
    %p69 = por %p67, %p68
    %p70 = scmp.ne.s32.totalorder %s59, %s62
    %p71 = scmp.eq.s32.totalorder %s16, 1
    %p72 = por %p70, %p71
    %p73 = scmp.ne.s32.totalorder %s62, %s63
    %p74 = scmp.eq.s32.totalorder %s16, 0
    %p75 = por %p73, %p74
    %p76 = scmp.ne.s32.totalorder %s62, %s63
    %p77 = scmp.eq.s32.totalorder %s17, 1
    %p78 = por %p76, %p77
    %p80 = scmp.ne.s32.totalorder %s63, %s79
    %p81 = scmp.eq.s32.totalorder %s17, 0
    %p82 = por %p80, %p81
    %s84 = sadd.s32 %s83, 1
    %p87 = scmp.eq.s32.totalorder %s11, 1
    %p88 = scmp.ne.s32.totalorder %s83, %s85
    %p89 = scmp.eq.s32.totalorder %s11, 0
    %p90 = por %p88, %p89
    %p91 = scmp.ne.s32.totalorder %s83, %s85
    %p92 = scmp.eq.s32.totalorder %s16, 1
    %p93 = por %p91, %p92
    %p94 = scmp.ne.s32.totalorder %s85, %s86
    %p95 = scmp.eq.s32.totalorder %s16, 0
    %p96 = por %p94, %p95
    %p97 = scmp.ne.s32.totalorder %s85, %s86
    %p98 = scmp.eq.s32.totalorder %s17, 1
    %p99 = por %p97, %p98
    %p101 = scmp.ne.s32.totalorder %s86, %s100
    %p102 = scmp.eq.s32.totalorder %s17, 0
    %p103 = por %p101, %p102
    %s105 = sadd.s32 %s104, 1
    %p108 = scmp.eq.s32.totalorder %s11, 1
    %p109 = scmp.ne.s32.totalorder %s104, %s106
    %p110 = scmp.eq.s32.totalorder %s11, 0
    %p111 = por %p109, %p110
    %p112 = scmp.ne.s32.totalorder %s104, %s106
    %p113 = scmp.eq.s32.totalorder %s16, 1
    %p114 = por %p112, %p113
    %p115 = scmp.ne.s32.totalorder %s106, %s107
    %p116 = scmp.eq.s32.totalorder %s16, 0
    %p117 = por %p115, %p116
    %p118 = scmp.ne.s32.totalorder %s106, %s107
    %p119 = scmp.eq.s32.totalorder %s17, 1
    %p120 = por %p118, %p119
    %p122 = scmp.ne.s32.totalorder %s107, %s121
    %p123 = scmp.eq.s32.totalorder %s17, 0
    %p124 = por %p122, %p123
    %s126 = sadd.s32 %s125, 1
    %p129 = scmp.eq.s32.totalorder %s11, 1
    %p130 = scmp.ne.s32.totalorder %s125, %s127
    %p131 = scmp.eq.s32.totalorder %s11, 0
    %p132 = por %p130, %p131
    %p133 = scmp.ne.s32.totalorder %s125, %s127
    %p134 = scmp.eq.s32.totalorder %s16, 1
    %p135 = por %p133, %p134
    %p136 = scmp.ne.s32.totalorder %s127, %s128
    %p137 = scmp.eq.s32.totalorder %s16, 0
    %p138 = por %p136, %p137
    %p139 = scmp.ne.s32.totalorder %s127, %s128
    %p140 = scmp.eq.s32.totalorder %s17, 1
    %p141 = por %p139, %p140
    %p143 = scmp.ne.s32.totalorder %s128, %s142
    %p144 = scmp.eq.s32.totalorder %s17, 0
    %p145 = por %p143, %p144
    %s146 = ssub.s32 %s19, %s26
    %p147 = scmp.eq.s32.totalorder %s146, 0
    %s149 = sadd.s32 %s148, 1
    %s150 = scalar_select %p147, %s148, %s149
    %p153 = pneg %p147
    %p154 = scmp.eq.s32.totalorder %s11, 1
    %p155 = por %p153, %p154
    %p156 = scmp.ne.s32.totalorder %s148, %s151
    %p157 = scmp.eq.s32.totalorder %s11, 0
    %p158 = por %p156, %p157
    %p159 = scmp.ne.s32.totalorder %s148, %s151
    %p160 = scmp.eq.s32.totalorder %s16, 1
    %p161 = por %p159, %p160
    %p162 = scmp.ne.s32.totalorder %s151, %s152
    %p163 = scmp.eq.s32.totalorder %s16, 0
    %p164 = por %p162, %p163
    %p165 = scmp.ne.s32.totalorder %s151, %s152
    %p166 = scmp.eq.s32.totalorder %s17, 1
    %p167 = por %p165, %p166
    %p169 = scmp.ne.s32.totalorder %s152, %s168
    %p170 = scmp.eq.s32.totalorder %s17, 0
    %p171 = por %p169, %p170
    %p172 = scmp.le.s32.totalorder 1, %s11
    %p173 = scmp.lt.s32.totalorder %s11, 3
    %p174 = pnand %p172, %p173
    %p175 = pneg %p174
    // Predicated region
    $region9: #{dir_model_forward.49} parent=5 // pred_check
      _
    $region10: #{dir_model_forward.49} parent=5 // pred_check_branch
      %177 = sbr.rel (%p174) target = $region12
    $region11: #{dir_model_forward.49} parent=5 // pred_region
      %s178 = ssub.s32 %s11, 1
      // Predicated region
      $region13: #{dir_model_forward.49} parent=11 // pred_check
        %p179 = pneg %p49
      $region14: #{dir_model_forward.49} parent=11 // pred_check_branch
        %181 = sbr.rel (%p179) target = $region16
      $region15: #{dir_model_forward.49} parent=11 // pred_region
        %s182 = smul.u32 4, %s21
        %p183 = scmp.lt.s32.totalorder %s182, 3
        %s184 = scalar_select %p183, %s182, 3
        %s185 = smul.addr %s184, 8
        %s186 = scalar_lea.vmem %s0, %s185
        %s187 = smul.u32 4, %s21
      $region16: #{dir_model_forward.49} parent=11 // pred_fallthru
        _
      // Predicated region
      $region17: #{dir_model_forward.49} parent=11 // pred_check
        %p188 = pneg %p75
      $region18: #{dir_model_forward.49} parent=11 // pred_check_branch
        %190 = sbr.rel (%p188) target = $region20
      $region19: #{dir_model_forward.49} parent=11 // pred_region
        %s191 = smul.u32 4, %s21
        %p192 = scmp.lt.s32.totalorder %s191, 3
        %s193 = scalar_select %p192, %s191, 3
        %s194 = smul.addr %s193, 8
        %s195 = scalar_lea.vmem %s1, %s194
        %s196 = smul.u32 4, %s21
      $region20: #{dir_model_forward.49} parent=11 // pred_fallthru
        _
      // Predicated region
      $region21: #{dir_model_forward.49} parent=11 // pred_check
        %p197 = pneg %p96
      $region22: #{dir_model_forward.49} parent=11 // pred_check_branch
        %199 = sbr.rel (%p197) target = $region24
      $region23: #{dir_model_forward.49} parent=11 // pred_region
        _
      $region24: #{dir_model_forward.49} parent=11 // pred_fallthru
        _
      // Predicated region
      $region25: #{dir_model_forward.49} parent=11 // pred_check
        %p200 = pneg %p117
      $region26: #{dir_model_forward.49} parent=11 // pred_check_branch
        %202 = sbr.rel (%p200) target = $region28
      $region27: #{dir_model_forward.49} parent=11 // pred_region
        _
      $region28: #{dir_model_forward.49} parent=11 // pred_fallthru
        _
      // Predicated region
      $region29: #{dir_model_forward.49} parent=11 // pred_check
        %p203 = pneg %p138
      $region30: #{dir_model_forward.49} parent=11 // pred_check_branch
        %205 = sbr.rel (%p203) target = $region32
      $region31: #{dir_model_forward.49} parent=11 // pred_region
        _
      $region32: #{dir_model_forward.49} parent=11 // pred_fallthru
        _
    $region12: #{dir_model_forward.49} parent=5 // pred_fallthru
      _
    %p206 = scmp.lt.s32.totalorder %s11, 2
    // Predicated region
    $region33: #{dir_model_forward.49} parent=5 // pred_check
      %p207 = pneg %p206
    $region34: #{dir_model_forward.49} parent=5 // pred_check_branch
      %209 = sbr.rel (%p207) target = $region36
    $region35: #{dir_model_forward.49} parent=5 // pred_region
      _
    $region36: #{dir_model_forward.49} parent=5 // pred_fallthru
      _
    %p210 = scmp.le.s32.totalorder 1, %s11
    %p211 = scmp.lt.s32.totalorder %s11, 3
    %p212 = pnand %p210, %p211
    %p213 = pneg %p212
    // Predicated region
    $region37: #{dir_model_forward.49} parent=5 // pred_check
      _
    $region38: #{dir_model_forward.49} parent=5 // pred_check_branch
      %215 = sbr.rel (%p212) target = $region40
    $region39: #{dir_model_forward.49} parent=5 // pred_region
      %s216 = ssub.s32 %s11, 1
      %s217 = smul.u32 4, %s21
      %p218 = scmp.lt.s32.totalorder %s217, 3
      %s219 = scalar_select %p218, %s217, 3
      %s220 = smul.addr %s219, 8
      %s221 = scalar_lea.vmem %s0, %s220
      %p222 = pneg %p49
      %p223 = pneg %p46
      %s224 = smul.u32 4, %s21
      %p225 = scmp.lt.s32.totalorder %s224, 3
      %s226 = scalar_select %p225, %s224, 3
      %s227 = smul.addr %s226, 8
      %s228 = scalar_lea.vmem %s1, %s227
      %p229 = pneg %p75
      %p230 = pneg %p72
      %p231 = pneg %p96
      %p232 = pneg %p93
      %p233 = pneg %p117
      %p234 = pneg %p114
      %p235 = pneg %p138
      %p236 = pneg %p135
      %p237 = pneg %p164
      %p238 = pneg %p161
      %s239 = smul.u32 4, %s21
      %p240 = scmp.lt.s32.totalorder %s239, 3
      %s241 = scalar_select %p240, %s239, 3
      %s242 = smul.addr %s241, 8
      %s243 = scalar_lea.vmem %s5, %s242
      %s244 = smul.u32 4, %s21
      %p245 = scmp.lt.s32.totalorder %s244, 3
      %s246 = scalar_select %p245, %s244, 3
      %s247 = smul.addr %s246, 8
      %s248 = scalar_lea.vmem %s0, %s247
      %s249 = smul.u32 4, %s21
      %s250 = smul.u32 4, %s21
      %p251 = scmp.lt.s32.totalorder %s250, 3
      %s252 = scalar_select %p251, %s250, 3
      %s253 = smul.addr %s252, 8
      %s254 = scalar_lea.vmem %s1, %s253
      %s255 = smul.u32 4, %s21
      %s256 = smul.u32 4, %s21
      %p257 = scmp.lt.s32.totalorder %s256, 3
      %s258 = scalar_select %p257, %s256, 3
      %s259 = smul.addr %s258, 8
      %s260 = scalar_lea.vmem %s5, %s259
      %s261 = smul.u32 4, %s21
      %p262 = scmp.eq.s32.totalorder %s20, 0
      %p263 = scmp.eq.s32.totalorder %s21, 0
      %p264 = pnand %p262, %p263
      %p265 = pneg %p264
      // Predicated region
      $region41: #{dir_model_forward.49} parent=39 // pred_check
        _
      $region42: #{dir_model_forward.49} parent=39 // pred_check_branch
        %267 = sbr.rel (%p264) target = $region44
      $region43: #{dir_model_forward.49} parent=39 // pred_region
        %268 = vst [vmem:[#allocation2] sm:$0x1] 0.0
        %269 = vst [vmem:[#allocation3] sm:$0x1] 0.0
        %270 = vst [vmem:[#allocation4] sm:$0x1] 0.0
        %271 = vst [vmem:[#allocation5] sm:$0x1] 0.0
      $region44: #{dir_model_forward.49} parent=39 // pred_fallthru
        _
      // Predicated region
      $region45: #{dir_model_forward.49} parent=39 // pred_check
        %p272 = pneg %p262
      $region46: #{dir_model_forward.49} parent=39 // pred_check_branch
        %274 = sbr.rel (%p272) target = $region48
      $region47: #{dir_model_forward.49} parent=39 // pred_region
        %v275 = vld [vmem:[%s248] sm:$0xff]
        %v276 = vld [vmem:[%s248 + $0x8] sm:$0xff]
        %v277 = vld [vmem:[%s248 + $0x10] sm:$0xff]
        %v278 = vld [vmem:[%s248 + $0x18] sm:$0xff]
        %v279 = vld [vmem:[%s254] sm:$0xff]
        %v280 = vld [vmem:[%s254 + $0x8] sm:$0xff]
        %v281 = vld [vmem:[%s254 + $0x10] sm:$0xff]
        %v282 = vld [vmem:[%s254 + $0x18] sm:$0xff]
        %v283 = vld [vmem:[#allocation2] sm:$0x1]
        %v284 = vadd.f32 %v275, %v276
        %v285 = vadd.f32 %v284, %v277
        %v286 = vadd.f32 %v285, %v278
        %v287 = vrot.slane %v286, 4
        %v288 = vadd.f32 %v286, %v287
        %v289 = vrot.slane %v288, 2
        %v290 = vadd.f32 %v288, %v289
        %v291 = vrot.slane %v290, 1
        %v292 = vadd.f32 %v290, %v291
        %v293 = vadd.f32 %v283, %v292
        %294 = vst [vmem:[#allocation2] sm:$0x1] %v293
        %v295 = vld [vmem:[#allocation3] sm:$0x1]
        %v296 = vmul.f32 %v275, %v275
        %v297 = vmul.f32 %v276, %v276
        %v298 = vmul.f32 %v277, %v277
        %v299 = vmul.f32 %v278, %v278
        %v300 = vadd.f32 %v296, %v297
        %v301 = vadd.f32 %v300, %v298
        %v302 = vadd.f32 %v301, %v299
        %v303 = vrot.slane %v302, 4
        %v304 = vadd.f32 %v302, %v303
        %v305 = vrot.slane %v304, 2
        %v306 = vadd.f32 %v304, %v305
        %v307 = vrot.slane %v306, 1
        %v308 = vadd.f32 %v306, %v307
        %v309 = vadd.f32 %v295, %v308
        %310 = vst [vmem:[#allocation3] sm:$0x1] %v309
        %v311 = vld [vmem:[#allocation4] sm:$0x1]
        %v312 = vadd.f32 %v279, %v280
        %v313 = vadd.f32 %v312, %v281
        %v314 = vadd.f32 %v313, %v282
        %v315 = vrot.slane %v314, 4
        %v316 = vadd.f32 %v314, %v315
        %v317 = vrot.slane %v316, 2
        %v318 = vadd.f32 %v316, %v317
        %v319 = vrot.slane %v318, 1
        %v320 = vadd.f32 %v318, %v319
        %v321 = vadd.f32 %v311, %v320
        %322 = vst [vmem:[#allocation4] sm:$0x1] %v321
        %v323 = vld [vmem:[#allocation5] sm:$0x1]
        %v324 = vmul.f32 %v279, %v279
        %v325 = vmul.f32 %v280, %v280
        %v326 = vmul.f32 %v281, %v281
        %v327 = vmul.f32 %v282, %v282
        %v328 = vadd.f32 %v324, %v325
        %v329 = vadd.f32 %v328, %v326
        %v330 = vadd.f32 %v329, %v327
        %v331 = vrot.slane %v330, 4
        %v332 = vadd.f32 %v330, %v331
        %v333 = vrot.slane %v332, 2
        %v334 = vadd.f32 %v332, %v333
        %v335 = vrot.slane %v334, 1
        %v336 = vadd.f32 %v334, %v335
        %v337 = vadd.f32 %v323, %v336
        %338 = vst [vmem:[#allocation5] sm:$0x1] %v337
        %339 = vst [vmem:[%s260] sm:$0xff] 0.0
        %340 = vst [vmem:[%s260 + $0x8] sm:$0xff] 0.0
        %341 = vst [vmem:[%s260 + $0x10] sm:$0xff] 0.0
        %342 = vst [vmem:[%s260 + $0x18] sm:$0xff] 0.0
      $region48: #{dir_model_forward.49} parent=39 // pred_fallthru
        _
      %p343 = scmp.eq.s32.totalorder %s20, 1
      // Predicated region
      $region49: #{dir_model_forward.49} parent=39 // pred_check
        %p344 = pneg %p343
      $region50: #{dir_model_forward.49} parent=39 // pred_check_branch
        %346 = sbr.rel (%p344) target = $region52
      $region51: #{dir_model_forward.49} parent=39 // pred_region
        %v347 = vld [vmem:[#allocation2] sm:$0x1]
        %v348 = vmul.f32 %v347, 0.03125
        %v349 = vld [vmem:[#allocation3] sm:$0x1]
        %v350 = vmul.f32 %v349, 0.03125
        %v351 = vmul.f32 %v348, %v348
        %v352 = vsub.f32 %v350, %v351
        %v353 = vmax.f32 %v352, 0.0
        %v354 = vadd.f32 %v353, 1e-05
        %v355 = vrsqrt.pop %v354
        %v356 = vmul.f32 %v355, %v354
        %v357 = vmul.f32 %v356, %v355
        %v358 = vmul.f32 0.5, %v357
        %v359 = vsub.f32 1.5, %v358
        %v360 = vmul.f32 %v355, %v359
        %vm361 = vweird.f32 %v354
        %vm362 = vweird.f32 %v355
        %vm363 = vmor %vm361, %vm362
        %v364 = vsel %vm363, %v355, %v360
        %v365 = vld [vmem:[#allocation4] sm:$0x1]
        %v366 = vmul.f32 %v365, 0.03125
        %v367 = vld [vmem:[#allocation5] sm:$0x1]
        %v368 = vmul.f32 %v367, 0.03125
        %v369 = vmul.f32 %v366, %v366
        %v370 = vsub.f32 %v368, %v369
        %v371 = vmax.f32 %v370, 0.0
        %v372 = vadd.f32 %v371, 1e-05
        %v373 = vrsqrt.pop %v372
        %v374 = vmul.f32 %v373, %v372
        %v375 = vmul.f32 %v374, %v373
        %v376 = vmul.f32 0.5, %v375
        %v377 = vsub.f32 1.5, %v376
        %v378 = vmul.f32 %v373, %v377
        %vm379 = vweird.f32 %v372
        %vm380 = vweird.f32 %v373
        %vm381 = vmor %vm379, %vm380
        %v382 = vsel %vm381, %v373, %v378
        %v383 = vld [vmem:[%s248] sm:$0xff]
        %v384 = vld [vmem:[%s248 + $0x8] sm:$0xff]
        %v385 = vld [vmem:[%s248 + $0x10] sm:$0xff]
        %v386 = vld [vmem:[%s248 + $0x18] sm:$0xff]
        %v388 = vperm.slane %v348, 0
        %v390 = vsub.f32 %v383, %v388
        %v391 = vsub.f32 %v384, %v388
        %v392 = vsub.f32 %v385, %v388
        %v393 = vsub.f32 %v386, %v388
        %v395 = vperm.slane %v364, 0
        %v397 = vmul.f32 %v390, %v395
        %v398 = vmul.f32 %v391, %v395
        %v399 = vmul.f32 %v392, %v395
        %v400 = vmul.f32 %v393, %v395
        %v401 = vld [vmem:[%s254] sm:$0xff]
        %v402 = vld [vmem:[%s254 + $0x8] sm:$0xff]
        %v403 = vld [vmem:[%s254 + $0x10] sm:$0xff]
        %v404 = vld [vmem:[%s254 + $0x18] sm:$0xff]
        %v406 = vperm.slane %v366, 0
        %v408 = vsub.f32 %v401, %v406
        %v409 = vsub.f32 %v402, %v406
        %v410 = vsub.f32 %v403, %v406
        %v411 = vsub.f32 %v404, %v406
        %v413 = vperm.slane %v382, 0
        %v415 = vmul.f32 %v408, %v413
        %v416 = vmul.f32 %v409, %v413
        %v417 = vmul.f32 %v410, %v413
        %v418 = vmul.f32 %v411, %v413
        %v419 = vld [vmem:[%s2] sm:$0xff]
        %v420 = vld [vmem:[%s2 + $0x8] sm:$0xff]
        %v421 = vld [vmem:[%s2 + $0x10] sm:$0xff]
        %v422 = vld [vmem:[%s2 + $0x18] sm:$0xff]
        %v423 = vld [vmem:[%s2 + $0x20] sm:$0xff]
        %v424 = vld [vmem:[%s2 + $0x28] sm:$0xff]
        %v425 = vld [vmem:[%s2 + $0x30] sm:$0xff]
        %v426 = vld [vmem:[%s2 + $0x38] sm:$0xff]
        %v427 = vld [vmem:[%s2 + $0x40] sm:$0xff]
        %v428 = vld [vmem:[%s2 + $0x48] sm:$0xff]
        %v429 = vld [vmem:[%s2 + $0x50] sm:$0xff]
        %v430 = vld [vmem:[%s2 + $0x58] sm:$0xff]
        %v431 = vld [vmem:[%s2 + $0x60] sm:$0xff]
        %v432 = vld [vmem:[%s2 + $0x68] sm:$0xff]
        %v433 = vld [vmem:[%s2 + $0x70] sm:$0xff]
        %v434 = vld [vmem:[%s2 + $0x78] sm:$0xff]
        %v435 = vld [vmem:[%s3] sm:$0xff]
        %v436 = vld [vmem:[%s3 + $0x8] sm:$0xff]
        %v437 = vld [vmem:[%s3 + $0x10] sm:$0xff]
        %v438 = vld [vmem:[%s3 + $0x18] sm:$0xff]
        %v439 = vld [vmem:[%s3 + $0x20] sm:$0xff]
        %v440 = vld [vmem:[%s3 + $0x28] sm:$0xff]
        %v441 = vld [vmem:[%s3 + $0x30] sm:$0xff]
        %v442 = vld [vmem:[%s3 + $0x38] sm:$0xff]
        %v443 = vld [vmem:[%s3 + $0x40] sm:$0xff]
        %v444 = vld [vmem:[%s3 + $0x48] sm:$0xff]
        %v445 = vld [vmem:[%s3 + $0x50] sm:$0xff]
        %v446 = vld [vmem:[%s3 + $0x58] sm:$0xff]
        %v447 = vld [vmem:[%s3 + $0x60] sm:$0xff]
        %v448 = vld [vmem:[%s3 + $0x68] sm:$0xff]
        %v449 = vld [vmem:[%s3 + $0x70] sm:$0xff]
        %v450 = vld [vmem:[%s3 + $0x78] sm:$0xff]
        %451 = vmatpush.msra.mxu0 %v450
        %452 = vmatpush.msra.mxu0 %v449
        %453 = vmatpush.msra.mxu0 %v448
        %454 = vmatpush.msra.mxu0 %v447
        %455 = vmatpush.msra.mxu0 %v446
        %456 = vmatpush.msra.mxu0 %v445
        %457 = vmatpush.msra.mxu0 %v444
        %458 = vmatpush.msra.mxu0 %v443
        %459 = vmatpush.msra.mxu0 %v442
        %460 = vmatpush.msra.mxu0 %v441
        %461 = vmatpush.msra.mxu0 %v440
        %462 = vmatpush.msra.mxu0 %v439
        %463 = vmatpush.msra.mxu0 %v438
        %464 = vmatpush.msra.mxu0 %v437
        %465 = vmatpush.msra.mxu0 %v436
        %466 = vmatpush.msra.mxu0 %v435
        %467 = vmatmul.f32.gmra.mxu0 %v415
        %v468 = vpop.f32.mrf.mxu0
        %v469 = vadd.f32 0.0, %v468
        %470 = vmatmul.f32.gmra.mxu0 %v416
        %v471 = vpop.f32.mrf.mxu0
        %v472 = vadd.f32 0.0, %v471
        %473 = vmatmul.f32.gmra.mxu0 %v417
        %v474 = vpop.f32.mrf.mxu0
        %v475 = vadd.f32 0.0, %v474
        %476 = vmatmul.f32.gmra.mxu0 %v418
        %v477 = vpop.f32.mrf.mxu0
        %v478 = vadd.f32 0.0, %v477
        %479 = vdwg.mxu0
        %480 = vmatpush.msra.mxu0 %v434
        %481 = vmatpush.msra.mxu0 %v433
        %482 = vmatpush.msra.mxu0 %v432
        %483 = vmatpush.msra.mxu0 %v431
        %484 = vmatpush.msra.mxu0 %v430
        %485 = vmatpush.msra.mxu0 %v429
        %486 = vmatpush.msra.mxu0 %v428
        %487 = vmatpush.msra.mxu0 %v427
        %488 = vmatpush.msra.mxu0 %v426
        %489 = vmatpush.msra.mxu0 %v425
        %490 = vmatpush.msra.mxu0 %v424
        %491 = vmatpush.msra.mxu0 %v423
        %492 = vmatpush.msra.mxu0 %v422
        %493 = vmatpush.msra.mxu0 %v421
        %494 = vmatpush.msra.mxu0 %v420
        %495 = vmatpush.msra.mxu0 %v419
        %496 = vmatmul.f32.gmra.mxu0 %v397
        %v497 = vpop.f32.mrf.mxu0
        %v498 = vadd.f32 %v469, %v497
        %499 = vmatmul.f32.gmra.mxu0 %v398
        %v500 = vpop.f32.mrf.mxu0
        %v501 = vadd.f32 %v472, %v500
        %502 = vmatmul.f32.gmra.mxu0 %v399
        %v503 = vpop.f32.mrf.mxu0
        %v504 = vadd.f32 %v475, %v503
        %505 = vmatmul.f32.gmra.mxu0 %v400
        %v506 = vpop.f32.mrf.mxu0
        %v507 = vadd.f32 %v478, %v506
        %508 = vdwg.mxu0
        %v509 = vld [vmem:[%s4] sm:$0x1]
        %v511 = vperm.slane %v509, 0
        %v513 = vadd.f32 %v498, %v511
        %v514 = vadd.f32 %v501, %v511
        %v515 = vadd.f32 %v504, %v511
        %v516 = vadd.f32 %v507, %v511
        %517 = vst [vmem:[%s260] sm:$0xff] %v513
        %518 = vst [vmem:[%s260 + $0x8] sm:$0xff] %v514
        %519 = vst [vmem:[%s260 + $0x10] sm:$0xff] %v515
        %520 = vst [vmem:[%s260 + $0x18] sm:$0xff] %v516
      $region52: #{dir_model_forward.49} parent=39 // pred_fallthru
        _
      %s521 = smul.u32 4, %s21
      %p522 = scmp.lt.s32.totalorder %s521, 3
      %s523 = scalar_select %p522, %s521, 3
      %s524 = smul.addr %s523, 8
      %s525 = scalar_lea.vmem %s5, %s524
      // Predicated region
      $region53: #{dir_model_forward.49} parent=39 // pred_check
        %p526 = pneg %p161
      $region54: #{dir_model_forward.49} parent=39 // pred_check_branch
        %528 = sbr.rel (%p526) target = $region56
      $region55: #{dir_model_forward.49} parent=39 // pred_region
        %s529 = smul.u32 4, %s21
      $region56: #{dir_model_forward.49} parent=39 // pred_fallthru
        _
      // Predicated region
      $region57: #{dir_model_forward.49} parent=39 // pred_check
        %p530 = pneg %p161
      $region58: #{dir_model_forward.49} parent=39 // pred_check_branch
        %532 = sbr.rel (%p530) target = $region60
      $region59: #{dir_model_forward.49} parent=39 // pred_region
        %s533 = smul.u32 4, %s21
        %p534 = scmp.lt.s32.totalorder %s533, 3
        %s535 = scalar_select %p534, %s533, 3
        %s536 = smul.addr %s535, 8
        %s537 = scalar_lea.vmem %s5, %s536
      $region60: #{dir_model_forward.49} parent=39 // pred_fallthru
        _
    $region40: #{dir_model_forward.49} parent=5 // pred_fallthru
      _
    %p538 = scmp.le.s32.totalorder 2, %s11
    // Predicated region
    $region61: #{dir_model_forward.49} parent=5 // pred_check
      %p539 = pneg %p538
    $region62: #{dir_model_forward.49} parent=5 // pred_check_branch
      %541 = sbr.rel (%p539) target = $region64
    $region63: #{dir_model_forward.49} parent=5 // pred_region
      %s542 = ssub.s32 %s11, 2
    $region64: #{dir_model_forward.49} parent=5 // pred_fallthru
      _
  $region6: #{dir_model_forward.49} parent=0 // loop_footer
    %s15 = sadd.s32 1, %s11
  $region7: #{dir_model_forward.49} parent=0 // loop_footer_branch
    %10 = sbr.rel target = $region3
  $region8: #{dir_model_forward.49} parent=0 // loop_exit
    _

// kernel: dir_model_forward.47
$region0: #{dir_model_forward.47}
  #allocation0 [shape = 'u32[]', space=smem, size = 0x4, offset = 0x4, fixed_abs, tag = 'smem constant byte address 0x4 - core index']
  #allocation1 [shape = 'u32[72,128]{1,0:T(1,128)}', space=vmem, size = 0x9000, scoped, tag = 'internal scratch']
  #allocation2 [shape = 'f32[32,32]{1,0:T(8,128)}', space=vmem, size = 0x4000, scoped, tag = 'scratch operand']
  %s0 = inlined_call_operand.vmem [shape: bf16[2,32,64], index: 0, kind: input, shape index: {}]
  %s1 = inlined_call_operand.vmem [shape: bf16[2,64,32], index: 1, kind: input, shape index: {}]
  %s2 = inlined_call_operand.vmem [shape: f32[2,32,32], index: 2, kind: output, shape index: {}]
  %s3 = sld [smem:[#allocation0]]
  $region45: #{dir_model_forward.47} parent=0
    _
  %s5 = ssub.s32 1, %s3
  %s6 = scalar_select 0, %s5, %s3
  loop: start=0, step=1, limit=4
  $region2: #{dir_model_forward.47} parent=0 // loop_pre_header
    _
  $region3: #{dir_model_forward.47} parent=0 // loop_header
    %s8 = sphi 0, %s12
    %p9 = scmp.ge.s32.totalorder %s8, 4
    %s15 = sphi 0, %s34
    %s16 = sphi 0, %s30
    %s17 = sphi 0, %s26
    %s18 = sphi 0, %s15
    %s19 = sphi 0, %s16
    %s20 = sphi 0, %s17
    %s21 = sphi 0, %s18
    %s22 = sphi 0, %s19
    %s23 = sphi 0, %s20
    %s41 = sphi 0, %s43
    %s44 = sphi 0, %s41
    %s45 = sphi 0, %s44
    %s61 = sphi 0, %s45
    %s69 = sphi 0, %s71
    %s72 = sphi 0, %s69
    %s73 = sphi 0, %s72
    %s89 = sphi 0, %s73
    %s97 = sphi 0, %s99
    %s100 = sphi 0, %s97
    %s101 = sphi 0, %s100
    %s117 = sphi 0, %s101
  $region4: #{dir_model_forward.47} parent=0 // loop_header_branch
    %11 = sbr.rel (%p9) target = $region8
  $region5: #{dir_model_forward.47} parent=0 // loop_body
    %s13 = ssub.s32 %s8, 1
    %s14 = ssub.s32 %s8, 2
    %s24 = sadd.s32 1, %s17
    %p25 = scmp.ge.s32.totalorder %s24, 1
    %s26 = scalar_select %p25, 0, %s24
    %s27 = sadd.s32 1, %s16
    %s28 = scalar_select %p25, %s27, %s16
    %p29 = scmp.ge.s32.totalorder %s28, 1
    %s30 = scalar_select %p29, 0, %s28
    %s31 = sadd.s32 1, %s15
    %s32 = scalar_select %p29, %s31, %s15
    %p33 = scmp.ge.s32.totalorder %s32, 2
    %s34 = scalar_select %p33, 0, %s32
    %s35 = ssub.s32 %s15, %s34
    %s36 = ssub.s32 %s16, %s30
    %s37 = sor.u32 %s35, %s36
    %s38 = ssub.s32 %s17, %s26
    %s39 = sor.u32 %s37, %s38
    %p40 = scmp.eq.s32.totalorder %s39, 0
    %s42 = sadd.s32 %s41, 1
    %s43 = scalar_select %p40, %s41, %s42
    %p46 = pneg %p40
    %p47 = scmp.eq.s32.totalorder %s8, 1
    %p48 = por %p46, %p47
    %p49 = scmp.ne.s32.totalorder %s41, %s44
    %p50 = scmp.eq.s32.totalorder %s8, 0
    %p51 = por %p49, %p50
    %p52 = scmp.ne.s32.totalorder %s41, %s44
    %p53 = scmp.eq.s32.totalorder %s13, 1
    %p54 = por %p52, %p53
    %p55 = scmp.ne.s32.totalorder %s44, %s45
    %p56 = scmp.eq.s32.totalorder %s13, 0
    %p57 = por %p55, %p56
    %p58 = scmp.ne.s32.totalorder %s44, %s45
    %p59 = scmp.eq.s32.totalorder %s14, 1
    %p60 = por %p58, %p59
    %p62 = scmp.ne.s32.totalorder %s45, %s61
    %p63 = scmp.eq.s32.totalorder %s14, 0
    %p64 = por %p62, %p63
    %s65 = ssub.s32 %s15, %s34
    %s66 = ssub.s32 %s17, %s26
    %s67 = sor.u32 %s65, %s66
    %p68 = scmp.eq.s32.totalorder %s67, 0
    %s70 = sadd.s32 %s69, 1
    %s71 = scalar_select %p68, %s69, %s70
    %p74 = pneg %p68
    %p75 = scmp.eq.s32.totalorder %s8, 1
    %p76 = por %p74, %p75
    %p77 = scmp.ne.s32.totalorder %s69, %s72
    %p78 = scmp.eq.s32.totalorder %s8, 0
    %p79 = por %p77, %p78
    %p80 = scmp.ne.s32.totalorder %s69, %s72
    %p81 = scmp.eq.s32.totalorder %s13, 1
    %p82 = por %p80, %p81
    %p83 = scmp.ne.s32.totalorder %s72, %s73
    %p84 = scmp.eq.s32.totalorder %s13, 0
    %p85 = por %p83, %p84
    %p86 = scmp.ne.s32.totalorder %s72, %s73
    %p87 = scmp.eq.s32.totalorder %s14, 1
    %p88 = por %p86, %p87
    %p90 = scmp.ne.s32.totalorder %s73, %s89
    %p91 = scmp.eq.s32.totalorder %s14, 0
    %p92 = por %p90, %p91
    %s93 = ssub.s32 %s15, %s34
    %s94 = ssub.s32 %s16, %s30
    %s95 = sor.u32 %s93, %s94
    %p96 = scmp.eq.s32.totalorder %s95, 0
    %s98 = sadd.s32 %s97, 1
    %s99 = scalar_select %p96, %s97, %s98
    %p102 = pneg %p96
    %p103 = scmp.eq.s32.totalorder %s8, 1
    %p104 = por %p102, %p103
    %p105 = scmp.ne.s32.totalorder %s97, %s100
    %p106 = scmp.eq.s32.totalorder %s8, 0
    %p107 = por %p105, %p106
    %p108 = scmp.ne.s32.totalorder %s97, %s100
    %p109 = scmp.eq.s32.totalorder %s13, 1
    %p110 = por %p108, %p109
    %p111 = scmp.ne.s32.totalorder %s100, %s101
    %p112 = scmp.eq.s32.totalorder %s13, 0
    %p113 = por %p111, %p112
    %p114 = scmp.ne.s32.totalorder %s100, %s101
    %p115 = scmp.eq.s32.totalorder %s14, 1
    %p116 = por %p114, %p115
    %p118 = scmp.ne.s32.totalorder %s101, %s117
    %p119 = scmp.eq.s32.totalorder %s14, 0
    %p120 = por %p118, %p119
    %p121 = scmp.le.s32.totalorder 1, %s8
    %p122 = scmp.lt.s32.totalorder %s8, 3
    %p123 = pnand %p121, %p122
    %p124 = pneg %p123
    // Predicated region
    $region9: #{dir_model_forward.47} parent=5 // pred_check
      _
    $region10: #{dir_model_forward.47} parent=5 // pred_check_branch
      %126 = sbr.rel (%p123) target = $region12
    $region11: #{dir_model_forward.47} parent=5 // pred_region
      %s127 = ssub.s32 %s8, 1
    $region12: #{dir_model_forward.47} parent=5 // pred_fallthru
      _
    %p128 = scmp.lt.s32.totalorder %s8, 2
    // Predicated region
    $region13: #{dir_model_forward.47} parent=5 // pred_check
      %p129 = pneg %p128
    $region14: #{dir_model_forward.47} parent=5 // pred_check_branch
      %131 = sbr.rel (%p129) target = $region16
    $region15: #{dir_model_forward.47} parent=5 // pred_region
      // Predicated region
      $region17: #{dir_model_forward.47} parent=15 // pred_check
        %p132 = pneg %p51
      $region18: #{dir_model_forward.47} parent=15 // pred_check_branch
        %134 = sbr.rel (%p132) target = $region20
      $region19: #{dir_model_forward.47} parent=15 // pred_region
        %s135 = smul.u32 4, %s16
        %p136 = scmp.lt.s32.totalorder %s15, 1
        %s137 = scalar_select %p136, %s15, 1
        %p138 = scmp.lt.s32.totalorder %s135, 3
        %s139 = scalar_select %p138, %s135, 3
        %p140 = scmp.lt.s32.totalorder %s17, 0
        %s141 = scalar_select %p140, %s17, 0
        %s142 = sadd.s32 %s141, %s139
        %s143 = smul.addr %s137, 4
        %s144 = sadd.s32 %s142, %s143
        %s145 = smul.addr %s144, 4
        %s146 = scalar_lea.vmem %s0, %s145
        %s147 = smul.u32 4, %s16
      $region20: #{dir_model_forward.47} parent=15 // pred_fallthru
        _
      // Predicated region
      $region21: #{dir_model_forward.47} parent=15 // pred_check
        %p148 = pneg %p79
      $region22: #{dir_model_forward.47} parent=15 // pred_check_branch
        %150 = sbr.rel (%p148) target = $region24
      $region23: #{dir_model_forward.47} parent=15 // pred_region
        %s151 = smul.u32 8, %s17
        %p152 = scmp.lt.s32.totalorder %s15, 1
        %s153 = scalar_select %p152, %s15, 1
        %p154 = scmp.lt.s32.totalorder %s151, 7
        %s155 = scalar_select %p154, %s151, 7
        %s156 = smul.addr %s153, 8
        %s157 = sadd.s32 %s155, %s156
        %s158 = smul.addr %s157, 4
        %s159 = scalar_lea.vmem %s1, %s158
        %s160 = smul.u32 8, %s17
      $region24: #{dir_model_forward.47} parent=15 // pred_fallthru
        _
    $region16: #{dir_model_forward.47} parent=5 // pred_fallthru
      _
    %p161 = scmp.le.s32.totalorder 1, %s8
    %p162 = scmp.lt.s32.totalorder %s8, 3
    %p163 = pnand %p161, %p162
    %p164 = pneg %p163
    // Predicated region
    $region25: #{dir_model_forward.47} parent=5 // pred_check
      _
    $region26: #{dir_model_forward.47} parent=5 // pred_check_branch
      %166 = sbr.rel (%p163) target = $region28
    $region27: #{dir_model_forward.47} parent=5 // pred_region
      %s167 = ssub.s32 %s8, 1
      %s168 = smul.u32 4, %s19
      %p169 = scmp.lt.s32.totalorder %s18, 1
      %s170 = scalar_select %p169, %s18, 1
      %p171 = scmp.lt.s32.totalorder %s168, 3
      %s172 = scalar_select %p171, %s168, 3
      %p173 = scmp.lt.s32.totalorder %s20, 0
      %s174 = scalar_select %p173, %s20, 0
      %s175 = sadd.s32 %s174, %s172
      %s176 = smul.addr %s170, 4
      %s177 = sadd.s32 %s175, %s176
      %s178 = smul.addr %s177, 4
      %s179 = scalar_lea.vmem %s0, %s178
      %p180 = pneg %p57
      %p181 = pneg %p54
      %s182 = smul.u32 8, %s20
      %p183 = scmp.lt.s32.totalorder %s18, 1
      %s184 = scalar_select %p183, %s18, 1
      %p185 = scmp.lt.s32.totalorder %s182, 7
      %s186 = scalar_select %p185, %s182, 7
      %s187 = smul.addr %s184, 8
      %s188 = sadd.s32 %s186, %s187
      %s189 = smul.addr %s188, 4
      %s190 = scalar_lea.vmem %s1, %s189
      %p191 = pneg %p85
      %p192 = pneg %p82
      %p193 = pneg %p113
      %p194 = pneg %p110
      %s195 = smul.u32 4, %s19
      %p196 = scmp.lt.s32.totalorder %s18, 1
      %s197 = scalar_select %p196, %s18, 1
      %p198 = scmp.lt.s32.totalorder %s195, 3
      %s199 = scalar_select %p198, %s195, 3
      %s200 = smul.addr %s197, 4
      %s201 = sadd.s32 %s199, %s200
      %s202 = smul.addr %s201, 8
      %s203 = scalar_lea.vmem %s2, %s202
      %s204 = smul.u32 4, %s19
      %p205 = scmp.lt.s32.totalorder %s18, 1
      %s206 = scalar_select %p205, %s18, 1
      %p207 = scmp.lt.s32.totalorder %s204, 3
      %s208 = scalar_select %p207, %s204, 3
      %p209 = scmp.lt.s32.totalorder %s20, 0
      %s210 = scalar_select %p209, %s20, 0
      %s211 = sadd.s32 %s210, %s208
      %s212 = smul.addr %s206, 4
      %s213 = sadd.s32 %s211, %s212
      %s214 = smul.addr %s213, 4
      %s215 = scalar_lea.vmem %s0, %s214
      %s216 = smul.u32 4, %s19
      %s217 = smul.u32 8, %s20
      %p218 = scmp.lt.s32.totalorder %s18, 1
      %s219 = scalar_select %p218, %s18, 1
      %p220 = scmp.lt.s32.totalorder %s217, 7
      %s221 = scalar_select %p220, %s217, 7
      %s222 = smul.addr %s219, 8
      %s223 = sadd.s32 %s221, %s222
      %s224 = smul.addr %s223, 4
      %s225 = scalar_lea.vmem %s1, %s224
      %s226 = smul.u32 8, %s20
      %s227 = smul.u32 4, %s19
      %p228 = scmp.lt.s32.totalorder %s18, 1
      %s229 = scalar_select %p228, %s18, 1
      %p230 = scmp.lt.s32.totalorder %s227, 3
      %s231 = scalar_select %p230, %s227, 3
      %s232 = smul.addr %s229, 4
      %s233 = sadd.s32 %s231, %s232
      %s234 = smul.addr %s233, 8
      %s235 = scalar_lea.vmem %s2, %s234
      %s236 = smul.u32 4, %s19
      %p238 = scmp.eq.s32.totalorder %s20, 0
      // Predicated region
      $region29: #{dir_model_forward.47} parent=27 // pred_check
        %p239 = pneg %p238
      $region30: #{dir_model_forward.47} parent=27 // pred_check_branch
        %241 = sbr.rel (%p239) target = $region32
      $region31: #{dir_model_forward.47} parent=27 // pred_region
        %vm242 = vcmask 261120
        %243 = vst.msk [vmem:[#allocation2] sm:$0xff] %vm242, 0.0
        %244 = vst.msk [vmem:[#allocation2 + $0x8] sm:$0xff] %vm242, 0.0
        %245 = vst.msk [vmem:[#allocation2 + $0x10] sm:$0xff] %vm242, 0.0
        %246 = vst.msk [vmem:[#allocation2 + $0x18] sm:$0xff] %vm242, 0.0
      $region32: #{dir_model_forward.47} parent=27 // pred_fallthru
        _
      %v247 = vld [vmem:[#allocation2] sm:$0xff]
      %v248 = vld [vmem:[#allocation2 + $0x8] sm:$0xff]
      %v249 = vld [vmem:[#allocation2 + $0x10] sm:$0xff]
      %v250 = vld [vmem:[#allocation2 + $0x18] sm:$0xff]
      %v251 = vld [vmem:[%s215] sm:$0xf]
      %v252 = vld [vmem:[%s215 + $0x4] sm:$0xf]
      %v253 = vld [vmem:[%s215 + $0x8] sm:$0xf]
      %v254 = vld [vmem:[%s215 + $0xc] sm:$0xf]
      %v255 = vld [vmem:[%s225] sm:$0xf]
      %v256 = vld [vmem:[%s225 + $0x4] sm:$0xf]
      %v257 = vld [vmem:[%s225 + $0x8] sm:$0xf]
      %v258 = vld [vmem:[%s225 + $0xc] sm:$0xf]
      %v259 = vld [vmem:[%s225 + $0x10] sm:$0xf]
      %v260 = vld [vmem:[%s225 + $0x14] sm:$0xf]
      %v261 = vld [vmem:[%s225 + $0x18] sm:$0xf]
      %v262 = vld [vmem:[%s225 + $0x1c] sm:$0xf]
      %v267 = vunpack.c.l.b16 %v251
      %v268 = vunpack.c.l.b16 %v252
      %v269 = vunpack.c.l.b16 %v253
      %v270 = vunpack.c.l.b16 %v254
      %v271 = vpack.c.b16 %v268, %v267
      %v272 = vpack.c.b16 %v270, %v269
      %v281 = vunpack.c.l.b16 %v255
      %v282 = vunpack.c.l.b16 %v256
      %v283 = vunpack.c.l.b16 %v257
      %v284 = vunpack.c.l.b16 %v258
      %v285 = vunpack.c.l.b16 %v259
      %v286 = vunpack.c.l.b16 %v260
      %v287 = vunpack.c.l.b16 %v261
      %v288 = vunpack.c.l.b16 %v262
      %v289 = vpack.c.b16 %v282, %v281
      %v290 = vpack.c.b16 %v284, %v283
      %v291 = vpack.c.b16 %v286, %v285
      %v292 = vpack.c.b16 %v288, %v287
      %vm297 = vcmask 523264
      %v299 = vsel %vm297, %v271, 0
      %v302 = vsel %vm297, %v272, 0
      %304 = vmatpush.bf16.msra.mxu0 0
      %305 = vmatpush.bf16.msra.mxu0 0
      %306 = vmatpush.bf16.msra.mxu0 0
      %307 = vmatpush.bf16.msra.mxu0 0
      %308 = vmatpush.bf16.msra.mxu0 %v292
      %309 = vmatpush.bf16.msra.mxu0 %v291
      %310 = vmatpush.bf16.msra.mxu0 %v290
      %311 = vmatpush.bf16.msra.mxu0 %v289
      %312 = vmatmul.bf16.gmra.mxu0 %v299
      %v313 = vpop.f32.mrf.mxu0
      %v314 = vadd.f32 0.0, %v313
      %v315 = vpop.f32.mrf.mxu0
      %v316 = vadd.f32 0.0, %v315
      %317 = vmatmul.bf16.gmra.mxu0 %v302
      %v318 = vpop.f32.mrf.mxu0
      %v319 = vadd.f32 0.0, %v318
      %v320 = vpop.f32.mrf.mxu0
      %v321 = vadd.f32 0.0, %v320
      %322 = vdwg.mxu0
      %v323 = vadd.f32 %v247, %v314
      %v324 = vadd.f32 %v248, %v316
      %v325 = vadd.f32 %v249, %v319
      %v326 = vadd.f32 %v250, %v321
      %vm327 = vcmask 261120
      %328 = vst.msk [vmem:[#allocation2] sm:$0xff] %vm327, %v323
      %329 = vst.msk [vmem:[#allocation2 + $0x8] sm:$0xff] %vm327, %v324
      %330 = vst.msk [vmem:[#allocation2 + $0x10] sm:$0xff] %vm327, %v325
      %331 = vst.msk [vmem:[#allocation2 + $0x18] sm:$0xff] %vm327, %v326
      %v332 = vld [vmem:[#allocation2] sm:$0xff]
      %v333 = vld [vmem:[#allocation2 + $0x8] sm:$0xff]
      %v334 = vld [vmem:[#allocation2 + $0x10] sm:$0xff]
      %v335 = vld [vmem:[#allocation2 + $0x18] sm:$0xff]
      %336 = vst.msk [vmem:[%s235] sm:$0xff] %vm327, %v332
      %337 = vst.msk [vmem:[%s235 + $0x8] sm:$0xff] %vm327, %v333
      %338 = vst.msk [vmem:[%s235 + $0x10] sm:$0xff] %vm327, %v334
      %339 = vst.msk [vmem:[%s235 + $0x18] sm:$0xff] %vm327, %v335
      %s340 = smul.u32 4, %s19
      %p341 = scmp.lt.s32.totalorder %s18, 1
      %s342 = scalar_select %p341, %s18, 1
      %p343 = scmp.lt.s32.totalorder %s340, 3
      %s344 = scalar_select %p343, %s340, 3
      %s345 = smul.addr %s342, 4
      %s346 = sadd.s32 %s344, %s345
      %s347 = smul.addr %s346, 8
      %s348 = scalar_lea.vmem %s2, %s347
      // Predicated region
      $region33: #{dir_model_forward.47} parent=27 // pred_check
        %p349 = pneg %p110
      $region34: #{dir_model_forward.47} parent=27 // pred_check_branch
        %351 = sbr.rel (%p349) target = $region36
      $region35: #{dir_model_forward.47} parent=27 // pred_region
        %s352 = smul.u32 4, %s19
      $region36: #{dir_model_forward.47} parent=27 // pred_fallthru
        _
    $region28: #{dir_model_forward.47} parent=5 // pred_fallthru
      _
    %p353 = scmp.le.s32.totalorder 2, %s8
    // Predicated region
    $region37: #{dir_model_forward.47} parent=5 // pred_check
      %p354 = pneg %p353
    $region38: #{dir_model_forward.47} parent=5 // pred_check_branch
      %356 = sbr.rel (%p354) target = $region40
    $region39: #{dir_model_forward.47} parent=5 // pred_region
      %s357 = ssub.s32 %s8, 2
      // Predicated region
      $region41: #{dir_model_forward.47} parent=39 // pred_check
        %p358 = pneg %p116
      $region42: #{dir_model_forward.47} parent=39 // pred_check_branch
        %360 = sbr.rel (%p358) target = $region44
      $region43: #{dir_model_forward.47} parent=39 // pred_region
        %s361 = smul.u32 4, %s22
        %p362 = scmp.lt.s32.totalorder %s21, 1
        %s363 = scalar_select %p362, %s21, 1
        %p364 = scmp.lt.s32.totalorder %s361, 3
        %s365 = scalar_select %p364, %s361, 3
        %s366 = smul.addr %s363, 4
        %s367 = sadd.s32 %s365, %s366
        %s368 = smul.addr %s367, 8
        %s369 = scalar_lea.vmem %s2, %s368
      $region44: #{dir_model_forward.47} parent=39 // pred_fallthru
        _
    $region40: #{dir_model_forward.47} parent=5 // pred_fallthru
      _
  $region6: #{dir_model_forward.47} parent=0 // loop_footer
    %s12 = sadd.s32 1, %s8
  $region7: #{dir_model_forward.47} parent=0 // loop_footer_branch
    %7 = sbr.rel target = $region3
  $region8: #{dir_model_forward.47} parent=0 // loop_exit
    _

// kernel: dir_model_forward.50
$region0: #{dir_model_forward.50}
  #allocation0 [shape = 'u32[]', space=smem, size = 0x4, offset = 0x4, fixed_abs, tag = 'smem constant byte address 0x4 - core index']
  #allocation1 [shape = 'u32[72,128]{1,0:T(1,128)}', space=vmem, size = 0x9000, scoped, tag = 'internal scratch']
  #allocation2 [shape = 'f32[1,128]{1,0:T(1,128)}', space=vmem, size = 0x200, scoped, tag = 'scratch operand']
  #allocation3 [shape = 'f32[1,128]{1,0:T(1,128)}', space=vmem, size = 0x200, scoped, tag = 'scratch operand']
  #allocation4 [shape = 'f32[1,128]{1,0:T(1,128)}', space=vmem, size = 0x200, scoped, tag = 'scratch operand']
  #allocation5 [shape = 'f32[1,128]{1,0:T(1,128)}', space=vmem, size = 0x200, scoped, tag = 'scratch operand']
  %s0 = inlined_call_operand.vmem [shape: f32[16,128], index: 0, kind: input, shape index: {}]
  %s1 = inlined_call_operand.vmem [shape: f32[16,128], index: 1, kind: input, shape index: {}]
  %s2 = inlined_call_operand.vmem [shape: f32[128,128], index: 2, kind: input, shape index: {}]
  %s3 = inlined_call_operand.vmem [shape: f32[128,128], index: 3, kind: input, shape index: {}]
  %s4 = inlined_call_operand.vmem [shape: f32[1,128], index: 4, kind: input, shape index: {}]
  %s5 = inlined_call_operand.vmem [shape: f32[16,128], index: 5, kind: output, shape index: {}]
  %s6 = sld [smem:[#allocation0]]
  $region65: #{dir_model_forward.50} parent=0
    _
  %s8 = ssub.s32 1, %s6
  %s9 = scalar_select 0, %s8, %s6
  loop: start=0, step=1, limit=4
  $region2: #{dir_model_forward.50} parent=0 // loop_pre_header
    _
  $region3: #{dir_model_forward.50} parent=0 // loop_header
    %s11 = sphi 0, %s15
    %p12 = scmp.ge.s32.totalorder %s11, 4
    %s18 = sphi 0, %s30
    %s19 = sphi 0, %s26
    %s20 = sphi 0, %s18
    %s21 = sphi 0, %s19
    %s22 = sphi 0, %s20
    %s23 = sphi 0, %s21
    %s33 = sphi 0, %s35
    %s36 = sphi 0, %s33
    %s37 = sphi 0, %s36
    %s53 = sphi 0, %s37
    %s59 = sphi 0, %s61
    %s62 = sphi 0, %s59
    %s63 = sphi 0, %s62
    %s79 = sphi 0, %s63
    %s83 = sphi 0, %s83
    %s85 = sphi 0, %s83
    %s86 = sphi 0, %s85
    %s100 = sphi 0, %s86
    %s104 = sphi 0, %s104
    %s106 = sphi 0, %s104
    %s107 = sphi 0, %s106
    %s121 = sphi 0, %s107
    %s125 = sphi 0, %s125
    %s127 = sphi 0, %s125
    %s128 = sphi 0, %s127
    %s142 = sphi 0, %s128
    %s148 = sphi 0, %s150
    %s151 = sphi 0, %s148
    %s152 = sphi 0, %s151
    %s168 = sphi 0, %s152
  $region4: #{dir_model_forward.50} parent=0 // loop_header_branch
    %14 = sbr.rel (%p12) target = $region8
  $region5: #{dir_model_forward.50} parent=0 // loop_body
    %s16 = ssub.s32 %s11, 1
    %s17 = ssub.s32 %s11, 2
    %s24 = sadd.s32 1, %s19
    %p25 = scmp.ge.s32.totalorder %s24, 1
    %s26 = scalar_select %p25, 0, %s24
    %s27 = sadd.s32 1, %s18
    %s28 = scalar_select %p25, %s27, %s18
    %p29 = scmp.ge.s32.totalorder %s28, 2
    %s30 = scalar_select %p29, 0, %s28
    %s31 = ssub.s32 %s19, %s26
    %p32 = scmp.eq.s32.totalorder %s31, 0
    %s34 = sadd.s32 %s33, 1
    %s35 = scalar_select %p32, %s33, %s34
    %p38 = pneg %p32
    %p39 = scmp.eq.s32.totalorder %s11, 1
    %p40 = por %p38, %p39
    %p41 = scmp.ne.s32.totalorder %s33, %s36
    %p42 = scmp.eq.s32.totalorder %s11, 0
    %p43 = por %p41, %p42
    %p44 = scmp.ne.s32.totalorder %s33, %s36
    %p45 = scmp.eq.s32.totalorder %s16, 1
    %p46 = por %p44, %p45
    %p47 = scmp.ne.s32.totalorder %s36, %s37
    %p48 = scmp.eq.s32.totalorder %s16, 0
    %p49 = por %p47, %p48
    %p50 = scmp.ne.s32.totalorder %s36, %s37
    %p51 = scmp.eq.s32.totalorder %s17, 1
    %p52 = por %p50, %p51
    %p54 = scmp.ne.s32.totalorder %s37, %s53
    %p55 = scmp.eq.s32.totalorder %s17, 0
    %p56 = por %p54, %p55
    %s57 = ssub.s32 %s19, %s26
    %p58 = scmp.eq.s32.totalorder %s57, 0
    %s60 = sadd.s32 %s59, 1
    %s61 = scalar_select %p58, %s59, %s60
    %p64 = pneg %p58
    %p65 = scmp.eq.s32.totalorder %s11, 1
    %p66 = por %p64, %p65
    %p67 = scmp.ne.s32.totalorder %s59, %s62
    %p68 = scmp.eq.s32.totalorder %s11, 0
    %p69 = por %p67, %p68
    %p70 = scmp.ne.s32.totalorder %s59, %s62
    %p71 = scmp.eq.s32.totalorder %s16, 1
    %p72 = por %p70, %p71
    %p73 = scmp.ne.s32.totalorder %s62, %s63
    %p74 = scmp.eq.s32.totalorder %s16, 0
    %p75 = por %p73, %p74
    %p76 = scmp.ne.s32.totalorder %s62, %s63
    %p77 = scmp.eq.s32.totalorder %s17, 1
    %p78 = por %p76, %p77
    %p80 = scmp.ne.s32.totalorder %s63, %s79
    %p81 = scmp.eq.s32.totalorder %s17, 0
    %p82 = por %p80, %p81
    %s84 = sadd.s32 %s83, 1
    %p87 = scmp.eq.s32.totalorder %s11, 1
    %p88 = scmp.ne.s32.totalorder %s83, %s85
    %p89 = scmp.eq.s32.totalorder %s11, 0
    %p90 = por %p88, %p89
    %p91 = scmp.ne.s32.totalorder %s83, %s85
    %p92 = scmp.eq.s32.totalorder %s16, 1
    %p93 = por %p91, %p92
    %p94 = scmp.ne.s32.totalorder %s85, %s86
    %p95 = scmp.eq.s32.totalorder %s16, 0
    %p96 = por %p94, %p95
    %p97 = scmp.ne.s32.totalorder %s85, %s86
    %p98 = scmp.eq.s32.totalorder %s17, 1
    %p99 = por %p97, %p98
    %p101 = scmp.ne.s32.totalorder %s86, %s100
    %p102 = scmp.eq.s32.totalorder %s17, 0
    %p103 = por %p101, %p102
    %s105 = sadd.s32 %s104, 1
    %p108 = scmp.eq.s32.totalorder %s11, 1
    %p109 = scmp.ne.s32.totalorder %s104, %s106
    %p110 = scmp.eq.s32.totalorder %s11, 0
    %p111 = por %p109, %p110
    %p112 = scmp.ne.s32.totalorder %s104, %s106
    %p113 = scmp.eq.s32.totalorder %s16, 1
    %p114 = por %p112, %p113
    %p115 = scmp.ne.s32.totalorder %s106, %s107
    %p116 = scmp.eq.s32.totalorder %s16, 0
    %p117 = por %p115, %p116
    %p118 = scmp.ne.s32.totalorder %s106, %s107
    %p119 = scmp.eq.s32.totalorder %s17, 1
    %p120 = por %p118, %p119
    %p122 = scmp.ne.s32.totalorder %s107, %s121
    %p123 = scmp.eq.s32.totalorder %s17, 0
    %p124 = por %p122, %p123
    %s126 = sadd.s32 %s125, 1
    %p129 = scmp.eq.s32.totalorder %s11, 1
    %p130 = scmp.ne.s32.totalorder %s125, %s127
    %p131 = scmp.eq.s32.totalorder %s11, 0
    %p132 = por %p130, %p131
    %p133 = scmp.ne.s32.totalorder %s125, %s127
    %p134 = scmp.eq.s32.totalorder %s16, 1
    %p135 = por %p133, %p134
    %p136 = scmp.ne.s32.totalorder %s127, %s128
    %p137 = scmp.eq.s32.totalorder %s16, 0
    %p138 = por %p136, %p137
    %p139 = scmp.ne.s32.totalorder %s127, %s128
    %p140 = scmp.eq.s32.totalorder %s17, 1
    %p141 = por %p139, %p140
    %p143 = scmp.ne.s32.totalorder %s128, %s142
    %p144 = scmp.eq.s32.totalorder %s17, 0
    %p145 = por %p143, %p144
    %s146 = ssub.s32 %s19, %s26
    %p147 = scmp.eq.s32.totalorder %s146, 0
    %s149 = sadd.s32 %s148, 1
    %s150 = scalar_select %p147, %s148, %s149
    %p153 = pneg %p147
    %p154 = scmp.eq.s32.totalorder %s11, 1
    %p155 = por %p153, %p154
    %p156 = scmp.ne.s32.totalorder %s148, %s151
    %p157 = scmp.eq.s32.totalorder %s11, 0
    %p158 = por %p156, %p157
    %p159 = scmp.ne.s32.totalorder %s148, %s151
    %p160 = scmp.eq.s32.totalorder %s16, 1
    %p161 = por %p159, %p160
    %p162 = scmp.ne.s32.totalorder %s151, %s152
    %p163 = scmp.eq.s32.totalorder %s16, 0
    %p164 = por %p162, %p163
    %p165 = scmp.ne.s32.totalorder %s151, %s152
    %p166 = scmp.eq.s32.totalorder %s17, 1
    %p167 = por %p165, %p166
    %p169 = scmp.ne.s32.totalorder %s152, %s168
    %p170 = scmp.eq.s32.totalorder %s17, 0
    %p171 = por %p169, %p170
    %p172 = scmp.le.s32.totalorder 1, %s11
    %p173 = scmp.lt.s32.totalorder %s11, 3
    %p174 = pnand %p172, %p173
    %p175 = pneg %p174
    // Predicated region
    $region9: #{dir_model_forward.50} parent=5 // pred_check
      _
    $region10: #{dir_model_forward.50} parent=5 // pred_check_branch
      %177 = sbr.rel (%p174) target = $region12
    $region11: #{dir_model_forward.50} parent=5 // pred_region
      %s178 = ssub.s32 %s11, 1
      // Predicated region
      $region13: #{dir_model_forward.50} parent=11 // pred_check
        %p179 = pneg %p49
      $region14: #{dir_model_forward.50} parent=11 // pred_check_branch
        %181 = sbr.rel (%p179) target = $region16
      $region15: #{dir_model_forward.50} parent=11 // pred_region
        %s182 = smul.u32 2, %s21
        %p183 = scmp.lt.s32.totalorder %s182, 1
        %s184 = scalar_select %p183, %s182, 1
        %s185 = smul.addr %s184, 8
        %s186 = scalar_lea.vmem %s0, %s185
        %s187 = smul.u32 2, %s21
      $region16: #{dir_model_forward.50} parent=11 // pred_fallthru
        _
      // Predicated region
      $region17: #{dir_model_forward.50} parent=11 // pred_check
        %p188 = pneg %p75
      $region18: #{dir_model_forward.50} parent=11 // pred_check_branch
        %190 = sbr.rel (%p188) target = $region20
      $region19: #{dir_model_forward.50} parent=11 // pred_region
        %s191 = smul.u32 2, %s21
        %p192 = scmp.lt.s32.totalorder %s191, 1
        %s193 = scalar_select %p192, %s191, 1
        %s194 = smul.addr %s193, 8
        %s195 = scalar_lea.vmem %s1, %s194
        %s196 = smul.u32 2, %s21
      $region20: #{dir_model_forward.50} parent=11 // pred_fallthru
        _
      // Predicated region
      $region21: #{dir_model_forward.50} parent=11 // pred_check
        %p197 = pneg %p96
      $region22: #{dir_model_forward.50} parent=11 // pred_check_branch
        %199 = sbr.rel (%p197) target = $region24
      $region23: #{dir_model_forward.50} parent=11 // pred_region
        _
      $region24: #{dir_model_forward.50} parent=11 // pred_fallthru
        _
      // Predicated region
      $region25: #{dir_model_forward.50} parent=11 // pred_check
        %p200 = pneg %p117
      $region26: #{dir_model_forward.50} parent=11 // pred_check_branch
        %202 = sbr.rel (%p200) target = $region28
      $region27: #{dir_model_forward.50} parent=11 // pred_region
        _
      $region28: #{dir_model_forward.50} parent=11 // pred_fallthru
        _
      // Predicated region
      $region29: #{dir_model_forward.50} parent=11 // pred_check
        %p203 = pneg %p138
      $region30: #{dir_model_forward.50} parent=11 // pred_check_branch
        %205 = sbr.rel (%p203) target = $region32
      $region31: #{dir_model_forward.50} parent=11 // pred_region
        _
      $region32: #{dir_model_forward.50} parent=11 // pred_fallthru
        _
    $region12: #{dir_model_forward.50} parent=5 // pred_fallthru
      _
    %p206 = scmp.lt.s32.totalorder %s11, 2
    // Predicated region
    $region33: #{dir_model_forward.50} parent=5 // pred_check
      %p207 = pneg %p206
    $region34: #{dir_model_forward.50} parent=5 // pred_check_branch
      %209 = sbr.rel (%p207) target = $region36
    $region35: #{dir_model_forward.50} parent=5 // pred_region
      _
    $region36: #{dir_model_forward.50} parent=5 // pred_fallthru
      _
    %p210 = scmp.le.s32.totalorder 1, %s11
    %p211 = scmp.lt.s32.totalorder %s11, 3
    %p212 = pnand %p210, %p211
    %p213 = pneg %p212
    // Predicated region
    $region37: #{dir_model_forward.50} parent=5 // pred_check
      _
    $region38: #{dir_model_forward.50} parent=5 // pred_check_branch
      %215 = sbr.rel (%p212) target = $region40
    $region39: #{dir_model_forward.50} parent=5 // pred_region
      %s216 = ssub.s32 %s11, 1
      %s217 = smul.u32 2, %s21
      %p218 = scmp.lt.s32.totalorder %s217, 1
      %s219 = scalar_select %p218, %s217, 1
      %s220 = smul.addr %s219, 8
      %s221 = scalar_lea.vmem %s0, %s220
      %p222 = pneg %p49
      %p223 = pneg %p46
      %s224 = smul.u32 2, %s21
      %p225 = scmp.lt.s32.totalorder %s224, 1
      %s226 = scalar_select %p225, %s224, 1
      %s227 = smul.addr %s226, 8
      %s228 = scalar_lea.vmem %s1, %s227
      %p229 = pneg %p75
      %p230 = pneg %p72
      %p231 = pneg %p96
      %p232 = pneg %p93
      %p233 = pneg %p117
      %p234 = pneg %p114
      %p235 = pneg %p138
      %p236 = pneg %p135
      %p237 = pneg %p164
      %p238 = pneg %p161
      %s239 = smul.u32 2, %s21
      %p240 = scmp.lt.s32.totalorder %s239, 1
      %s241 = scalar_select %p240, %s239, 1
      %s242 = smul.addr %s241, 8
      %s243 = scalar_lea.vmem %s5, %s242
      %s244 = smul.u32 2, %s21
      %p245 = scmp.lt.s32.totalorder %s244, 1
      %s246 = scalar_select %p245, %s244, 1
      %s247 = smul.addr %s246, 8
      %s248 = scalar_lea.vmem %s0, %s247
      %s249 = smul.u32 2, %s21
      %s250 = smul.u32 2, %s21
      %p251 = scmp.lt.s32.totalorder %s250, 1
      %s252 = scalar_select %p251, %s250, 1
      %s253 = smul.addr %s252, 8
      %s254 = scalar_lea.vmem %s1, %s253
      %s255 = smul.u32 2, %s21
      %s256 = smul.u32 2, %s21
      %p257 = scmp.lt.s32.totalorder %s256, 1
      %s258 = scalar_select %p257, %s256, 1
      %s259 = smul.addr %s258, 8
      %s260 = scalar_lea.vmem %s5, %s259
      %s261 = smul.u32 2, %s21
      %p262 = scmp.eq.s32.totalorder %s20, 0
      %p263 = scmp.eq.s32.totalorder %s21, 0
      %p264 = pnand %p262, %p263
      %p265 = pneg %p264
      // Predicated region
      $region41: #{dir_model_forward.50} parent=39 // pred_check
        _
      $region42: #{dir_model_forward.50} parent=39 // pred_check_branch
        %267 = sbr.rel (%p264) target = $region44
      $region43: #{dir_model_forward.50} parent=39 // pred_region
        %268 = vst [vmem:[#allocation2] sm:$0x1] 0.0
        %269 = vst [vmem:[#allocation3] sm:$0x1] 0.0
        %270 = vst [vmem:[#allocation4] sm:$0x1] 0.0
        %271 = vst [vmem:[#allocation5] sm:$0x1] 0.0
      $region44: #{dir_model_forward.50} parent=39 // pred_fallthru
        _
      // Predicated region
      $region45: #{dir_model_forward.50} parent=39 // pred_check
        %p272 = pneg %p262
      $region46: #{dir_model_forward.50} parent=39 // pred_check_branch
        %274 = sbr.rel (%p272) target = $region48
      $region47: #{dir_model_forward.50} parent=39 // pred_region
        %v275 = vld [vmem:[%s248] sm:$0xff]
        %v276 = vld [vmem:[%s248 + $0x8] sm:$0xff]
        %v277 = vld [vmem:[%s254] sm:$0xff]
        %v278 = vld [vmem:[%s254 + $0x8] sm:$0xff]
        %v279 = vld [vmem:[#allocation2] sm:$0x1]
        %v280 = vadd.f32 %v275, %v276
        %v281 = vrot.slane %v280, 4
        %v282 = vadd.f32 %v280, %v281
        %v283 = vrot.slane %v282, 2
        %v284 = vadd.f32 %v282, %v283
        %v285 = vrot.slane %v284, 1
        %v286 = vadd.f32 %v284, %v285
        %v287 = vadd.f32 %v279, %v286
        %288 = vst [vmem:[#allocation2] sm:$0x1] %v287
        %v289 = vld [vmem:[#allocation3] sm:$0x1]
        %v290 = vmul.f32 %v275, %v275
        %v291 = vmul.f32 %v276, %v276
        %v292 = vadd.f32 %v290, %v291
        %v293 = vrot.slane %v292, 4
        %v294 = vadd.f32 %v292, %v293
        %v295 = vrot.slane %v294, 2
        %v296 = vadd.f32 %v294, %v295
        %v297 = vrot.slane %v296, 1
        %v298 = vadd.f32 %v296, %v297
        %v299 = vadd.f32 %v289, %v298
        %300 = vst [vmem:[#allocation3] sm:$0x1] %v299
        %v301 = vld [vmem:[#allocation4] sm:$0x1]
        %v302 = vadd.f32 %v277, %v278
        %v303 = vrot.slane %v302, 4
        %v304 = vadd.f32 %v302, %v303
        %v305 = vrot.slane %v304, 2
        %v306 = vadd.f32 %v304, %v305
        %v307 = vrot.slane %v306, 1
        %v308 = vadd.f32 %v306, %v307
        %v309 = vadd.f32 %v301, %v308
        %310 = vst [vmem:[#allocation4] sm:$0x1] %v309
        %v311 = vld [vmem:[#allocation5] sm:$0x1]
        %v312 = vmul.f32 %v277, %v277
        %v313 = vmul.f32 %v278, %v278
        %v314 = vadd.f32 %v312, %v313
        %v315 = vrot.slane %v314, 4
        %v316 = vadd.f32 %v314, %v315
        %v317 = vrot.slane %v316, 2
        %v318 = vadd.f32 %v316, %v317
        %v319 = vrot.slane %v318, 1
        %v320 = vadd.f32 %v318, %v319
        %v321 = vadd.f32 %v311, %v320
        %322 = vst [vmem:[#allocation5] sm:$0x1] %v321
        %323 = vst [vmem:[%s260] sm:$0xff] 0.0
        %324 = vst [vmem:[%s260 + $0x8] sm:$0xff] 0.0
      $region48: #{dir_model_forward.50} parent=39 // pred_fallthru
        _
      %p325 = scmp.eq.s32.totalorder %s20, 1
      // Predicated region
      $region49: #{dir_model_forward.50} parent=39 // pred_check
        %p326 = pneg %p325
      $region50: #{dir_model_forward.50} parent=39 // pred_check_branch
        %328 = sbr.rel (%p326) target = $region52
      $region51: #{dir_model_forward.50} parent=39 // pred_region
        %v329 = vld [vmem:[#allocation2] sm:$0x1]
        %v330 = vmul.f32 %v329, 0.0625
        %v331 = vld [vmem:[#allocation3] sm:$0x1]
        %v332 = vmul.f32 %v331, 0.0625
        %v333 = vmul.f32 %v330, %v330
        %v334 = vsub.f32 %v332, %v333
        %v335 = vmax.f32 %v334, 0.0
        %v336 = vadd.f32 %v335, 1e-05
        %v337 = vrsqrt.pop %v336
        %v338 = vmul.f32 %v337, %v336
        %v339 = vmul.f32 %v338, %v337
        %v340 = vmul.f32 0.5, %v339
        %v341 = vsub.f32 1.5, %v340
        %v342 = vmul.f32 %v337, %v341
        %vm343 = vweird.f32 %v336
        %vm344 = vweird.f32 %v337
        %vm345 = vmor %vm343, %vm344
        %v346 = vsel %vm345, %v337, %v342
        %v347 = vld [vmem:[#allocation4] sm:$0x1]
        %v348 = vmul.f32 %v347, 0.0625
        %v349 = vld [vmem:[#allocation5] sm:$0x1]
        %v350 = vmul.f32 %v349, 0.0625
        %v351 = vmul.f32 %v348, %v348
        %v352 = vsub.f32 %v350, %v351
        %v353 = vmax.f32 %v352, 0.0
        %v354 = vadd.f32 %v353, 1e-05
        %v355 = vrsqrt.pop %v354
        %v356 = vmul.f32 %v355, %v354
        %v357 = vmul.f32 %v356, %v355
        %v358 = vmul.f32 0.5, %v357
        %v359 = vsub.f32 1.5, %v358
        %v360 = vmul.f32 %v355, %v359
        %vm361 = vweird.f32 %v354
        %vm362 = vweird.f32 %v355
        %vm363 = vmor %vm361, %vm362
        %v364 = vsel %vm363, %v355, %v360
        %v365 = vld [vmem:[%s248] sm:$0xff]
        %v366 = vld [vmem:[%s248 + $0x8] sm:$0xff]
        %v368 = vperm.slane %v330, 0
        %v370 = vsub.f32 %v365, %v368
        %v371 = vsub.f32 %v366, %v368
        %v373 = vperm.slane %v346, 0
        %v375 = vmul.f32 %v370, %v373
        %v376 = vmul.f32 %v371, %v373
        %v377 = vld [vmem:[%s254] sm:$0xff]
        %v378 = vld [vmem:[%s254 + $0x8] sm:$0xff]
        %v380 = vperm.slane %v348, 0
        %v382 = vsub.f32 %v377, %v380
        %v383 = vsub.f32 %v378, %v380
        %v385 = vperm.slane %v364, 0
        %v387 = vmul.f32 %v382, %v385
        %v388 = vmul.f32 %v383, %v385
        %v389 = vld [vmem:[%s2] sm:$0xff]
        %v390 = vld [vmem:[%s2 + $0x8] sm:$0xff]
        %v391 = vld [vmem:[%s2 + $0x10] sm:$0xff]
        %v392 = vld [vmem:[%s2 + $0x18] sm:$0xff]
        %v393 = vld [vmem:[%s2 + $0x20] sm:$0xff]
        %v394 = vld [vmem:[%s2 + $0x28] sm:$0xff]
        %v395 = vld [vmem:[%s2 + $0x30] sm:$0xff]
        %v396 = vld [vmem:[%s2 + $0x38] sm:$0xff]
        %v397 = vld [vmem:[%s2 + $0x40] sm:$0xff]
        %v398 = vld [vmem:[%s2 + $0x48] sm:$0xff]
        %v399 = vld [vmem:[%s2 + $0x50] sm:$0xff]
        %v400 = vld [vmem:[%s2 + $0x58] sm:$0xff]
        %v401 = vld [vmem:[%s2 + $0x60] sm:$0xff]
        %v402 = vld [vmem:[%s2 + $0x68] sm:$0xff]
        %v403 = vld [vmem:[%s2 + $0x70] sm:$0xff]
        %v404 = vld [vmem:[%s2 + $0x78] sm:$0xff]
        %v405 = vld [vmem:[%s3] sm:$0xff]
        %v406 = vld [vmem:[%s3 + $0x8] sm:$0xff]
        %v407 = vld [vmem:[%s3 + $0x10] sm:$0xff]
        %v408 = vld [vmem:[%s3 + $0x18] sm:$0xff]
        %v409 = vld [vmem:[%s3 + $0x20] sm:$0xff]
        %v410 = vld [vmem:[%s3 + $0x28] sm:$0xff]
        %v411 = vld [vmem:[%s3 + $0x30] sm:$0xff]
        %v412 = vld [vmem:[%s3 + $0x38] sm:$0xff]
        %v413 = vld [vmem:[%s3 + $0x40] sm:$0xff]
        %v414 = vld [vmem:[%s3 + $0x48] sm:$0xff]
        %v415 = vld [vmem:[%s3 + $0x50] sm:$0xff]
        %v416 = vld [vmem:[%s3 + $0x58] sm:$0xff]
        %v417 = vld [vmem:[%s3 + $0x60] sm:$0xff]
        %v418 = vld [vmem:[%s3 + $0x68] sm:$0xff]
        %v419 = vld [vmem:[%s3 + $0x70] sm:$0xff]
        %v420 = vld [vmem:[%s3 + $0x78] sm:$0xff]
        %421 = vmatpush.msra.mxu0 %v420
        %422 = vmatpush.msra.mxu0 %v419
        %423 = vmatpush.msra.mxu0 %v418
        %424 = vmatpush.msra.mxu0 %v417
        %425 = vmatpush.msra.mxu0 %v416
        %426 = vmatpush.msra.mxu0 %v415
        %427 = vmatpush.msra.mxu0 %v414
        %428 = vmatpush.msra.mxu0 %v413
        %429 = vmatpush.msra.mxu0 %v412
        %430 = vmatpush.msra.mxu0 %v411
        %431 = vmatpush.msra.mxu0 %v410
        %432 = vmatpush.msra.mxu0 %v409
        %433 = vmatpush.msra.mxu0 %v408
        %434 = vmatpush.msra.mxu0 %v407
        %435 = vmatpush.msra.mxu0 %v406
        %436 = vmatpush.msra.mxu0 %v405
        %437 = vmatmul.f32.gmra.mxu0 %v387
        %v438 = vpop.f32.mrf.mxu0
        %v439 = vadd.f32 0.0, %v438
        %440 = vmatmul.f32.gmra.mxu0 %v388
        %v441 = vpop.f32.mrf.mxu0
        %v442 = vadd.f32 0.0, %v441
        %443 = vdwg.mxu0
        %444 = vmatpush.msra.mxu0 %v404
        %445 = vmatpush.msra.mxu0 %v403
        %446 = vmatpush.msra.mxu0 %v402
        %447 = vmatpush.msra.mxu0 %v401
        %448 = vmatpush.msra.mxu0 %v400
        %449 = vmatpush.msra.mxu0 %v399
        %450 = vmatpush.msra.mxu0 %v398
        %451 = vmatpush.msra.mxu0 %v397
        %452 = vmatpush.msra.mxu0 %v396
        %453 = vmatpush.msra.mxu0 %v395
        %454 = vmatpush.msra.mxu0 %v394
        %455 = vmatpush.msra.mxu0 %v393
        %456 = vmatpush.msra.mxu0 %v392
        %457 = vmatpush.msra.mxu0 %v391
        %458 = vmatpush.msra.mxu0 %v390
        %459 = vmatpush.msra.mxu0 %v389
        %460 = vmatmul.f32.gmra.mxu0 %v375
        %v461 = vpop.f32.mrf.mxu0
        %v462 = vadd.f32 %v439, %v461
        %463 = vmatmul.f32.gmra.mxu0 %v376
        %v464 = vpop.f32.mrf.mxu0
        %v465 = vadd.f32 %v442, %v464
        %466 = vdwg.mxu0
        %v467 = vld [vmem:[%s4] sm:$0x1]
        %v469 = vperm.slane %v467, 0
        %v471 = vadd.f32 %v462, %v469
        %v472 = vadd.f32 %v465, %v469
        %473 = vst [vmem:[%s260] sm:$0xff] %v471
        %474 = vst [vmem:[%s260 + $0x8] sm:$0xff] %v472
      $region52: #{dir_model_forward.50} parent=39 // pred_fallthru
        _
      %s475 = smul.u32 2, %s21
      %p476 = scmp.lt.s32.totalorder %s475, 1
      %s477 = scalar_select %p476, %s475, 1
      %s478 = smul.addr %s477, 8
      %s479 = scalar_lea.vmem %s5, %s478
      // Predicated region
      $region53: #{dir_model_forward.50} parent=39 // pred_check
        %p480 = pneg %p161
      $region54: #{dir_model_forward.50} parent=39 // pred_check_branch
        %482 = sbr.rel (%p480) target = $region56
      $region55: #{dir_model_forward.50} parent=39 // pred_region
        %s483 = smul.u32 2, %s21
      $region56: #{dir_model_forward.50} parent=39 // pred_fallthru
        _
      // Predicated region
      $region57: #{dir_model_forward.50} parent=39 // pred_check
        %p484 = pneg %p161
      $region58: #{dir_model_forward.50} parent=39 // pred_check_branch
        %486 = sbr.rel (%p484) target = $region60
      $region59: #{dir_model_forward.50} parent=39 // pred_region
        %s487 = smul.u32 2, %s21
        %p488 = scmp.lt.s32.totalorder %s487, 1
        %s489 = scalar_select %p488, %s487, 1
        %s490 = smul.addr %s489, 8
        %s491 = scalar_lea.vmem %s5, %s490
      $region60: #{dir_model_forward.50} parent=39 // pred_fallthru
        _
    $region40: #{dir_model_forward.50} parent=5 // pred_fallthru
      _
    %p492 = scmp.le.s32.totalorder 2, %s11
    // Predicated region
    $region61: #{dir_model_forward.50} parent=5 // pred_check
      %p493 = pneg %p492
    $region62: #{dir_model_forward.50} parent=5 // pred_check_branch
      %495 = sbr.rel (%p493) target = $region64
    $region63: #{dir_model_forward.50} parent=5 // pred_region
      %s496 = ssub.s32 %s11, 2
    $region64: #{dir_model_forward.50} parent=5 // pred_fallthru
      _
  $region6: #{dir_model_forward.50} parent=0 // loop_footer
    %s15 = sadd.s32 1, %s11
  $region7: #{dir_model_forward.50} parent=0 // loop_footer_branch
    %10 = sbr.rel target = $region3
  $region8: #{dir_model_forward.50} parent=0 // loop_exit
    _

// kernel: dir_model_forward.91
$region0: #{dir_model_forward.91}
  #allocation0 [shape = 'u32[]', space=smem, size = 0x4, offset = 0x4, fixed_abs, tag = 'smem constant byte address 0x4 - core index']
  #allocation1 [shape = 'u32[72,128]{1,0:T(1,128)}', space=vmem, size = 0x9000, scoped, tag = 'internal scratch']
  #allocation2 [shape = 'f32[1,128]{1,0:T(1,128)}', space=vmem, size = 0x200, scoped, tag = 'scratch operand']
  #allocation3 [shape = 'f32[1,128]{1,0:T(1,128)}', space=vmem, size = 0x200, scoped, tag = 'scratch operand']
  %s0 = inlined_call_operand.vmem [shape: f32[32,128], index: 0, kind: input, shape index: {}]
  %s1 = inlined_call_operand.vmem [shape: f32[128,128], index: 1, kind: input, shape index: {}]
  %s2 = inlined_call_operand.vmem [shape: f32[1,128], index: 2, kind: input, shape index: {}]
  %s3 = inlined_call_operand.vmem [shape: f32[32,128], index: 3, kind: output, shape index: {}]
  %s4 = sld [smem:[#allocation0]]
  $region57: #{dir_model_forward.91} parent=0
    _
  %s6 = ssub.s32 1, %s4
  %s7 = scalar_select 0, %s6, %s4
  loop: start=0, step=1, limit=4
  $region2: #{dir_model_forward.91} parent=0 // loop_pre_header
    _
  $region3: #{dir_model_forward.91} parent=0 // loop_header
    %s9 = sphi 0, %s13
    %p10 = scmp.ge.s32.totalorder %s9, 4
    %s16 = sphi 0, %s28
    %s17 = sphi 0, %s24
    %s18 = sphi 0, %s16
    %s19 = sphi 0, %s17
    %s20 = sphi 0, %s18
    %s21 = sphi 0, %s19
    %s31 = sphi 0, %s33
    %s34 = sphi 0, %s31
    %s35 = sphi 0, %s34
    %s51 = sphi 0, %s35
    %s55 = sphi 0, %s55
    %s57 = sphi 0, %s55
    %s58 = sphi 0, %s57
    %s72 = sphi 0, %s58
    %s76 = sphi 0, %s76
    %s78 = sphi 0, %s76
    %s79 = sphi 0, %s78
    %s93 = sphi 0, %s79
    %s99 = sphi 0, %s101
    %s102 = sphi 0, %s99
    %s103 = sphi 0, %s102
    %s119 = sphi 0, %s103
  $region4: #{dir_model_forward.91} parent=0 // loop_header_branch
    %12 = sbr.rel (%p10) target = $region8
  $region5: #{dir_model_forward.91} parent=0 // loop_body
    %s14 = ssub.s32 %s9, 1
    %s15 = ssub.s32 %s9, 2
    %s22 = sadd.s32 1, %s17
    %p23 = scmp.ge.s32.totalorder %s22, 1
    %s24 = scalar_select %p23, 0, %s22
    %s25 = sadd.s32 1, %s16
    %s26 = scalar_select %p23, %s25, %s16
    %p27 = scmp.ge.s32.totalorder %s26, 2
    %s28 = scalar_select %p27, 0, %s26
    %s29 = ssub.s32 %s17, %s24
    %p30 = scmp.eq.s32.totalorder %s29, 0
    %s32 = sadd.s32 %s31, 1
    %s33 = scalar_select %p30, %s31, %s32
    %p36 = pneg %p30
    %p37 = scmp.eq.s32.totalorder %s9, 1
    %p38 = por %p36, %p37
    %p39 = scmp.ne.s32.totalorder %s31, %s34
    %p40 = scmp.eq.s32.totalorder %s9, 0
    %p41 = por %p39, %p40
    %p42 = scmp.ne.s32.totalorder %s31, %s34
    %p43 = scmp.eq.s32.totalorder %s14, 1
    %p44 = por %p42, %p43
    %p45 = scmp.ne.s32.totalorder %s34, %s35
    %p46 = scmp.eq.s32.totalorder %s14, 0
    %p47 = por %p45, %p46
    %p48 = scmp.ne.s32.totalorder %s34, %s35
    %p49 = scmp.eq.s32.totalorder %s15, 1
    %p50 = por %p48, %p49
    %p52 = scmp.ne.s32.totalorder %s35, %s51
    %p53 = scmp.eq.s32.totalorder %s15, 0
    %p54 = por %p52, %p53
    %s56 = sadd.s32 %s55, 1
    %p59 = scmp.eq.s32.totalorder %s9, 1
    %p60 = scmp.ne.s32.totalorder %s55, %s57
    %p61 = scmp.eq.s32.totalorder %s9, 0
    %p62 = por %p60, %p61
    %p63 = scmp.ne.s32.totalorder %s55, %s57
    %p64 = scmp.eq.s32.totalorder %s14, 1
    %p65 = por %p63, %p64
    %p66 = scmp.ne.s32.totalorder %s57, %s58
    %p67 = scmp.eq.s32.totalorder %s14, 0
    %p68 = por %p66, %p67
    %p69 = scmp.ne.s32.totalorder %s57, %s58
    %p70 = scmp.eq.s32.totalorder %s15, 1
    %p71 = por %p69, %p70
    %p73 = scmp.ne.s32.totalorder %s58, %s72
    %p74 = scmp.eq.s32.totalorder %s15, 0
    %p75 = por %p73, %p74
    %s77 = sadd.s32 %s76, 1
    %p80 = scmp.eq.s32.totalorder %s9, 1
    %p81 = scmp.ne.s32.totalorder %s76, %s78
    %p82 = scmp.eq.s32.totalorder %s9, 0
    %p83 = por %p81, %p82
    %p84 = scmp.ne.s32.totalorder %s76, %s78
    %p85 = scmp.eq.s32.totalorder %s14, 1
    %p86 = por %p84, %p85
    %p87 = scmp.ne.s32.totalorder %s78, %s79
    %p88 = scmp.eq.s32.totalorder %s14, 0
    %p89 = por %p87, %p88
    %p90 = scmp.ne.s32.totalorder %s78, %s79
    %p91 = scmp.eq.s32.totalorder %s15, 1
    %p92 = por %p90, %p91
    %p94 = scmp.ne.s32.totalorder %s79, %s93
    %p95 = scmp.eq.s32.totalorder %s15, 0
    %p96 = por %p94, %p95
    %s97 = ssub.s32 %s17, %s24
    %p98 = scmp.eq.s32.totalorder %s97, 0
    %s100 = sadd.s32 %s99, 1
    %s101 = scalar_select %p98, %s99, %s100
    %p104 = pneg %p98
    %p105 = scmp.eq.s32.totalorder %s9, 1
    %p106 = por %p104, %p105
    %p107 = scmp.ne.s32.totalorder %s99, %s102
    %p108 = scmp.eq.s32.totalorder %s9, 0
    %p109 = por %p107, %p108
    %p110 = scmp.ne.s32.totalorder %s99, %s102
    %p111 = scmp.eq.s32.totalorder %s14, 1
    %p112 = por %p110, %p111
    %p113 = scmp.ne.s32.totalorder %s102, %s103
    %p114 = scmp.eq.s32.totalorder %s14, 0
    %p115 = por %p113, %p114
    %p116 = scmp.ne.s32.totalorder %s102, %s103
    %p117 = scmp.eq.s32.totalorder %s15, 1
    %p118 = por %p116, %p117
    %p120 = scmp.ne.s32.totalorder %s103, %s119
    %p121 = scmp.eq.s32.totalorder %s15, 0
    %p122 = por %p120, %p121
    %p123 = scmp.le.s32.totalorder 1, %s9
    %p124 = scmp.lt.s32.totalorder %s9, 3
    %p125 = pnand %p123, %p124
    %p126 = pneg %p125
    // Predicated region
    $region9: #{dir_model_forward.91} parent=5 // pred_check
      _
    $region10: #{dir_model_forward.91} parent=5 // pred_check_branch
      %128 = sbr.rel (%p125) target = $region12
    $region11: #{dir_model_forward.91} parent=5 // pred_region
      %s129 = ssub.s32 %s9, 1
      // Predicated region
      $region13: #{dir_model_forward.91} parent=11 // pred_check
        %p130 = pneg %p47
      $region14: #{dir_model_forward.91} parent=11 // pred_check_branch
        %132 = sbr.rel (%p130) target = $region16
      $region15: #{dir_model_forward.91} parent=11 // pred_region
        %s133 = smul.u32 4, %s19
        %p134 = scmp.lt.s32.totalorder %s133, 3
        %s135 = scalar_select %p134, %s133, 3
        %s136 = smul.addr %s135, 8
        %s137 = scalar_lea.vmem %s0, %s136
        %s138 = smul.u32 4, %s19
      $region16: #{dir_model_forward.91} parent=11 // pred_fallthru
        _
      // Predicated region
      $region17: #{dir_model_forward.91} parent=11 // pred_check
        %p139 = pneg %p68
      $region18: #{dir_model_forward.91} parent=11 // pred_check_branch
        %141 = sbr.rel (%p139) target = $region20
      $region19: #{dir_model_forward.91} parent=11 // pred_region
        _
      $region20: #{dir_model_forward.91} parent=11 // pred_fallthru
        _
      // Predicated region
      $region21: #{dir_model_forward.91} parent=11 // pred_check
        %p142 = pneg %p89
      $region22: #{dir_model_forward.91} parent=11 // pred_check_branch
        %144 = sbr.rel (%p142) target = $region24
      $region23: #{dir_model_forward.91} parent=11 // pred_region
        _
      $region24: #{dir_model_forward.91} parent=11 // pred_fallthru
        _
    $region12: #{dir_model_forward.91} parent=5 // pred_fallthru
      _
    %p145 = scmp.lt.s32.totalorder %s9, 2
    // Predicated region
    $region25: #{dir_model_forward.91} parent=5 // pred_check
      %p146 = pneg %p145
    $region26: #{dir_model_forward.91} parent=5 // pred_check_branch
      %148 = sbr.rel (%p146) target = $region28
    $region27: #{dir_model_forward.91} parent=5 // pred_region
      _
    $region28: #{dir_model_forward.91} parent=5 // pred_fallthru
      _
    %p149 = scmp.le.s32.totalorder 1, %s9
    %p150 = scmp.lt.s32.totalorder %s9, 3
    %p151 = pnand %p149, %p150
    %p152 = pneg %p151
    // Predicated region
    $region29: #{dir_model_forward.91} parent=5 // pred_check
      _
    $region30: #{dir_model_forward.91} parent=5 // pred_check_branch
      %154 = sbr.rel (%p151) target = $region32
    $region31: #{dir_model_forward.91} parent=5 // pred_region
      %s155 = ssub.s32 %s9, 1
      %s156 = smul.u32 4, %s19
      %p157 = scmp.lt.s32.totalorder %s156, 3
      %s158 = scalar_select %p157, %s156, 3
      %s159 = smul.addr %s158, 8
      %s160 = scalar_lea.vmem %s0, %s159
      %p161 = pneg %p47
      %p162 = pneg %p44
      %p163 = pneg %p68
      %p164 = pneg %p65
      %p165 = pneg %p89
      %p166 = pneg %p86
      %p167 = pneg %p115
      %p168 = pneg %p112
      %s169 = smul.u32 4, %s19
      %p170 = scmp.lt.s32.totalorder %s169, 3
      %s171 = scalar_select %p170, %s169, 3
      %s172 = smul.addr %s171, 8
      %s173 = scalar_lea.vmem %s3, %s172
      %s174 = smul.u32 4, %s19
      %p175 = scmp.lt.s32.totalorder %s174, 3
      %s176 = scalar_select %p175, %s174, 3
      %s177 = smul.addr %s176, 8
      %s178 = scalar_lea.vmem %s0, %s177
      %s179 = smul.u32 4, %s19
      %s180 = smul.u32 4, %s19
      %p181 = scmp.lt.s32.totalorder %s180, 3
      %s182 = scalar_select %p181, %s180, 3
      %s183 = smul.addr %s182, 8
      %s184 = scalar_lea.vmem %s3, %s183
      %s185 = smul.u32 4, %s19
      %p186 = scmp.eq.s32.totalorder %s18, 0
      %p187 = scmp.eq.s32.totalorder %s19, 0
      %p188 = pnand %p186, %p187
      %p189 = pneg %p188
      // Predicated region
      $region33: #{dir_model_forward.91} parent=31 // pred_check
        _
      $region34: #{dir_model_forward.91} parent=31 // pred_check_branch
        %191 = sbr.rel (%p188) target = $region36
      $region35: #{dir_model_forward.91} parent=31 // pred_region
        %192 = vst [vmem:[#allocation2] sm:$0x1] 0.0
        %193 = vst [vmem:[#allocation3] sm:$0x1] 0.0
      $region36: #{dir_model_forward.91} parent=31 // pred_fallthru
        _
      // Predicated region
      $region37: #{dir_model_forward.91} parent=31 // pred_check
        %p194 = pneg %p186
      $region38: #{dir_model_forward.91} parent=31 // pred_check_branch
        %196 = sbr.rel (%p194) target = $region40
      $region39: #{dir_model_forward.91} parent=31 // pred_region
        %v197 = vld [vmem:[%s178] sm:$0xff]
        %v198 = vld [vmem:[%s178 + $0x8] sm:$0xff]
        %v199 = vld [vmem:[%s178 + $0x10] sm:$0xff]
        %v200 = vld [vmem:[%s178 + $0x18] sm:$0xff]
        %v201 = vld [vmem:[#allocation2] sm:$0x1]
        %v202 = vadd.f32 %v197, %v198
        %v203 = vadd.f32 %v202, %v199
        %v204 = vadd.f32 %v203, %v200
        %v205 = vrot.slane %v204, 4
        %v206 = vadd.f32 %v204, %v205
        %v207 = vrot.slane %v206, 2
        %v208 = vadd.f32 %v206, %v207
        %v209 = vrot.slane %v208, 1
        %v210 = vadd.f32 %v208, %v209
        %v211 = vadd.f32 %v201, %v210
        %212 = vst [vmem:[#allocation2] sm:$0x1] %v211
        %v213 = vld [vmem:[#allocation3] sm:$0x1]
        %v214 = vmul.f32 %v197, %v197
        %v215 = vmul.f32 %v198, %v198
        %v216 = vmul.f32 %v199, %v199
        %v217 = vmul.f32 %v200, %v200
        %v218 = vadd.f32 %v214, %v215
        %v219 = vadd.f32 %v218, %v216
        %v220 = vadd.f32 %v219, %v217
        %v221 = vrot.slane %v220, 4
        %v222 = vadd.f32 %v220, %v221
        %v223 = vrot.slane %v222, 2
        %v224 = vadd.f32 %v222, %v223
        %v225 = vrot.slane %v224, 1
        %v226 = vadd.f32 %v224, %v225
        %v227 = vadd.f32 %v213, %v226
        %228 = vst [vmem:[#allocation3] sm:$0x1] %v227
        %229 = vst [vmem:[%s184] sm:$0xff] 0.0
        %230 = vst [vmem:[%s184 + $0x8] sm:$0xff] 0.0
        %231 = vst [vmem:[%s184 + $0x10] sm:$0xff] 0.0
        %232 = vst [vmem:[%s184 + $0x18] sm:$0xff] 0.0
      $region40: #{dir_model_forward.91} parent=31 // pred_fallthru
        _
      %p233 = scmp.eq.s32.totalorder %s18, 1
      // Predicated region
      $region41: #{dir_model_forward.91} parent=31 // pred_check
        %p234 = pneg %p233
      $region42: #{dir_model_forward.91} parent=31 // pred_check_branch
        %236 = sbr.rel (%p234) target = $region44
      $region43: #{dir_model_forward.91} parent=31 // pred_region
        %v237 = vld [vmem:[#allocation2] sm:$0x1]
        %v238 = vmul.f32 %v237, 0.03125
        %v239 = vld [vmem:[#allocation3] sm:$0x1]
        %v240 = vmul.f32 %v239, 0.03125
        %v241 = vmul.f32 %v238, %v238
        %v242 = vsub.f32 %v240, %v241
        %v243 = vmax.f32 %v242, 0.0
        %v244 = vadd.f32 %v243, 1e-05
        %v245 = vrsqrt.pop %v244
        %v246 = vmul.f32 %v245, %v244
        %v247 = vmul.f32 %v246, %v245
        %v248 = vmul.f32 0.5, %v247
        %v249 = vsub.f32 1.5, %v248
        %v250 = vmul.f32 %v245, %v249
        %vm251 = vweird.f32 %v244
        %vm252 = vweird.f32 %v245
        %vm253 = vmor %vm251, %vm252
        %v254 = vsel %vm253, %v245, %v250
        %v255 = vld [vmem:[%s178] sm:$0xff]
        %v256 = vld [vmem:[%s178 + $0x8] sm:$0xff]
        %v257 = vld [vmem:[%s178 + $0x10] sm:$0xff]
        %v258 = vld [vmem:[%s178 + $0x18] sm:$0xff]
        %v260 = vperm.slane %v238, 0
        %v262 = vsub.f32 %v255, %v260
        %v263 = vsub.f32 %v256, %v260
        %v264 = vsub.f32 %v257, %v260
        %v265 = vsub.f32 %v258, %v260
        %v267 = vperm.slane %v254, 0
        %v269 = vmul.f32 %v262, %v267
        %v270 = vmul.f32 %v263, %v267
        %v271 = vmul.f32 %v264, %v267
        %v272 = vmul.f32 %v265, %v267
        %v273 = vld [vmem:[%s1] sm:$0xff]
        %v274 = vld [vmem:[%s1 + $0x8] sm:$0xff]
        %v275 = vld [vmem:[%s1 + $0x10] sm:$0xff]
        %v276 = vld [vmem:[%s1 + $0x18] sm:$0xff]
        %v277 = vld [vmem:[%s1 + $0x20] sm:$0xff]
        %v278 = vld [vmem:[%s1 + $0x28] sm:$0xff]
        %v279 = vld [vmem:[%s1 + $0x30] sm:$0xff]
        %v280 = vld [vmem:[%s1 + $0x38] sm:$0xff]
        %v281 = vld [vmem:[%s1 + $0x40] sm:$0xff]
        %v282 = vld [vmem:[%s1 + $0x48] sm:$0xff]
        %v283 = vld [vmem:[%s1 + $0x50] sm:$0xff]
        %v284 = vld [vmem:[%s1 + $0x58] sm:$0xff]
        %v285 = vld [vmem:[%s1 + $0x60] sm:$0xff]
        %v286 = vld [vmem:[%s1 + $0x68] sm:$0xff]
        %v287 = vld [vmem:[%s1 + $0x70] sm:$0xff]
        %v288 = vld [vmem:[%s1 + $0x78] sm:$0xff]
        %v289 = vld [vmem:[%s2] sm:$0x1]
        %v291 = vperm.slane %v289, 0
        %293 = vmatpush.msra.mxu0 %v288
        %294 = vmatpush.msra.mxu0 %v287
        %295 = vmatpush.msra.mxu0 %v286
        %296 = vmatpush.msra.mxu0 %v285
        %297 = vmatpush.msra.mxu0 %v284
        %298 = vmatpush.msra.mxu0 %v283
        %299 = vmatpush.msra.mxu0 %v282
        %300 = vmatpush.msra.mxu0 %v281
        %301 = vmatpush.msra.mxu0 %v280
        %302 = vmatpush.msra.mxu0 %v279
        %303 = vmatpush.msra.mxu0 %v278
        %304 = vmatpush.msra.mxu0 %v277
        %305 = vmatpush.msra.mxu0 %v276
        %306 = vmatpush.msra.mxu0 %v275
        %307 = vmatpush.msra.mxu0 %v274
        %308 = vmatpush.msra.mxu0 %v273
        %309 = vmatmul.f32.gmra.mxu0 %v269
        %v310 = vpop.f32.mrf.mxu0
        %v311 = vadd.f32 %v291, %v310
        %312 = vmatmul.f32.gmra.mxu0 %v270
        %v313 = vpop.f32.mrf.mxu0
        %v314 = vadd.f32 %v291, %v313
        %315 = vmatmul.f32.gmra.mxu0 %v271
        %v316 = vpop.f32.mrf.mxu0
        %v317 = vadd.f32 %v291, %v316
        %318 = vmatmul.f32.gmra.mxu0 %v272
        %v319 = vpop.f32.mrf.mxu0
        %v320 = vadd.f32 %v291, %v319
        %321 = vdwg.mxu0
        %322 = vst [vmem:[%s184] sm:$0xff] %v311
        %323 = vst [vmem:[%s184 + $0x8] sm:$0xff] %v314
        %324 = vst [vmem:[%s184 + $0x10] sm:$0xff] %v317
        %325 = vst [vmem:[%s184 + $0x18] sm:$0xff] %v320
      $region44: #{dir_model_forward.91} parent=31 // pred_fallthru
        _
      %s326 = smul.u32 4, %s19
      %p327 = scmp.lt.s32.totalorder %s326, 3
      %s328 = scalar_select %p327, %s326, 3
      %s329 = smul.addr %s328, 8
      %s330 = scalar_lea.vmem %s3, %s329
      // Predicated region
      $region45: #{dir_model_forward.91} parent=31 // pred_check
        %p331 = pneg %p112
      $region46: #{dir_model_forward.91} parent=31 // pred_check_branch
        %333 = sbr.rel (%p331) target = $region48
      $region47: #{dir_model_forward.91} parent=31 // pred_region
        %s334 = smul.u32 4, %s19
      $region48: #{dir_model_forward.91} parent=31 // pred_fallthru
        _
      // Predicated region
      $region49: #{dir_model_forward.91} parent=31 // pred_check
        %p335 = pneg %p112
      $region50: #{dir_model_forward.91} parent=31 // pred_check_branch
        %337 = sbr.rel (%p335) target = $region52
      $region51: #{dir_model_forward.91} parent=31 // pred_region
        %s338 = smul.u32 4, %s19
        %p339 = scmp.lt.s32.totalorder %s338, 3
        %s340 = scalar_select %p339, %s338, 3
        %s341 = smul.addr %s340, 8
        %s342 = scalar_lea.vmem %s3, %s341
      $region52: #{dir_model_forward.91} parent=31 // pred_fallthru
        _
    $region32: #{dir_model_forward.91} parent=5 // pred_fallthru
      _
    %p343 = scmp.le.s32.totalorder 2, %s9
    // Predicated region
    $region53: #{dir_model_forward.91} parent=5 // pred_check
      %p344 = pneg %p343
    $region54: #{dir_model_forward.91} parent=5 // pred_check_branch
      %346 = sbr.rel (%p344) target = $region56
    $region55: #{dir_model_forward.91} parent=5 // pred_region
      %s347 = ssub.s32 %s9, 2
    $region56: #{dir_model_forward.91} parent=5 // pred_fallthru
      _
  $region6: #{dir_model_forward.91} parent=0 // loop_footer
    %s13 = sadd.s32 1, %s9
  $region7: #{dir_model_forward.91} parent=0 // loop_footer_branch
    %8 = sbr.rel target = $region3
  $region8: #{dir_model_forward.91} parent=0 // loop_exit
    _

</llo_original>
